<compile_context>
chip_gen: v5e
topology: v5e:2x2
jax: 0.10.0
libtpu: 0.0.40
codegen_flags: <defaults>
</compile_context>

<pallas_src>
import functools
import numpy as np
import jax
import jax.numpy as jnp
from jax.experimental import pallas as pl
from jax.experimental.pallas import tpu as pltpu


# --------------------------------------------------------------------------------------
# Host-side constant builders (depend only on static shapes)
# --------------------------------------------------------------------------------------

def _bilinear_matrix(in_size, out_size):
    """1-D interpolation matrix matching PyTorch F.interpolate(bilinear, align_corners=False)."""
    scale = in_size / out_size
    dst = np.arange(out_size, dtype=np.float64)
    src = (dst + 0.5) * scale - 0.5
    src = np.maximum(src, 0.0)
    x0 = np.minimum(np.floor(src).astype(np.int64), in_size - 1)
    x1 = np.minimum(x0 + 1, in_size - 1)
    lam = (src - x0).astype(np.float32)
    m = np.zeros((out_size, in_size), dtype=np.float32)
    m[np.arange(out_size), x0] += 1.0 - lam
    m[np.arange(out_size), x1] += lam
    return m


def _shifted_rows(a, d):
    """out[p] = a[p + d], zero rows where p + d is out of range (conv zero-padding)."""
    out = np.zeros_like(a)
    n = a.shape[0]
    if d == 0:
        out[...] = a
    elif d > 0:
        out[:n - d] = a[d:]
    else:
        out[-d:] = a[:n + d]
    return out


def _pick_tile(n, target):
    """Largest divisor of n that is a multiple of 128 and <= target; else n (full dim)."""
    for d in range(target, 127, -128):
        if n % d == 0:
            return d
    return n


# --------------------------------------------------------------------------------------
# Pallas kernel 1: fused  bilinear-upsample + zero-pad + conv3x3 + BN partial sums
# --------------------------------------------------------------------------------------

def _upsample_conv_kernel(x_ref, ah_ref, k_ref, y_ref, sum_ref, sq_ref):
    x = x_ref[0]                                        # (H, W*Cin)  bf16
    acc = jnp.zeros(y_ref.shape[1:], jnp.float32)       # (OH, tn)    f32 accumulator
    for ky in range(3):                                 # unrolled: 3 pairs of 2-D matmuls
        # big bf16 MXU contraction over K = W*Cin
        t = jnp.dot(x, k_ref[ky], preferred_element_type=jnp.float32)       # (H, tn)
        # small f32 vertical-interp / vertical-tap matmul
        acc += jnp.dot(ah_ref[ky], t, preferred_element_type=jnp.float32)   # (OH, tn)
    y_ref[0] = acc
    # per-batch / per-column-tile BatchNorm partial sums (reduced over output rows)
    sum_ref[0] = jnp.sum(acc, axis=0, keepdims=True)          # (1, tn)
    sq_ref[0] = jnp.sum(acc * acc, axis=0, keepdims=True)     # (1, tn)


def upsample_conv3x3_fused(x_flat, ah3, k3, *, col_tile=256):
    B, H, WC = x_flat.shape
    _, OH, _ = ah3.shape
    OWC = k3.shape[-1]
    tn = _pick_tile(OWC, col_tile)
    n_col = OWC // tn
    y, psum, psq = pl.pallas_call(
        _upsample_conv_kernel,
        out_shape=(jax.ShapeDtypeStruct((B, OH, OWC), jnp.float32),
                   jax.ShapeDtypeStruct((B, 1, OWC), jnp.float32),
                   jax.ShapeDtypeStruct((B, 1, OWC), jnp.float32)),
        grid=(n_col, B),          # batch innermost: the (large) K column block stays resident
        in_specs=[pl.BlockSpec((1, H, WC), lambda j, b: (b, 0, 0)),
                  pl.BlockSpec((3, OH, H), lambda j, b: (0, 0, 0)),
                  pl.BlockSpec((3, WC, tn), lambda j, b: (0, 0, j))],
        out_specs=[pl.BlockSpec((1, OH, tn), lambda j, b: (b, 0, j)),
                   pl.BlockSpec((1, 1, tn), lambda j, b: (b, 0, j)),
                   pl.BlockSpec((1, 1, tn), lambda j, b: (b, 0, j))],
        compiler_params=pltpu.CompilerParams(
            dimension_semantics=("parallel", "parallel")),
    )(x_flat, ah3, k3)
    return y, psum, psq


# --------------------------------------------------------------------------------------
# Pallas kernel 2: BN affine + ReLU, lane-dense (rows, Cout*OW) layout
# --------------------------------------------------------------------------------------

def _scale_bias_relu_kernel(x_ref, s_ref, b_ref, o_ref):
    o_ref[...] = jnp.maximum(x_ref[...] * s_ref[...] + b_ref[...], 0.0)


def scale_bias_relu(x, scale_row, bias_row, *, row_tile=256, col_tile=256):
    M, C = x.shape
    tn = _pick_tile(C, col_tile)
    if M <= row_tile:
        tm, Mp = M, M
    else:
        tm = (row_tile // 8) * 8
        Mp = pl.cdiv(M, tm) * tm
    xp = x if Mp == M else jnp.pad(x, ((0, Mp - M), (0, 0)))
    out = pl.pallas_call(
        _scale_bias_relu_kernel,
        out_shape=jax.ShapeDtypeStruct((Mp, C), jnp.float32),
        grid=(Mp // tm, C // tn),
        in_specs=[pl.BlockSpec((tm, tn), lambda i, j: (i, j)),
                  pl.BlockSpec((1, tn), lambda i, j: (0, j)),
                  pl.BlockSpec((1, tn), lambda i, j: (0, j))],
        out_specs=pl.BlockSpec((tm, tn), lambda i, j: (i, j)),
        compiler_params=pltpu.CompilerParams(
            dimension_semantics=("parallel", "parallel")),
    )(xp, scale_row, bias_row)
    return out[:M]


# --------------------------------------------------------------------------------------
# Parameters + forward pass (UpsampleBlock semantics)
# --------------------------------------------------------------------------------------

def init_params(key, in_channels, out_channels):
    w = jax.random.normal(key, (out_channels, in_channels, 3, 3),
                          jnp.float32) / np.sqrt(9.0 * in_channels)
    return {
        'conv_w': w,                                          # PyTorch OIHW, bias=False
        'bn_gamma': jnp.ones((out_channels,), jnp.float32),   # BatchNorm2d default init
        'bn_beta': jnp.zeros((out_channels,), jnp.float32),
    }


def upsample_block_forward(params, x_nchw, *, scale_factor=2, eps=1e-5):
    """relu(bn(conv3x3(bilinear_x2(x)))) -- UpsampleBlock.forward with train-mode BN stats."""
    B, Cin, H, W = x_nchw.shape
    Cout = params['conv_w'].shape[0]
    OH, OW = H * scale_factor, W * scale_factor
    WC, OWC = W * Cin, OW * Cout

    # ---- static constants: bilinear matrices and their conv-pad row shifts ------------
    ah = _bilinear_matrix(H, OH)
    aw = _bilinear_matrix(W, OW)
    ah3 = jnp.asarray(np.stack([_shifted_rows(ah, -1), ah, _shifted_rows(ah, 1)], 0))  # (3,OH,H)
    aw3 = np.stack([_shifted_rows(aw, -1), aw, _shifted_rows(aw, 1)], 0)               # (3,OW,W)

    # ---- weight folding: W-interp + 3 horizontal taps collapsed into K_ky --------------
    # lane layout of the folded output axis is (Cout, OW): lane index = o*OW + q
    wk = jnp.transpose(params['conv_w'], (2, 3, 1, 0))            # (ky, kx, Cin, Cout)
    k3 = jnp.einsum('yxco,xqw->ywcoq', wk, jnp.asarray(aw3))      # (3, W, Cin, Cout, OW)
    k3 = k3.reshape(3, WC, OWC)

    # ---- layout: NCHW -> NHWC -> (B, H, W*Cin); bf16 MXU inputs, f32 accumulation ------
    x_flat = jnp.transpose(x_nchw, (0, 2, 3, 1)).reshape(B, H, WC)
    x_bf = x_flat.astype(jnp.bfloat16)
    k_bf = k3.astype(jnp.bfloat16)

    # ---- fused kernel 1: upsample + pad + conv3x3 + BN partial sums --------------------
    y_flat, psum, psq = upsample_conv3x3_fused(x_bf, ah3, k_bf)

    # ---- tiny glue: finish train-mode BatchNorm statistics (2 * Cout scalars) ----------
    n = B * OH * OW
    s_tot = psum.sum(axis=(0, 1)).reshape(Cout, OW).sum(axis=1)
    sq_tot = psq.sum(axis=(0, 1)).reshape(Cout, OW).sum(axis=1)
    mean = s_tot / n
    var = jnp.maximum(sq_tot / n - mean * mean, 0.0)
    bn_scale = params['bn_gamma'] * jax.lax.rsqrt(var + eps)
    bn_bias = params['bn_beta'] - mean * bn_scale
    scale_row = jnp.repeat(bn_scale, OW)[None, :]                 # lane layout o*OW + q
    bias_row = jnp.repeat(bn_bias, OW)[None, :]

    # ---- kernel 2: BN affine + ReLU on the lane-dense flat layout ----------------------
    out_flat = scale_bias_relu(y_flat.reshape(B * OH, OWC), scale_row, bias_row)

    # ---- back to NCHW: swap (OH, Cout) keeping the minor dim (OW) intact (cheap) -------
    return out_flat.reshape(B, OH, Cout, OW).transpose(0, 2, 1, 3)


# --------------------------------------------------------------------------------------
# Plain-XLA reference of the same module (correctness guard only)
# --------------------------------------------------------------------------------------

def upsample_block_reference(params, x_nchw, *, scale_factor=2, eps=1e-5):
    B, Cin, H, W = x_nchw.shape
    OH, OW = H * scale_factor, W * scale_factor
    ah = jnp.asarray(_bilinear_matrix(H, OH))
    aw = jnp.asarray(_bilinear_matrix(W, OW))
    x = jnp.transpose(x_nchw, (0, 2, 3, 1))                       # NHWC
    u = jnp.einsum('ph,bhwc->bpwc', ah, x)
    u = jnp.einsum('qw,bpwc->bpqc', aw, u)                        # (B, OH, OW, Cin)
    w = jnp.transpose(params['conv_w'], (2, 3, 1, 0))             # HWIO
    y = jax.lax.conv_general_dilated(u, w, (1, 1), ((1, 1), (1, 1)),
                                     dimension_numbers=('NHWC', 'HWIO', 'NHWC'))
    mean = y.mean(axis=(0, 1, 2))
    var = ((y - mean) ** 2).mean(axis=(0, 1, 2))
    yn = (y - mean) * jax.lax.rsqrt(var + eps) * params['bn_gamma'] + params['bn_beta']
    return jnp.transpose(jnp.maximum(yn, 0.0), (0, 3, 1, 2))


# --------------------------------------------------------------------------------------
# Main
# --------------------------------------------------------------------------------------

if __name__ == "__main__":
    key = jax.random.PRNGKey(0)
    kp, kx = jax.random.split(key)

    B, Cin, Cout, H, W, scale = 2, 32, 16, 16, 16, 2
    params = init_params(kp, Cin, Cout)
    x = jax.random.normal(kx, (B, Cin, H, W), jnp.float32)

    fwd = jax.jit(functools.partial(upsample_block_forward, scale_factor=scale))
    out = fwd(params, x)
    jax.block_until_ready(out)

    assert out.shape == (B, Cout, H * scale, W * scale), out.shape
    assert bool(jnp.all(jnp.isfinite(out)))
    assert bool(jnp.all(out >= 0.0))

    # correctness guard vs plain-XLA reference (tolerance covers bf16 MXU inputs)
    ref = jax.jit(functools.partial(upsample_block_reference, scale_factor=scale))(params, x)
    err = float(jnp.max(jnp.abs(out - ref)))
    assert err < 5e-2, f"max |diff| vs reference = {err}"

    print("KERNEL_OK")
</pallas_src>

<mosaic_0001>
module attributes {stable_mosaic.version = 11 : i64} {
  func.func @_upsample_conv_kernel(%arg0: i32, %arg1: i32, %arg2: memref<1x16x512xbf16, #tpu.memory_space<vmem>>, %arg3: memref<3x32x16xf32, #tpu.memory_space<vmem>>, %arg4: memref<3x512x256xbf16, #tpu.memory_space<vmem>>, %arg5: memref<1x32x256xf32, #tpu.memory_space<vmem>>, %arg6: memref<1x1x256xf32, #tpu.memory_space<vmem>>, %arg7: memref<1x1x256xf32, #tpu.memory_space<vmem>>) attributes {dimension_semantics = [#tpu.dimension_semantics<parallel>, #tpu.dimension_semantics<parallel>], iteration_bounds = array<i64: 2, 2>, scalar_prefetch = 0 : i64, scratch_operands = 0 : i64, tpu.core_type = #tpu.core_type<tc>, window_params = [{transform_indices = @transform_0, window_bounds = array<i64: 1, 16, 512>}, {pipeline_mode = #tpu.pipeline_mode<synchronous>, transform_indices = @transform_1, window_bounds = array<i64: 3, 32, 16>}, {transform_indices = @transform_2, window_bounds = array<i64: 3, 512, 256>}, {transform_indices = @transform_3, window_bounds = array<i64: 1, 32, 256>}, {transform_indices = @transform_4, window_bounds = array<i64: 1, 1, 256>}, {transform_indices = @transform_5, window_bounds = array<i64: 1, 1, 256>}]} {
    %c0 = arith.constant 0 : index
    %c0_0 = arith.constant 0 : index
    %c0_1 = arith.constant 0 : index
    %0 = vector.load %arg2[%c0, %c0_0, %c0_1] : memref<1x16x512xbf16, #tpu.memory_space<vmem>>, vector<1x16x512xbf16>
    %1 = vector.shape_cast %0 : vector<1x16x512xbf16> to vector<16x512xbf16>
    %cst = arith.constant 0.000000e+00 : f32
    %2 = vector.broadcast %cst : f32 to vector<32x256xf32>
    %c0_2 = arith.constant 0 : index
    %c0_3 = arith.constant 0 : index
    %c0_4 = arith.constant 0 : index
    %3 = vector.load %arg4[%c0_2, %c0_3, %c0_4] : memref<3x512x256xbf16, #tpu.memory_space<vmem>>, vector<1x512x256xbf16>
    %4 = vector.shape_cast %3 : vector<1x512x256xbf16> to vector<512x256xbf16>
    %cst_5 = arith.constant dense<0.000000e+00> : vector<16x256xf32>
    %5 = tpu.matmul %1, %4, %cst_5 {dimension_numbers = #tpu.dot_dimension_numbers<[1], [0], [0], [1], [0, 0, 1, 1], [], []>} : vector<16x512xbf16>, vector<512x256xbf16>, vector<16x256xf32> -> vector<16x256xf32>
    %c0_6 = arith.constant 0 : index
    %c0_7 = arith.constant 0 : index
    %c0_8 = arith.constant 0 : index
    %6 = vector.load %arg3[%c0_6, %c0_7, %c0_8] : memref<3x32x16xf32, #tpu.memory_space<vmem>>, vector<1x32x16xf32>
    %7 = vector.shape_cast %6 : vector<1x32x16xf32> to vector<32x16xf32>
    %cst_9 = arith.constant dense<0.000000e+00> : vector<32x256xf32>
    %8 = tpu.matmul %7, %5, %cst_9 {dimension_numbers = #tpu.dot_dimension_numbers<[1], [0], [0], [1], [0, 0, 1, 1], [], []>} : vector<32x16xf32>, vector<16x256xf32>, vector<32x256xf32> -> vector<32x256xf32>
    %9 = arith.addf %2, %8 : vector<32x256xf32>
    %c1 = arith.constant 1 : index
    %c0_10 = arith.constant 0 : index
    %c0_11 = arith.constant 0 : index
    %10 = vector.load %arg4[%c1, %c0_10, %c0_11] : memref<3x512x256xbf16, #tpu.memory_space<vmem>>, vector<1x512x256xbf16>
    %11 = vector.shape_cast %10 : vector<1x512x256xbf16> to vector<512x256xbf16>
    %cst_12 = arith.constant dense<0.000000e+00> : vector<16x256xf32>
    %12 = tpu.matmul %1, %11, %cst_12 {dimension_numbers = #tpu.dot_dimension_numbers<[1], [0], [0], [1], [0, 0, 1, 1], [], []>} : vector<16x512xbf16>, vector<512x256xbf16>, vector<16x256xf32> -> vector<16x256xf32>
    %c1_13 = arith.constant 1 : index
    %c0_14 = arith.constant 0 : index
    %c0_15 = arith.constant 0 : index
    %13 = vector.load %arg3[%c1_13, %c0_14, %c0_15] : memref<3x32x16xf32, #tpu.memory_space<vmem>>, vector<1x32x16xf32>
    %14 = vector.shape_cast %13 : vector<1x32x16xf32> to vector<32x16xf32>
    %cst_16 = arith.constant dense<0.000000e+00> : vector<32x256xf32>
    %15 = tpu.matmul %14, %12, %cst_16 {dimension_numbers = #tpu.dot_dimension_numbers<[1], [0], [0], [1], [0, 0, 1, 1], [], []>} : vector<32x16xf32>, vector<16x256xf32>, vector<32x256xf32> -> vector<32x256xf32>
    %16 = arith.addf %9, %15 : vector<32x256xf32>
    %c2 = arith.constant 2 : index
    %c0_17 = arith.constant 0 : index
    %c0_18 = arith.constant 0 : index
    %17 = vector.load %arg4[%c2, %c0_17, %c0_18] : memref<3x512x256xbf16, #tpu.memory_space<vmem>>, vector<1x512x256xbf16>
    %18 = vector.shape_cast %17 : vector<1x512x256xbf16> to vector<512x256xbf16>
    %cst_19 = arith.constant dense<0.000000e+00> : vector<16x256xf32>
    %19 = tpu.matmul %1, %18, %cst_19 {dimension_numbers = #tpu.dot_dimension_numbers<[1], [0], [0], [1], [0, 0, 1, 1], [], []>} : vector<16x512xbf16>, vector<512x256xbf16>, vector<16x256xf32> -> vector<16x256xf32>
    %c2_20 = arith.constant 2 : index
    %c0_21 = arith.constant 0 : index
    %c0_22 = arith.constant 0 : index
    %20 = vector.load %arg3[%c2_20, %c0_21, %c0_22] : memref<3x32x16xf32, #tpu.memory_space<vmem>>, vector<1x32x16xf32>
    %21 = vector.shape_cast %20 : vector<1x32x16xf32> to vector<32x16xf32>
    %cst_23 = arith.constant dense<0.000000e+00> : vector<32x256xf32>
    %22 = tpu.matmul %21, %19, %cst_23 {dimension_numbers = #tpu.dot_dimension_numbers<[1], [0], [0], [1], [0, 0, 1, 1], [], []>} : vector<32x16xf32>, vector<16x256xf32>, vector<32x256xf32> -> vector<32x256xf32>
    %23 = arith.addf %16, %22 : vector<32x256xf32>
    %c0_24 = arith.constant 0 : index
    %c0_25 = arith.constant 0 : index
    %c0_26 = arith.constant 0 : index
    %24 = vector.load %arg5[%c0_24, %c0_25, %c0_26] : memref<1x32x256xf32, #tpu.memory_space<vmem>>, vector<1x32x256xf32>
    %25 = vector.shape_cast %24 : vector<1x32x256xf32> to vector<32x256xf32>
    %26 = vector.shape_cast %23 : vector<32x256xf32> to vector<1x32x256xf32>
    tpu.vector_store %arg5[%c0_24, %c0_25, %c0_26], %26 {strides = array<i32>} : memref<1x32x256xf32, #tpu.memory_space<vmem>>, vector<1x32x256xf32>,
    %cst_27 = arith.constant dense<0.000000e+00> : vector<256xf32>
    %27 = vector.multi_reduction <add>, %23, %cst_27 [0] : vector<32x256xf32> to vector<256xf32>
    %28 = vector.shape_cast %27 : vector<256xf32> to vector<1x256xf32>
    %c0_28 = arith.constant 0 : index
    %c0_29 = arith.constant 0 : index
    %c0_30 = arith.constant 0 : index
    %29 = vector.load %arg6[%c0_28, %c0_29, %c0_30] : memref<1x1x256xf32, #tpu.memory_space<vmem>>, vector<1x1x256xf32>
    %30 = vector.shape_cast %29 : vector<1x1x256xf32> to vector<1x256xf32>
    %31 = vector.shape_cast %28 : vector<1x256xf32> to vector<1x1x256xf32>
    tpu.vector_store %arg6[%c0_28, %c0_29, %c0_30], %31 {strides = array<i32>} : memref<1x1x256xf32, #tpu.memory_space<vmem>>, vector<1x1x256xf32>,
    %32 = arith.mulf %23, %23 : vector<32x256xf32>
    %cst_31 = arith.constant dense<0.000000e+00> : vector<256xf32>
    %33 = vector.multi_reduction <add>, %32, %cst_31 [0] : vector<32x256xf32> to vector<256xf32>
    %34 = vector.shape_cast %33 : vector<256xf32> to vector<1x256xf32>
    %c0_32 = arith.constant 0 : index
    %c0_33 = arith.constant 0 : index
    %c0_34 = arith.constant 0 : index
    %35 = vector.load %arg7[%c0_32, %c0_33, %c0_34] : memref<1x1x256xf32, #tpu.memory_space<vmem>>, vector<1x1x256xf32>
    %36 = vector.shape_cast %35 : vector<1x1x256xf32> to vector<1x256xf32>
    %37 = vector.shape_cast %34 : vector<1x256xf32> to vector<1x1x256xf32>
    tpu.vector_store %arg7[%c0_32, %c0_33, %c0_34], %37 {strides = array<i32>} : memref<1x1x256xf32, #tpu.memory_space<vmem>>, vector<1x1x256xf32>,
    return
  }
  func.func @transform_0(%arg0: i32, %arg1: i32) -> (i32, i32, i32) {
    %c0_i32 = arith.constant 0 : i32
    %c0_i32_0 = arith.constant 0 : i32
    %c0_i32_1 = arith.constant 0 : i32
    return %arg1, %c0_i32, %c0_i32_0 : i32, i32, i32
  }
  func.func @transform_1(%arg0: i32, %arg1: i32) -> (i32, i32, i32) {
    %c0_i32 = arith.constant 0 : i32
    %c0_i32_0 = arith.constant 0 : i32
    %c0_i32_1 = arith.constant 0 : i32
    %c0_i32_2 = arith.constant 0 : i32
    return %c0_i32, %c0_i32_0, %c0_i32_1 : i32, i32, i32
  }
  func.func @transform_2(%arg0: i32, %arg1: i32) -> (i32, i32, i32) {
    %c0_i32 = arith.constant 0 : i32
    %c0_i32_0 = arith.constant 0 : i32
    %c0_i32_1 = arith.constant 0 : i32
    return %c0_i32, %c0_i32_0, %arg0 : i32, i32, i32
  }
  func.func @transform_3(%arg0: i32, %arg1: i32) -> (i32, i32, i32) {
    %c0_i32 = arith.constant 0 : i32
    %c0_i32_0 = arith.constant 0 : i32
    return %arg1, %c0_i32, %arg0 : i32, i32, i32
  }
  func.func @transform_4(%arg0: i32, %arg1: i32) -> (i32, i32, i32) {
    %c0_i32 = arith.constant 0 : i32
    %c0_i32_0 = arith.constant 0 : i32
    return %arg1, %c0_i32, %arg0 : i32, i32, i32
  }
  func.func @transform_5(%arg0: i32, %arg1: i32) -> (i32, i32, i32) {
    %c0_i32 = arith.constant 0 : i32
    %c0_i32_0 = arith.constant 0 : i32
    return %arg1, %c0_i32, %arg0 : i32, i32, i32
  }
}

module attributes {stable_mosaic.version = 11 : i64} {
  func.func @_scale_bias_relu_kernel(%arg0: i32, %arg1: i32, %arg2: memref<64x256xf32, #tpu.memory_space<vmem>>, %arg3: memref<1x256xf32, #tpu.memory_space<vmem>>, %arg4: memref<1x256xf32, #tpu.memory_space<vmem>>, %arg5: memref<64x256xf32, #tpu.memory_space<vmem>>) attributes {dimension_semantics = [#tpu.dimension_semantics<parallel>, #tpu.dimension_semantics<parallel>], iteration_bounds = array<i64: 1, 2>, scalar_prefetch = 0 : i64, scratch_operands = 0 : i64, tpu.core_type = #tpu.core_type<tc>, window_params = [{transform_indices = @transform_0, window_bounds = array<i64: 64, 256>}, {transform_indices = @transform_1, window_bounds = array<i64: 1, 256>}, {transform_indices = @transform_2, window_bounds = array<i64: 1, 256>}, {transform_indices = @transform_3, window_bounds = array<i64: 64, 256>}]} {
    %c0 = arith.constant 0 : index
    %c0_0 = arith.constant 0 : index
    %0 = vector.load %arg2[%c0, %c0_0] : memref<64x256xf32, #tpu.memory_space<vmem>>, vector<64x256xf32>
    %c0_1 = arith.constant 0 : index
    %c0_2 = arith.constant 0 : index
    %1 = vector.load %arg3[%c0_1, %c0_2] : memref<1x256xf32, #tpu.memory_space<vmem>>, vector<1x256xf32>
    %2 = vector.broadcast %1 : vector<1x256xf32> to vector<64x256xf32>
    %3 = arith.mulf %0, %2 : vector<64x256xf32>
    %c0_3 = arith.constant 0 : index
    %c0_4 = arith.constant 0 : index
    %4 = vector.load %arg4[%c0_3, %c0_4] : memref<1x256xf32, #tpu.memory_space<vmem>>, vector<1x256xf32>
    %5 = vector.broadcast %4 : vector<1x256xf32> to vector<64x256xf32>
    %6 = arith.addf %3, %5 : vector<64x256xf32>
    %cst = arith.constant 0.000000e+00 : f32
    %7 = vector.broadcast %cst : f32 to vector<64x256xf32>
    %8 = arith.maximumf %6, %7 : vector<64x256xf32>
    %c0_5 = arith.constant 0 : index
    %c0_6 = arith.constant 0 : index
    %9 = vector.load %arg5[%c0_5, %c0_6] : memref<64x256xf32, #tpu.memory_space<vmem>>, vector<64x256xf32>
    tpu.vector_store %arg5[%c0_5, %c0_6], %8 {strides = array<i32>} : memref<64x256xf32, #tpu.memory_space<vmem>>, vector<64x256xf32>,
    return
  }
  func.func @transform_0(%arg0: i32, %arg1: i32) -> (i32, i32) {
    %c0_i32 = arith.constant 0 : i32
    return %arg0, %arg1 : i32, i32
  }
  func.func @transform_1(%arg0: i32, %arg1: i32) -> (i32, i32) {
    %c0_i32 = arith.constant 0 : i32
    %c0_i32_0 = arith.constant 0 : i32
    return %c0_i32, %arg1 : i32, i32
  }
  func.func @transform_2(%arg0: i32, %arg1: i32) -> (i32, i32) {
    %c0_i32 = arith.constant 0 : i32
    %c0_i32_0 = arith.constant 0 : i32
    return %c0_i32, %arg1 : i32, i32
  }
  func.func @transform_3(%arg0: i32, %arg1: i32) -> (i32, i32) {
    %c0_i32 = arith.constant 0 : i32
    return %arg0, %arg1 : i32, i32
  }
}

</mosaic_0001>

<llo_original>
// kernel: upsample_block_forward.2
$region0: #{upsample_block_forward.2}
  #allocation0 [shape = 'u32[]', space=smem, size = 0x4, offset = 0x4, fixed_abs, tag = 'smem constant byte address 0x4 - core index']
  #allocation1 [shape = 'u32[72,128]{1,0:T(1,128)}', space=vmem, size = 0x9000, scoped, tag = 'internal scratch']
  %s0 = inlined_call_operand.vmem [shape: bf16[2,16,512], index: 0, kind: input, shape index: {}]
  %s1 = inlined_call_operand.vmem [shape: f32[3,32,16], index: 1, kind: input, shape index: {}]
  %s2 = inlined_call_operand.vmem [shape: bf16[3,512,512], index: 2, kind: input, shape index: {}]
  %s3 = inlined_call_operand.vmem [shape: f32[2,32,512], index: 3, kind: output, shape index: {0}]
  %s4 = inlined_call_operand.vmem [shape: f32[2,1,512], index: 4, kind: output, shape index: {1}]
  %s5 = inlined_call_operand.vmem [shape: f32[2,1,512], index: 5, kind: output, shape index: {2}]
  %6 = xla_tuple %s3, %s4, %s5
  %s7 = sld [smem:[#allocation0]]
  $region118: #{upsample_block_forward.2} parent=0
    _
  %s9 = ssub.s32 1, %s7
  %s10 = scalar_select 0, %s9, %s7
  $region1: #{upsample_block_forward.2} parent=0
    #allocation2 [shape = 'u8[1572864]{0}', space=vmem, size = 0x180000, scoped, tag = 'input window, operand 2']
    #allocation3 [shape = 'u8[65536]{0}', space=vmem, size = 0x10000, scoped, tag = 'output window, operand 0']
    loop: start=0, step=1, limit=6
    $region2: #{upsample_block_forward.2} parent=1 // loop_pre_header
      _
    $region3: #{upsample_block_forward.2} parent=1 // loop_header
      %s12 = sphi 0, %s16
      %p13 = scmp.ge.s32.totalorder %s12, 6
      %s19 = sphi 0, %s31
      %s20 = sphi 0, %s27
      %s21 = sphi 0, %s19
      %s22 = sphi 0, %s20
      %s23 = sphi 0, %s21
      %s24 = sphi 0, %s22
      %s34 = sphi 0, %s36
      %s37 = sphi 0, %s34
      %s38 = sphi 0, %s37
      %s54 = sphi 0, %s38
      %s58 = sphi 0, %s58
      %s60 = sphi 0, %s58
      %s61 = sphi 0, %s60
      %s75 = sphi 0, %s61
      %s81 = sphi 0, %s83
      %s84 = sphi 0, %s81
      %s85 = sphi 0, %s84
      %s101 = sphi 0, %s85
      %s109 = sphi 0, %s111
      %s112 = sphi 0, %s109
      %s113 = sphi 0, %s112
      %s129 = sphi 0, %s113
      %s137 = sphi 0, %s139
      %s140 = sphi 0, %s137
      %s141 = sphi 0, %s140
      %s157 = sphi 0, %s141
      %s165 = sphi 0, %s167
      %s168 = sphi 0, %s165
      %s169 = sphi 0, %s168
      %s185 = sphi 0, %s169
    $region4: #{upsample_block_forward.2} parent=1 // loop_header_branch
      %15 = sbr.rel (%p13) target = $region8
    $region5: #{upsample_block_forward.2} parent=1 // loop_body
      %s17 = ssub.s32 %s12, 1
      %s18 = ssub.s32 %s12, 2
      %s25 = sadd.s32 1, %s20
      %p26 = scmp.ge.s32.totalorder %s25, 2
      %s27 = scalar_select %p26, 0, %s25
      %s28 = sadd.s32 1, %s19
      %s29 = scalar_select %p26, %s28, %s19
      %p30 = scmp.ge.s32.totalorder %s29, 2
      %s31 = scalar_select %p30, 0, %s29
      %s32 = ssub.s32 %s20, %s27
      %p33 = scmp.eq.s32.totalorder %s32, 0
      %s35 = sadd.s32 %s34, 1
      %s36 = scalar_select %p33, %s34, %s35
      %p39 = pneg %p33
      %p40 = scmp.eq.s32.totalorder %s12, 3
      %p41 = por %p39, %p40
      %p42 = scmp.ne.s32.totalorder %s34, %s37
      %p43 = scmp.eq.s32.totalorder %s12, 0
      %p44 = por %p42, %p43
      %p45 = scmp.ne.s32.totalorder %s34, %s37
      %p46 = scmp.eq.s32.totalorder %s17, 3
      %p47 = por %p45, %p46
      %p48 = scmp.ne.s32.totalorder %s37, %s38
      %p49 = scmp.eq.s32.totalorder %s17, 0
      %p50 = por %p48, %p49
      %p51 = scmp.ne.s32.totalorder %s37, %s38
      %p52 = scmp.eq.s32.totalorder %s18, 3
      %p53 = por %p51, %p52
      %p55 = scmp.ne.s32.totalorder %s38, %s54
      %p56 = scmp.eq.s32.totalorder %s18, 0
      %p57 = por %p55, %p56
      %s59 = sadd.s32 %s58, 1
      %p62 = scmp.eq.s32.totalorder %s12, 3
      %p63 = scmp.ne.s32.totalorder %s58, %s60
      %p64 = scmp.eq.s32.totalorder %s12, 0
      %p65 = por %p63, %p64
      %p66 = scmp.ne.s32.totalorder %s58, %s60
      %p67 = scmp.eq.s32.totalorder %s17, 3
      %p68 = por %p66, %p67
      %p69 = scmp.ne.s32.totalorder %s60, %s61
      %p70 = scmp.eq.s32.totalorder %s17, 0
      %p71 = por %p69, %p70
      %p72 = scmp.ne.s32.totalorder %s60, %s61
      %p73 = scmp.eq.s32.totalorder %s18, 3
      %p74 = por %p72, %p73
      %p76 = scmp.ne.s32.totalorder %s61, %s75
      %p77 = scmp.eq.s32.totalorder %s18, 0
      %p78 = por %p76, %p77
      %s79 = ssub.s32 %s19, %s31
      %p80 = scmp.eq.s32.totalorder %s79, 0
      %s82 = sadd.s32 %s81, 1
      %s83 = scalar_select %p80, %s81, %s82
      %p86 = pneg %p80
      %p87 = scmp.eq.s32.totalorder %s12, 3
      %p88 = por %p86, %p87
      %p89 = scmp.ne.s32.totalorder %s81, %s84
      %p90 = scmp.eq.s32.totalorder %s12, 0
      %p91 = por %p89, %p90
      %p92 = scmp.ne.s32.totalorder %s81, %s84
      %p93 = scmp.eq.s32.totalorder %s17, 3
      %p94 = por %p92, %p93
      %p95 = scmp.ne.s32.totalorder %s84, %s85
      %p96 = scmp.eq.s32.totalorder %s17, 0
      %p97 = por %p95, %p96
      %p98 = scmp.ne.s32.totalorder %s84, %s85
      %p99 = scmp.eq.s32.totalorder %s18, 3
      %p100 = por %p98, %p99
      %p102 = scmp.ne.s32.totalorder %s85, %s101
      %p103 = scmp.eq.s32.totalorder %s18, 0
      %p104 = por %p102, %p103
      %s105 = ssub.s32 %s20, %s27
      %s106 = ssub.s32 %s19, %s31
      %s107 = sor.u32 %s105, %s106
      %p108 = scmp.eq.s32.totalorder %s107, 0
      %s110 = sadd.s32 %s109, 1
      %s111 = scalar_select %p108, %s109, %s110
      %p114 = pneg %p108
      %p115 = scmp.eq.s32.totalorder %s12, 3
      %p116 = por %p114, %p115
      %p117 = scmp.ne.s32.totalorder %s109, %s112
      %p118 = scmp.eq.s32.totalorder %s12, 0
      %p119 = por %p117, %p118
      %p120 = scmp.ne.s32.totalorder %s109, %s112
      %p121 = scmp.eq.s32.totalorder %s17, 3
      %p122 = por %p120, %p121
      %p123 = scmp.ne.s32.totalorder %s112, %s113
      %p124 = scmp.eq.s32.totalorder %s17, 0
      %p125 = por %p123, %p124
      %p126 = scmp.ne.s32.totalorder %s112, %s113
      %p127 = scmp.eq.s32.totalorder %s18, 3
      %p128 = por %p126, %p127
      %p130 = scmp.ne.s32.totalorder %s113, %s129
      %p131 = scmp.eq.s32.totalorder %s18, 0
      %p132 = por %p130, %p131
      %s133 = ssub.s32 %s20, %s27
      %s134 = ssub.s32 %s19, %s31
      %s135 = sor.u32 %s133, %s134
      %p136 = scmp.eq.s32.totalorder %s135, 0
      %s138 = sadd.s32 %s137, 1
      %s139 = scalar_select %p136, %s137, %s138
      %p142 = pneg %p136
      %p143 = scmp.eq.s32.totalorder %s12, 3
      %p144 = por %p142, %p143
      %p145 = scmp.ne.s32.totalorder %s137, %s140
      %p146 = scmp.eq.s32.totalorder %s12, 0
      %p147 = por %p145, %p146
      %p148 = scmp.ne.s32.totalorder %s137, %s140
      %p149 = scmp.eq.s32.totalorder %s17, 3
      %p150 = por %p148, %p149
      %p151 = scmp.ne.s32.totalorder %s140, %s141
      %p152 = scmp.eq.s32.totalorder %s17, 0
      %p153 = por %p151, %p152
      %p154 = scmp.ne.s32.totalorder %s140, %s141
      %p155 = scmp.eq.s32.totalorder %s18, 3
      %p156 = por %p154, %p155
      %p158 = scmp.ne.s32.totalorder %s141, %s157
      %p159 = scmp.eq.s32.totalorder %s18, 0
      %p160 = por %p158, %p159
      %s161 = ssub.s32 %s20, %s27
      %s162 = ssub.s32 %s19, %s31
      %s163 = sor.u32 %s161, %s162
      %p164 = scmp.eq.s32.totalorder %s163, 0
      %s166 = sadd.s32 %s165, 1
      %s167 = scalar_select %p164, %s165, %s166
      %p170 = pneg %p164
      %p171 = scmp.eq.s32.totalorder %s12, 3
      %p172 = por %p170, %p171
      %p173 = scmp.ne.s32.totalorder %s165, %s168
      %p174 = scmp.eq.s32.totalorder %s12, 0
      %p175 = por %p173, %p174
      %p176 = scmp.ne.s32.totalorder %s165, %s168
      %p177 = scmp.eq.s32.totalorder %s17, 3
      %p178 = por %p176, %p177
      %p179 = scmp.ne.s32.totalorder %s168, %s169
      %p180 = scmp.eq.s32.totalorder %s17, 0
      %p181 = por %p179, %p180
      %p182 = scmp.ne.s32.totalorder %s168, %s169
      %p183 = scmp.eq.s32.totalorder %s18, 3
      %p184 = por %p182, %p183
      %p186 = scmp.ne.s32.totalorder %s169, %s185
      %p187 = scmp.eq.s32.totalorder %s18, 0
      %p188 = por %p186, %p187
      %p189 = scmp.le.s32.totalorder 1, %s12
      %p190 = scmp.lt.s32.totalorder %s12, 5
      %p191 = pnand %p189, %p190
      %p192 = pneg %p191
      // Predicated region
      $region9: #{upsample_block_forward.2} parent=5 // pred_check
        _
      $region10: #{upsample_block_forward.2} parent=5 // pred_check_branch
        %194 = sbr.rel (%p191) target = $region12
      $region11: #{upsample_block_forward.2} parent=5 // pred_region
        %s195 = ssub.s32 %s12, 1
        // Predicated region
        $region13: #{upsample_block_forward.2} parent=11 // pred_check
          %p196 = pneg %p71
        $region14: #{upsample_block_forward.2} parent=11 // pred_check_branch
          %198 = sbr.rel (%p196) target = $region16
        $region15: #{upsample_block_forward.2} parent=11 // pred_region
          _
        $region16: #{upsample_block_forward.2} parent=11 // pred_fallthru
          _
      $region12: #{upsample_block_forward.2} parent=5 // pred_fallthru
        _
      %p199 = scmp.lt.s32.totalorder %s12, 4
      // Predicated region
      $region17: #{upsample_block_forward.2} parent=5 // pred_check
        %p200 = pneg %p199
      $region18: #{upsample_block_forward.2} parent=5 // pred_check_branch
        %202 = sbr.rel (%p200) target = $region20
      $region19: #{upsample_block_forward.2} parent=5 // pred_region
        // Predicated region
        $region21: #{upsample_block_forward.2} parent=19 // pred_check
          %p203 = pneg %p44
        $region22: #{upsample_block_forward.2} parent=19 // pred_check_branch
          %205 = sbr.rel (%p203) target = $region24
        $region23: #{upsample_block_forward.2} parent=19 // pred_region
          %p206 = scmp.lt.s32.totalorder %s20, 1
          %s207 = scalar_select %p206, %s20, 1
          %s208 = smul.addr %s207, 8
          %s209 = smul.addr %s208, 4
          %s210 = scalar_lea.vmem %s0, %s209
        $region24: #{upsample_block_forward.2} parent=19 // pred_fallthru
          _
        // Predicated region
        $region25: #{upsample_block_forward.2} parent=19 // pred_check
          %p211 = pneg %p91
        $region26: #{upsample_block_forward.2} parent=19 // pred_check_branch
          %213 = sbr.rel (%p211) target = $region28
        $region27: #{upsample_block_forward.2} parent=19 // pred_region
          %s214 = sand.u32 %s81, 1
          %s215 = sand.u32 %s81, 1
          %s216 = smul.addr %s215, 1536
          %s217 = scalar_lea.vmem [#allocation2], %s216
          %s218 = smul.u32 2, %s19
          %s219 = smul.addr %s218, 4
          %s220 = scalar_lea.vmem %s2, %s219
          // Predicated region
          $region29: #{upsample_block_forward.2} parent=27 // pred_check
            _
          $region30: #{upsample_block_forward.2} parent=27 // pred_check_branch
            %222 = sbr.rel (0) target = $region32
          $region31: #{upsample_block_forward.2} parent=27 // pred_region
            // Predicated region
            $region33: #{upsample_block_forward.2} parent=31 // pred_check
              _
            $region34: #{upsample_block_forward.2} parent=31 // pred_check_branch
              %224 = sbr.rel (0) target = $region36
            $region35: #{upsample_block_forward.2} parent=31 // pred_region
              // Predicated region
              $region48: #{upsample_block_forward.2} parent=35 // pred_check
                _
              $region49: #{upsample_block_forward.2} parent=35 // pred_check_branch
                %622 = sbr.rel (0) target = $region51
              $region50: #{upsample_block_forward.2} parent=35 // pred_region
                loop: start=0, step=1, limit=1
                $region52: #{upsample_block_forward.2} parent=50 // loop_pre_header
                  _
                $region53: #{upsample_block_forward.2} parent=50 // loop_header
                  %s624 = sphi 0, %s628
                  %p625 = scmp.ge.s32.totalorder %s624, 1
                  %s629 = sphi %s220, %s220
                  %s630 = sphi %s217, %s217
                $region54: #{upsample_block_forward.2} parent=50 // loop_header_branch
                  %627 = sbr.rel (%p625) target = $region58
                $region55: #{upsample_block_forward.2} parent=50 // loop_body
                  %v631 = vld [vmem:[%s629] sm:$0xff]
                  %632 = vst [vmem:[%s630] sm:$0xff] %v631
                  %v633 = vld [vmem:[%s629 + $0x10] sm:$0xff]
                  %634 = vst [vmem:[%s630 + $0x8] sm:$0xff] %v633
                  %v635 = vld [vmem:[%s629 + $0x20] sm:$0xff]
                  %636 = vst [vmem:[%s630 + $0x10] sm:$0xff] %v635
                  %v637 = vld [vmem:[%s629 + $0x30] sm:$0xff]
                  %638 = vst [vmem:[%s630 + $0x18] sm:$0xff] %v637
                  %v639 = vld [vmem:[%s629 + $0x40] sm:$0xff]
                  %640 = vst [vmem:[%s630 + $0x20] sm:$0xff] %v639
                  %v641 = vld [vmem:[%s629 + $0x50] sm:$0xff]
                  %642 = vst [vmem:[%s630 + $0x28] sm:$0xff] %v641
                  %v643 = vld [vmem:[%s629 + $0x60] sm:$0xff]
                  %644 = vst [vmem:[%s630 + $0x30] sm:$0xff] %v643
                  %v645 = vld [vmem:[%s629 + $0x70] sm:$0xff]
                  %646 = vst [vmem:[%s630 + $0x38] sm:$0xff] %v645
                  %v647 = vld [vmem:[%s629 + $0x80] sm:$0xff]
                  %648 = vst [vmem:[%s630 + $0x40] sm:$0xff] %v647
                  %v649 = vld [vmem:[%s629 + $0x90] sm:$0xff]
                  %650 = vst [vmem:[%s630 + $0x48] sm:$0xff] %v649
                  %v651 = vld [vmem:[%s629 + $0xa0] sm:$0xff]
                  %652 = vst [vmem:[%s630 + $0x50] sm:$0xff] %v651
                  %v653 = vld [vmem:[%s629 + $0xb0] sm:$0xff]
                  %654 = vst [vmem:[%s630 + $0x58] sm:$0xff] %v653
                  %v655 = vld [vmem:[%s629 + $0xc0] sm:$0xff]
                  %656 = vst [vmem:[%s630 + $0x60] sm:$0xff] %v655
                  %v657 = vld [vmem:[%s629 + $0xd0] sm:$0xff]
                  %658 = vst [vmem:[%s630 + $0x68] sm:$0xff] %v657
                  %v659 = vld [vmem:[%s629 + $0xe0] sm:$0xff]
                  %660 = vst [vmem:[%s630 + $0x70] sm:$0xff] %v659
                  %v661 = vld [vmem:[%s629 + $0xf0] sm:$0xff]
                  %662 = vst [vmem:[%s630 + $0x78] sm:$0xff] %v661
                  %v663 = vld [vmem:[%s629 + $0x100] sm:$0xff]
                  %664 = vst [vmem:[%s630 + $0x80] sm:$0xff] %v663
                  %v665 = vld [vmem:[%s629 + $0x110] sm:$0xff]
                  %666 = vst [vmem:[%s630 + $0x88] sm:$0xff] %v665
                  %v667 = vld [vmem:[%s629 + $0x120] sm:$0xff]
                  %668 = vst [vmem:[%s630 + $0x90] sm:$0xff] %v667
                  %v669 = vld [vmem:[%s629 + $0x130] sm:$0xff]
                  %670 = vst [vmem:[%s630 + $0x98] sm:$0xff] %v669
                  %v671 = vld [vmem:[%s629 + $0x140] sm:$0xff]
                  %672 = vst [vmem:[%s630 + $0xa0] sm:$0xff] %v671
                  %v673 = vld [vmem:[%s629 + $0x150] sm:$0xff]
                  %674 = vst [vmem:[%s630 + $0xa8] sm:$0xff] %v673
                  %v675 = vld [vmem:[%s629 + $0x160] sm:$0xff]
                  %676 = vst [vmem:[%s630 + $0xb0] sm:$0xff] %v675
                  %v677 = vld [vmem:[%s629 + $0x170] sm:$0xff]
                  %678 = vst [vmem:[%s630 + $0xb8] sm:$0xff] %v677
                  %v679 = vld [vmem:[%s629 + $0x180] sm:$0xff]
                  %680 = vst [vmem:[%s630 + $0xc0] sm:$0xff] %v679
                  %v681 = vld [vmem:[%s629 + $0x190] sm:$0xff]
                  %682 = vst [vmem:[%s630 + $0xc8] sm:$0xff] %v681
                  %v683 = vld [vmem:[%s629 + $0x1a0] sm:$0xff]
                  %684 = vst [vmem:[%s630 + $0xd0] sm:$0xff] %v683
                  %v685 = vld [vmem:[%s629 + $0x1b0] sm:$0xff]
                  %686 = vst [vmem:[%s630 + $0xd8] sm:$0xff] %v685
                  %v687 = vld [vmem:[%s629 + $0x1c0] sm:$0xff]
                  %688 = vst [vmem:[%s630 + $0xe0] sm:$0xff] %v687
                  %v689 = vld [vmem:[%s629 + $0x1d0] sm:$0xff]
                  %690 = vst [vmem:[%s630 + $0xe8] sm:$0xff] %v689
                  %v691 = vld [vmem:[%s629 + $0x1e0] sm:$0xff]
                  %692 = vst [vmem:[%s630 + $0xf0] sm:$0xff] %v691
                  %v693 = vld [vmem:[%s629 + $0x1f0] sm:$0xff]
                  %694 = vst [vmem:[%s630 + $0xf8] sm:$0xff] %v693
                  %v695 = vld [vmem:[%s629 + $0x200] sm:$0xff]
                  %696 = vst [vmem:[%s630 + $0x100] sm:$0xff] %v695
                  %v697 = vld [vmem:[%s629 + $0x210] sm:$0xff]
                  %698 = vst [vmem:[%s630 + $0x108] sm:$0xff] %v697
                  %v699 = vld [vmem:[%s629 + $0x220] sm:$0xff]
                  %700 = vst [vmem:[%s630 + $0x110] sm:$0xff] %v699
                  %v701 = vld [vmem:[%s629 + $0x230] sm:$0xff]
                  %702 = vst [vmem:[%s630 + $0x118] sm:$0xff] %v701
                  %v703 = vld [vmem:[%s629 + $0x240] sm:$0xff]
                  %704 = vst [vmem:[%s630 + $0x120] sm:$0xff] %v703
                  %v705 = vld [vmem:[%s629 + $0x250] sm:$0xff]
                  %706 = vst [vmem:[%s630 + $0x128] sm:$0xff] %v705
                  %v707 = vld [vmem:[%s629 + $0x260] sm:$0xff]
                  %708 = vst [vmem:[%s630 + $0x130] sm:$0xff] %v707
                  %v709 = vld [vmem:[%s629 + $0x270] sm:$0xff]
                  %710 = vst [vmem:[%s630 + $0x138] sm:$0xff] %v709
                  %v711 = vld [vmem:[%s629 + $0x280] sm:$0xff]
                  %712 = vst [vmem:[%s630 + $0x140] sm:$0xff] %v711
                  %v713 = vld [vmem:[%s629 + $0x290] sm:$0xff]
                  %714 = vst [vmem:[%s630 + $0x148] sm:$0xff] %v713
                  %v715 = vld [vmem:[%s629 + $0x2a0] sm:$0xff]
                  %716 = vst [vmem:[%s630 + $0x150] sm:$0xff] %v715
                  %v717 = vld [vmem:[%s629 + $0x2b0] sm:$0xff]
                  %718 = vst [vmem:[%s630 + $0x158] sm:$0xff] %v717
                  %v719 = vld [vmem:[%s629 + $0x2c0] sm:$0xff]
                  %720 = vst [vmem:[%s630 + $0x160] sm:$0xff] %v719
                  %v721 = vld [vmem:[%s629 + $0x2d0] sm:$0xff]
                  %722 = vst [vmem:[%s630 + $0x168] sm:$0xff] %v721
                  %v723 = vld [vmem:[%s629 + $0x2e0] sm:$0xff]
                  %724 = vst [vmem:[%s630 + $0x170] sm:$0xff] %v723
                  %v725 = vld [vmem:[%s629 + $0x2f0] sm:$0xff]
                  %726 = vst [vmem:[%s630 + $0x178] sm:$0xff] %v725
                  %v727 = vld [vmem:[%s629 + $0x300] sm:$0xff]
                  %728 = vst [vmem:[%s630 + $0x180] sm:$0xff] %v727
                  %v729 = vld [vmem:[%s629 + $0x310] sm:$0xff]
                  %730 = vst [vmem:[%s630 + $0x188] sm:$0xff] %v729
                  %v731 = vld [vmem:[%s629 + $0x320] sm:$0xff]
                  %732 = vst [vmem:[%s630 + $0x190] sm:$0xff] %v731
                  %v733 = vld [vmem:[%s629 + $0x330] sm:$0xff]
                  %734 = vst [vmem:[%s630 + $0x198] sm:$0xff] %v733
                  %v735 = vld [vmem:[%s629 + $0x340] sm:$0xff]
                  %736 = vst [vmem:[%s630 + $0x1a0] sm:$0xff] %v735
                  %v737 = vld [vmem:[%s629 + $0x350] sm:$0xff]
                  %738 = vst [vmem:[%s630 + $0x1a8] sm:$0xff] %v737
                  %v739 = vld [vmem:[%s629 + $0x360] sm:$0xff]
                  %740 = vst [vmem:[%s630 + $0x1b0] sm:$0xff] %v739
                  %v741 = vld [vmem:[%s629 + $0x370] sm:$0xff]
                  %742 = vst [vmem:[%s630 + $0x1b8] sm:$0xff] %v741
                  %v743 = vld [vmem:[%s629 + $0x380] sm:$0xff]
                  %744 = vst [vmem:[%s630 + $0x1c0] sm:$0xff] %v743
                  %v745 = vld [vmem:[%s629 + $0x390] sm:$0xff]
                  %746 = vst [vmem:[%s630 + $0x1c8] sm:$0xff] %v745
                  %v747 = vld [vmem:[%s629 + $0x3a0] sm:$0xff]
                  %748 = vst [vmem:[%s630 + $0x1d0] sm:$0xff] %v747
                  %v749 = vld [vmem:[%s629 + $0x3b0] sm:$0xff]
                  %750 = vst [vmem:[%s630 + $0x1d8] sm:$0xff] %v749
                  %v751 = vld [vmem:[%s629 + $0x3c0] sm:$0xff]
                  %752 = vst [vmem:[%s630 + $0x1e0] sm:$0xff] %v751
                  %v753 = vld [vmem:[%s629 + $0x3d0] sm:$0xff]
                  %754 = vst [vmem:[%s630 + $0x1e8] sm:$0xff] %v753
                  %v755 = vld [vmem:[%s629 + $0x3e0] sm:$0xff]
                  %756 = vst [vmem:[%s630 + $0x1f0] sm:$0xff] %v755
                  %v757 = vld [vmem:[%s629 + $0x3f0] sm:$0xff]
                  %758 = vst [vmem:[%s630 + $0x1f8] sm:$0xff] %v757
                  %v759 = vld [vmem:[%s629 + $0x400] sm:$0xff]
                  %760 = vst [vmem:[%s630 + $0x200] sm:$0xff] %v759
                  %v761 = vld [vmem:[%s629 + $0x410] sm:$0xff]
                  %762 = vst [vmem:[%s630 + $0x208] sm:$0xff] %v761
                  %v763 = vld [vmem:[%s629 + $0x420] sm:$0xff]
                  %764 = vst [vmem:[%s630 + $0x210] sm:$0xff] %v763
                  %v765 = vld [vmem:[%s629 + $0x430] sm:$0xff]
                  %766 = vst [vmem:[%s630 + $0x218] sm:$0xff] %v765
                  %v767 = vld [vmem:[%s629 + $0x440] sm:$0xff]
                  %768 = vst [vmem:[%s630 + $0x220] sm:$0xff] %v767
                  %v769 = vld [vmem:[%s629 + $0x450] sm:$0xff]
                  %770 = vst [vmem:[%s630 + $0x228] sm:$0xff] %v769
                  %v771 = vld [vmem:[%s629 + $0x460] sm:$0xff]
                  %772 = vst [vmem:[%s630 + $0x230] sm:$0xff] %v771
                  %v773 = vld [vmem:[%s629 + $0x470] sm:$0xff]
                  %774 = vst [vmem:[%s630 + $0x238] sm:$0xff] %v773
                  %v775 = vld [vmem:[%s629 + $0x480] sm:$0xff]
                  %776 = vst [vmem:[%s630 + $0x240] sm:$0xff] %v775
                  %v777 = vld [vmem:[%s629 + $0x490] sm:$0xff]
                  %778 = vst [vmem:[%s630 + $0x248] sm:$0xff] %v777
                  %v779 = vld [vmem:[%s629 + $0x4a0] sm:$0xff]
                  %780 = vst [vmem:[%s630 + $0x250] sm:$0xff] %v779
                  %v781 = vld [vmem:[%s629 + $0x4b0] sm:$0xff]
                  %782 = vst [vmem:[%s630 + $0x258] sm:$0xff] %v781
                  %v783 = vld [vmem:[%s629 + $0x4c0] sm:$0xff]
                  %784 = vst [vmem:[%s630 + $0x260] sm:$0xff] %v783
                  %v785 = vld [vmem:[%s629 + $0x4d0] sm:$0xff]
                  %786 = vst [vmem:[%s630 + $0x268] sm:$0xff] %v785
                  %v787 = vld [vmem:[%s629 + $0x4e0] sm:$0xff]
                  %788 = vst [vmem:[%s630 + $0x270] sm:$0xff] %v787
                  %v789 = vld [vmem:[%s629 + $0x4f0] sm:$0xff]
                  %790 = vst [vmem:[%s630 + $0x278] sm:$0xff] %v789
                  %v791 = vld [vmem:[%s629 + $0x500] sm:$0xff]
                  %792 = vst [vmem:[%s630 + $0x280] sm:$0xff] %v791
                  %v793 = vld [vmem:[%s629 + $0x510] sm:$0xff]
                  %794 = vst [vmem:[%s630 + $0x288] sm:$0xff] %v793
                  %v795 = vld [vmem:[%s629 + $0x520] sm:$0xff]
                  %796 = vst [vmem:[%s630 + $0x290] sm:$0xff] %v795
                  %v797 = vld [vmem:[%s629 + $0x530] sm:$0xff]
                  %798 = vst [vmem:[%s630 + $0x298] sm:$0xff] %v797
                  %v799 = vld [vmem:[%s629 + $0x540] sm:$0xff]
                  %800 = vst [vmem:[%s630 + $0x2a0] sm:$0xff] %v799
                  %v801 = vld [vmem:[%s629 + $0x550] sm:$0xff]
                  %802 = vst [vmem:[%s630 + $0x2a8] sm:$0xff] %v801
                  %v803 = vld [vmem:[%s629 + $0x560] sm:$0xff]
                  %804 = vst [vmem:[%s630 + $0x2b0] sm:$0xff] %v803
                  %v805 = vld [vmem:[%s629 + $0x570] sm:$0xff]
                  %806 = vst [vmem:[%s630 + $0x2b8] sm:$0xff] %v805
                  %v807 = vld [vmem:[%s629 + $0x580] sm:$0xff]
                  %808 = vst [vmem:[%s630 + $0x2c0] sm:$0xff] %v807
                  %v809 = vld [vmem:[%s629 + $0x590] sm:$0xff]
                  %810 = vst [vmem:[%s630 + $0x2c8] sm:$0xff] %v809
                  %v811 = vld [vmem:[%s629 + $0x5a0] sm:$0xff]
                  %812 = vst [vmem:[%s630 + $0x2d0] sm:$0xff] %v811
                  %v813 = vld [vmem:[%s629 + $0x5b0] sm:$0xff]
                  %814 = vst [vmem:[%s630 + $0x2d8] sm:$0xff] %v813
                  %v815 = vld [vmem:[%s629 + $0x5c0] sm:$0xff]
                  %816 = vst [vmem:[%s630 + $0x2e0] sm:$0xff] %v815
                  %v817 = vld [vmem:[%s629 + $0x5d0] sm:$0xff]
                  %818 = vst [vmem:[%s630 + $0x2e8] sm:$0xff] %v817
                  %v819 = vld [vmem:[%s629 + $0x5e0] sm:$0xff]
                  %820 = vst [vmem:[%s630 + $0x2f0] sm:$0xff] %v819
                  %v821 = vld [vmem:[%s629 + $0x5f0] sm:$0xff]
                  %822 = vst [vmem:[%s630 + $0x2f8] sm:$0xff] %v821
                  %v823 = vld [vmem:[%s629 + $0x600] sm:$0xff]
                  %824 = vst [vmem:[%s630 + $0x300] sm:$0xff] %v823
                  %v825 = vld [vmem:[%s629 + $0x610] sm:$0xff]
                  %826 = vst [vmem:[%s630 + $0x308] sm:$0xff] %v825
                  %v827 = vld [vmem:[%s629 + $0x620] sm:$0xff]
                  %828 = vst [vmem:[%s630 + $0x310] sm:$0xff] %v827
                  %v829 = vld [vmem:[%s629 + $0x630] sm:$0xff]
                  %830 = vst [vmem:[%s630 + $0x318] sm:$0xff] %v829
                  %v831 = vld [vmem:[%s629 + $0x640] sm:$0xff]
                  %832 = vst [vmem:[%s630 + $0x320] sm:$0xff] %v831
                  %v833 = vld [vmem:[%s629 + $0x650] sm:$0xff]
                  %834 = vst [vmem:[%s630 + $0x328] sm:$0xff] %v833
                  %v835 = vld [vmem:[%s629 + $0x660] sm:$0xff]
                  %836 = vst [vmem:[%s630 + $0x330] sm:$0xff] %v835
                  %v837 = vld [vmem:[%s629 + $0x670] sm:$0xff]
                  %838 = vst [vmem:[%s630 + $0x338] sm:$0xff] %v837
                  %v839 = vld [vmem:[%s629 + $0x680] sm:$0xff]
                  %840 = vst [vmem:[%s630 + $0x340] sm:$0xff] %v839
                  %v841 = vld [vmem:[%s629 + $0x690] sm:$0xff]
                  %842 = vst [vmem:[%s630 + $0x348] sm:$0xff] %v841
                  %v843 = vld [vmem:[%s629 + $0x6a0] sm:$0xff]
                  %844 = vst [vmem:[%s630 + $0x350] sm:$0xff] %v843
                  %v845 = vld [vmem:[%s629 + $0x6b0] sm:$0xff]
                  %846 = vst [vmem:[%s630 + $0x358] sm:$0xff] %v845
                  %v847 = vld [vmem:[%s629 + $0x6c0] sm:$0xff]
                  %848 = vst [vmem:[%s630 + $0x360] sm:$0xff] %v847
                  %v849 = vld [vmem:[%s629 + $0x6d0] sm:$0xff]
                  %850 = vst [vmem:[%s630 + $0x368] sm:$0xff] %v849
                  %v851 = vld [vmem:[%s629 + $0x6e0] sm:$0xff]
                  %852 = vst [vmem:[%s630 + $0x370] sm:$0xff] %v851
                  %v853 = vld [vmem:[%s629 + $0x6f0] sm:$0xff]
                  %854 = vst [vmem:[%s630 + $0x378] sm:$0xff] %v853
                  %v855 = vld [vmem:[%s629 + $0x700] sm:$0xff]
                  %856 = vst [vmem:[%s630 + $0x380] sm:$0xff] %v855
                  %v857 = vld [vmem:[%s629 + $0x710] sm:$0xff]
                  %858 = vst [vmem:[%s630 + $0x388] sm:$0xff] %v857
                  %v859 = vld [vmem:[%s629 + $0x720] sm:$0xff]
                  %860 = vst [vmem:[%s630 + $0x390] sm:$0xff] %v859
                  %v861 = vld [vmem:[%s629 + $0x730] sm:$0xff]
                  %862 = vst [vmem:[%s630 + $0x398] sm:$0xff] %v861
                  %v863 = vld [vmem:[%s629 + $0x740] sm:$0xff]
                  %864 = vst [vmem:[%s630 + $0x3a0] sm:$0xff] %v863
                  %v865 = vld [vmem:[%s629 + $0x750] sm:$0xff]
                  %866 = vst [vmem:[%s630 + $0x3a8] sm:$0xff] %v865
                  %v867 = vld [vmem:[%s629 + $0x760] sm:$0xff]
                  %868 = vst [vmem:[%s630 + $0x3b0] sm:$0xff] %v867
                  %v869 = vld [vmem:[%s629 + $0x770] sm:$0xff]
                  %870 = vst [vmem:[%s630 + $0x3b8] sm:$0xff] %v869
                  %v871 = vld [vmem:[%s629 + $0x780] sm:$0xff]
                  %872 = vst [vmem:[%s630 + $0x3c0] sm:$0xff] %v871
                  %v873 = vld [vmem:[%s629 + $0x790] sm:$0xff]
                  %874 = vst [vmem:[%s630 + $0x3c8] sm:$0xff] %v873
                  %v875 = vld [vmem:[%s629 + $0x7a0] sm:$0xff]
                  %876 = vst [vmem:[%s630 + $0x3d0] sm:$0xff] %v875
                  %v877 = vld [vmem:[%s629 + $0x7b0] sm:$0xff]
                  %878 = vst [vmem:[%s630 + $0x3d8] sm:$0xff] %v877
                  %v879 = vld [vmem:[%s629 + $0x7c0] sm:$0xff]
                  %880 = vst [vmem:[%s630 + $0x3e0] sm:$0xff] %v879
                  %v881 = vld [vmem:[%s629 + $0x7d0] sm:$0xff]
                  %882 = vst [vmem:[%s630 + $0x3e8] sm:$0xff] %v881
                  %v883 = vld [vmem:[%s629 + $0x7e0] sm:$0xff]
                  %884 = vst [vmem:[%s630 + $0x3f0] sm:$0xff] %v883
                  %v885 = vld [vmem:[%s629 + $0x7f0] sm:$0xff]
                  %886 = vst [vmem:[%s630 + $0x3f8] sm:$0xff] %v885
                  %v887 = vld [vmem:[%s629 + $0x800] sm:$0xff]
                  %888 = vst [vmem:[%s630 + $0x400] sm:$0xff] %v887
                  %v889 = vld [vmem:[%s629 + $0x810] sm:$0xff]
                  %890 = vst [vmem:[%s630 + $0x408] sm:$0xff] %v889
                  %v891 = vld [vmem:[%s629 + $0x820] sm:$0xff]
                  %892 = vst [vmem:[%s630 + $0x410] sm:$0xff] %v891
                  %v893 = vld [vmem:[%s629 + $0x830] sm:$0xff]
                  %894 = vst [vmem:[%s630 + $0x418] sm:$0xff] %v893
                  %v895 = vld [vmem:[%s629 + $0x840] sm:$0xff]
                  %896 = vst [vmem:[%s630 + $0x420] sm:$0xff] %v895
                  %v897 = vld [vmem:[%s629 + $0x850] sm:$0xff]
                  %898 = vst [vmem:[%s630 + $0x428] sm:$0xff] %v897
                  %v899 = vld [vmem:[%s629 + $0x860] sm:$0xff]
                  %900 = vst [vmem:[%s630 + $0x430] sm:$0xff] %v899
                  %v901 = vld [vmem:[%s629 + $0x870] sm:$0xff]
                  %902 = vst [vmem:[%s630 + $0x438] sm:$0xff] %v901
                  %v903 = vld [vmem:[%s629 + $0x880] sm:$0xff]
                  %904 = vst [vmem:[%s630 + $0x440] sm:$0xff] %v903
                  %v905 = vld [vmem:[%s629 + $0x890] sm:$0xff]
                  %906 = vst [vmem:[%s630 + $0x448] sm:$0xff] %v905
                  %v907 = vld [vmem:[%s629 + $0x8a0] sm:$0xff]
                  %908 = vst [vmem:[%s630 + $0x450] sm:$0xff] %v907
                  %v909 = vld [vmem:[%s629 + $0x8b0] sm:$0xff]
                  %910 = vst [vmem:[%s630 + $0x458] sm:$0xff] %v909
                  %v911 = vld [vmem:[%s629 + $0x8c0] sm:$0xff]
                  %912 = vst [vmem:[%s630 + $0x460] sm:$0xff] %v911
                  %v913 = vld [vmem:[%s629 + $0x8d0] sm:$0xff]
                  %914 = vst [vmem:[%s630 + $0x468] sm:$0xff] %v913
                  %v915 = vld [vmem:[%s629 + $0x8e0] sm:$0xff]
                  %916 = vst [vmem:[%s630 + $0x470] sm:$0xff] %v915
                  %v917 = vld [vmem:[%s629 + $0x8f0] sm:$0xff]
                  %918 = vst [vmem:[%s630 + $0x478] sm:$0xff] %v917
                  %v919 = vld [vmem:[%s629 + $0x900] sm:$0xff]
                  %920 = vst [vmem:[%s630 + $0x480] sm:$0xff] %v919
                  %v921 = vld [vmem:[%s629 + $0x910] sm:$0xff]
                  %922 = vst [vmem:[%s630 + $0x488] sm:$0xff] %v921
                  %v923 = vld [vmem:[%s629 + $0x920] sm:$0xff]
                  %924 = vst [vmem:[%s630 + $0x490] sm:$0xff] %v923
                  %v925 = vld [vmem:[%s629 + $0x930] sm:$0xff]
                  %926 = vst [vmem:[%s630 + $0x498] sm:$0xff] %v925
                  %v927 = vld [vmem:[%s629 + $0x940] sm:$0xff]
                  %928 = vst [vmem:[%s630 + $0x4a0] sm:$0xff] %v927
                  %v929 = vld [vmem:[%s629 + $0x950] sm:$0xff]
                  %930 = vst [vmem:[%s630 + $0x4a8] sm:$0xff] %v929
                  %v931 = vld [vmem:[%s629 + $0x960] sm:$0xff]
                  %932 = vst [vmem:[%s630 + $0x4b0] sm:$0xff] %v931
                  %v933 = vld [vmem:[%s629 + $0x970] sm:$0xff]
                  %934 = vst [vmem:[%s630 + $0x4b8] sm:$0xff] %v933
                  %v935 = vld [vmem:[%s629 + $0x980] sm:$0xff]
                  %936 = vst [vmem:[%s630 + $0x4c0] sm:$0xff] %v935
                  %v937 = vld [vmem:[%s629 + $0x990] sm:$0xff]
                  %938 = vst [vmem:[%s630 + $0x4c8] sm:$0xff] %v937
                  %v939 = vld [vmem:[%s629 + $0x9a0] sm:$0xff]
                  %940 = vst [vmem:[%s630 + $0x4d0] sm:$0xff] %v939
                  %v941 = vld [vmem:[%s629 + $0x9b0] sm:$0xff]
                  %942 = vst [vmem:[%s630 + $0x4d8] sm:$0xff] %v941
                  %v943 = vld [vmem:[%s629 + $0x9c0] sm:$0xff]
                  %944 = vst [vmem:[%s630 + $0x4e0] sm:$0xff] %v943
                  %v945 = vld [vmem:[%s629 + $0x9d0] sm:$0xff]
                  %946 = vst [vmem:[%s630 + $0x4e8] sm:$0xff] %v945
                  %v947 = vld [vmem:[%s629 + $0x9e0] sm:$0xff]
                  %948 = vst [vmem:[%s630 + $0x4f0] sm:$0xff] %v947
                  %v949 = vld [vmem:[%s629 + $0x9f0] sm:$0xff]
                  %950 = vst [vmem:[%s630 + $0x4f8] sm:$0xff] %v949
                  %v951 = vld [vmem:[%s629 + $0xa00] sm:$0xff]
                  %952 = vst [vmem:[%s630 + $0x500] sm:$0xff] %v951
                  %v953 = vld [vmem:[%s629 + $0xa10] sm:$0xff]
                  %954 = vst [vmem:[%s630 + $0x508] sm:$0xff] %v953
                  %v955 = vld [vmem:[%s629 + $0xa20] sm:$0xff]
                  %956 = vst [vmem:[%s630 + $0x510] sm:$0xff] %v955
                  %v957 = vld [vmem:[%s629 + $0xa30] sm:$0xff]
                  %958 = vst [vmem:[%s630 + $0x518] sm:$0xff] %v957
                  %v959 = vld [vmem:[%s629 + $0xa40] sm:$0xff]
                  %960 = vst [vmem:[%s630 + $0x520] sm:$0xff] %v959
                  %v961 = vld [vmem:[%s629 + $0xa50] sm:$0xff]
                  %962 = vst [vmem:[%s630 + $0x528] sm:$0xff] %v961
                  %v963 = vld [vmem:[%s629 + $0xa60] sm:$0xff]
                  %964 = vst [vmem:[%s630 + $0x530] sm:$0xff] %v963
                  %v965 = vld [vmem:[%s629 + $0xa70] sm:$0xff]
                  %966 = vst [vmem:[%s630 + $0x538] sm:$0xff] %v965
                  %v967 = vld [vmem:[%s629 + $0xa80] sm:$0xff]
                  %968 = vst [vmem:[%s630 + $0x540] sm:$0xff] %v967
                  %v969 = vld [vmem:[%s629 + $0xa90] sm:$0xff]
                  %970 = vst [vmem:[%s630 + $0x548] sm:$0xff] %v969
                  %v971 = vld [vmem:[%s629 + $0xaa0] sm:$0xff]
                  %972 = vst [vmem:[%s630 + $0x550] sm:$0xff] %v971
                  %v973 = vld [vmem:[%s629 + $0xab0] sm:$0xff]
                  %974 = vst [vmem:[%s630 + $0x558] sm:$0xff] %v973
                  %v975 = vld [vmem:[%s629 + $0xac0] sm:$0xff]
                  %976 = vst [vmem:[%s630 + $0x560] sm:$0xff] %v975
                  %v977 = vld [vmem:[%s629 + $0xad0] sm:$0xff]
                  %978 = vst [vmem:[%s630 + $0x568] sm:$0xff] %v977
                  %v979 = vld [vmem:[%s629 + $0xae0] sm:$0xff]
                  %980 = vst [vmem:[%s630 + $0x570] sm:$0xff] %v979
                  %v981 = vld [vmem:[%s629 + $0xaf0] sm:$0xff]
                  %982 = vst [vmem:[%s630 + $0x578] sm:$0xff] %v981
                  %v983 = vld [vmem:[%s629 + $0xb00] sm:$0xff]
                  %984 = vst [vmem:[%s630 + $0x580] sm:$0xff] %v983
                  %v985 = vld [vmem:[%s629 + $0xb10] sm:$0xff]
                  %986 = vst [vmem:[%s630 + $0x588] sm:$0xff] %v985
                  %v987 = vld [vmem:[%s629 + $0xb20] sm:$0xff]
                  %988 = vst [vmem:[%s630 + $0x590] sm:$0xff] %v987
                  %v989 = vld [vmem:[%s629 + $0xb30] sm:$0xff]
                  %990 = vst [vmem:[%s630 + $0x598] sm:$0xff] %v989
                  %v991 = vld [vmem:[%s629 + $0xb40] sm:$0xff]
                  %992 = vst [vmem:[%s630 + $0x5a0] sm:$0xff] %v991
                  %v993 = vld [vmem:[%s629 + $0xb50] sm:$0xff]
                  %994 = vst [vmem:[%s630 + $0x5a8] sm:$0xff] %v993
                  %v995 = vld [vmem:[%s629 + $0xb60] sm:$0xff]
                  %996 = vst [vmem:[%s630 + $0x5b0] sm:$0xff] %v995
                  %v997 = vld [vmem:[%s629 + $0xb70] sm:$0xff]
                  %998 = vst [vmem:[%s630 + $0x5b8] sm:$0xff] %v997
                  %v999 = vld [vmem:[%s629 + $0xb80] sm:$0xff]
                  %1000 = vst [vmem:[%s630 + $0x5c0] sm:$0xff] %v999
                  %v1001 = vld [vmem:[%s629 + $0xb90] sm:$0xff]
                  %1002 = vst [vmem:[%s630 + $0x5c8] sm:$0xff] %v1001
                  %v1003 = vld [vmem:[%s629 + $0xba0] sm:$0xff]
                  %1004 = vst [vmem:[%s630 + $0x5d0] sm:$0xff] %v1003
                  %v1005 = vld [vmem:[%s629 + $0xbb0] sm:$0xff]
                  %1006 = vst [vmem:[%s630 + $0x5d8] sm:$0xff] %v1005
                  %v1007 = vld [vmem:[%s629 + $0xbc0] sm:$0xff]
                  %1008 = vst [vmem:[%s630 + $0x5e0] sm:$0xff] %v1007
                  %v1009 = vld [vmem:[%s629 + $0xbd0] sm:$0xff]
                  %1010 = vst [vmem:[%s630 + $0x5e8] sm:$0xff] %v1009
                  %v1011 = vld [vmem:[%s629 + $0xbe0] sm:$0xff]
                  %1012 = vst [vmem:[%s630 + $0x5f0] sm:$0xff] %v1011
                  %v1013 = vld [vmem:[%s629 + $0xbf0] sm:$0xff]
                  %1014 = vst [vmem:[%s630 + $0x5f8] sm:$0xff] %v1013
                $region56: #{upsample_block_forward.2} parent=50 // loop_footer
                  %s628 = sadd.s32 1, %s624
                $region57: #{upsample_block_forward.2} parent=50 // loop_footer_branch
                  %623 = sbr.rel target = $region53
                $region58: #{upsample_block_forward.2} parent=50 // loop_exit
                  _
              $region51: #{upsample_block_forward.2} parent=35 // pred_fallthru
                _
              // Predicated region
              $region59: #{upsample_block_forward.2} parent=35 // pred_check
                _
              $region60: #{upsample_block_forward.2} parent=35 // pred_check_branch
                %1016 = sbr.rel target = $region62
              $region61: #{upsample_block_forward.2} parent=35 // pred_region
                _
              $region62: #{upsample_block_forward.2} parent=35 // pred_fallthru
                _
            $region36: #{upsample_block_forward.2} parent=31 // pred_fallthru
              _
            // Predicated region
            $region37: #{upsample_block_forward.2} parent=31 // pred_check
              _
            $region38: #{upsample_block_forward.2} parent=31 // pred_check_branch
              %226 = sbr.rel target = $region40
            $region39: #{upsample_block_forward.2} parent=31 // pred_region
              %s228 = ssub.s32 256, 1
              loop: start=0, step=1, limit=1
              $region41: #{upsample_block_forward.2} parent=39 // loop_pre_header
                _
              $region42: #{upsample_block_forward.2} parent=39 // loop_header
                %s230 = sphi 0, %s234
                %p231 = scmp.ge.s32.totalorder %s230, 1
                %s235 = sphi %s220, %s220
                %s236 = sphi %s217, %s217
              $region43: #{upsample_block_forward.2} parent=39 // loop_header_branch
                %233 = sbr.rel (%p231) target = $region47
              $region44: #{upsample_block_forward.2} parent=39 // loop_body
                %v237 = vld [vmem:[%s235] sm:%s228]
                %238 = vst [vmem:[%s236] sm:%s228] %v237
                %v239 = vld [vmem:[%s235 + $0x10] sm:%s228]
                %240 = vst [vmem:[%s236 + $0x8] sm:%s228] %v239
                %v241 = vld [vmem:[%s235 + $0x20] sm:%s228]
                %242 = vst [vmem:[%s236 + $0x10] sm:%s228] %v241
                %v243 = vld [vmem:[%s235 + $0x30] sm:%s228]
                %244 = vst [vmem:[%s236 + $0x18] sm:%s228] %v243
                %v245 = vld [vmem:[%s235 + $0x40] sm:%s228]
                %246 = vst [vmem:[%s236 + $0x20] sm:%s228] %v245
                %v247 = vld [vmem:[%s235 + $0x50] sm:%s228]
                %248 = vst [vmem:[%s236 + $0x28] sm:%s228] %v247
                %v249 = vld [vmem:[%s235 + $0x60] sm:%s228]
                %250 = vst [vmem:[%s236 + $0x30] sm:%s228] %v249
                %v251 = vld [vmem:[%s235 + $0x70] sm:%s228]
                %252 = vst [vmem:[%s236 + $0x38] sm:%s228] %v251
                %v253 = vld [vmem:[%s235 + $0x80] sm:%s228]
                %254 = vst [vmem:[%s236 + $0x40] sm:%s228] %v253
                %v255 = vld [vmem:[%s235 + $0x90] sm:%s228]
                %256 = vst [vmem:[%s236 + $0x48] sm:%s228] %v255
                %v257 = vld [vmem:[%s235 + $0xa0] sm:%s228]
                %258 = vst [vmem:[%s236 + $0x50] sm:%s228] %v257
                %v259 = vld [vmem:[%s235 + $0xb0] sm:%s228]
                %260 = vst [vmem:[%s236 + $0x58] sm:%s228] %v259
                %v261 = vld [vmem:[%s235 + $0xc0] sm:%s228]
                %262 = vst [vmem:[%s236 + $0x60] sm:%s228] %v261
                %v263 = vld [vmem:[%s235 + $0xd0] sm:%s228]
                %264 = vst [vmem:[%s236 + $0x68] sm:%s228] %v263
                %v265 = vld [vmem:[%s235 + $0xe0] sm:%s228]
                %266 = vst [vmem:[%s236 + $0x70] sm:%s228] %v265
                %v267 = vld [vmem:[%s235 + $0xf0] sm:%s228]
                %268 = vst [vmem:[%s236 + $0x78] sm:%s228] %v267
                %v269 = vld [vmem:[%s235 + $0x100] sm:%s228]
                %270 = vst [vmem:[%s236 + $0x80] sm:%s228] %v269
                %v271 = vld [vmem:[%s235 + $0x110] sm:%s228]
                %272 = vst [vmem:[%s236 + $0x88] sm:%s228] %v271
                %v273 = vld [vmem:[%s235 + $0x120] sm:%s228]
                %274 = vst [vmem:[%s236 + $0x90] sm:%s228] %v273
                %v275 = vld [vmem:[%s235 + $0x130] sm:%s228]
                %276 = vst [vmem:[%s236 + $0x98] sm:%s228] %v275
                %v277 = vld [vmem:[%s235 + $0x140] sm:%s228]
                %278 = vst [vmem:[%s236 + $0xa0] sm:%s228] %v277
                %v279 = vld [vmem:[%s235 + $0x150] sm:%s228]
                %280 = vst [vmem:[%s236 + $0xa8] sm:%s228] %v279
                %v281 = vld [vmem:[%s235 + $0x160] sm:%s228]
                %282 = vst [vmem:[%s236 + $0xb0] sm:%s228] %v281
                %v283 = vld [vmem:[%s235 + $0x170] sm:%s228]
                %284 = vst [vmem:[%s236 + $0xb8] sm:%s228] %v283
                %v285 = vld [vmem:[%s235 + $0x180] sm:%s228]
                %286 = vst [vmem:[%s236 + $0xc0] sm:%s228] %v285
                %v287 = vld [vmem:[%s235 + $0x190] sm:%s228]
                %288 = vst [vmem:[%s236 + $0xc8] sm:%s228] %v287
                %v289 = vld [vmem:[%s235 + $0x1a0] sm:%s228]
                %290 = vst [vmem:[%s236 + $0xd0] sm:%s228] %v289
                %v291 = vld [vmem:[%s235 + $0x1b0] sm:%s228]
                %292 = vst [vmem:[%s236 + $0xd8] sm:%s228] %v291
                %v293 = vld [vmem:[%s235 + $0x1c0] sm:%s228]
                %294 = vst [vmem:[%s236 + $0xe0] sm:%s228] %v293
                %v295 = vld [vmem:[%s235 + $0x1d0] sm:%s228]
                %296 = vst [vmem:[%s236 + $0xe8] sm:%s228] %v295
                %v297 = vld [vmem:[%s235 + $0x1e0] sm:%s228]
                %298 = vst [vmem:[%s236 + $0xf0] sm:%s228] %v297
                %v299 = vld [vmem:[%s235 + $0x1f0] sm:%s228]
                %300 = vst [vmem:[%s236 + $0xf8] sm:%s228] %v299
                %v301 = vld [vmem:[%s235 + $0x200] sm:%s228]
                %302 = vst [vmem:[%s236 + $0x100] sm:%s228] %v301
                %v303 = vld [vmem:[%s235 + $0x210] sm:%s228]
                %304 = vst [vmem:[%s236 + $0x108] sm:%s228] %v303
                %v305 = vld [vmem:[%s235 + $0x220] sm:%s228]
                %306 = vst [vmem:[%s236 + $0x110] sm:%s228] %v305
                %v307 = vld [vmem:[%s235 + $0x230] sm:%s228]
                %308 = vst [vmem:[%s236 + $0x118] sm:%s228] %v307
                %v309 = vld [vmem:[%s235 + $0x240] sm:%s228]
                %310 = vst [vmem:[%s236 + $0x120] sm:%s228] %v309
                %v311 = vld [vmem:[%s235 + $0x250] sm:%s228]
                %312 = vst [vmem:[%s236 + $0x128] sm:%s228] %v311
                %v313 = vld [vmem:[%s235 + $0x260] sm:%s228]
                %314 = vst [vmem:[%s236 + $0x130] sm:%s228] %v313
                %v315 = vld [vmem:[%s235 + $0x270] sm:%s228]
                %316 = vst [vmem:[%s236 + $0x138] sm:%s228] %v315
                %v317 = vld [vmem:[%s235 + $0x280] sm:%s228]
                %318 = vst [vmem:[%s236 + $0x140] sm:%s228] %v317
                %v319 = vld [vmem:[%s235 + $0x290] sm:%s228]
                %320 = vst [vmem:[%s236 + $0x148] sm:%s228] %v319
                %v321 = vld [vmem:[%s235 + $0x2a0] sm:%s228]
                %322 = vst [vmem:[%s236 + $0x150] sm:%s228] %v321
                %v323 = vld [vmem:[%s235 + $0x2b0] sm:%s228]
                %324 = vst [vmem:[%s236 + $0x158] sm:%s228] %v323
                %v325 = vld [vmem:[%s235 + $0x2c0] sm:%s228]
                %326 = vst [vmem:[%s236 + $0x160] sm:%s228] %v325
                %v327 = vld [vmem:[%s235 + $0x2d0] sm:%s228]
                %328 = vst [vmem:[%s236 + $0x168] sm:%s228] %v327
                %v329 = vld [vmem:[%s235 + $0x2e0] sm:%s228]
                %330 = vst [vmem:[%s236 + $0x170] sm:%s228] %v329
                %v331 = vld [vmem:[%s235 + $0x2f0] sm:%s228]
                %332 = vst [vmem:[%s236 + $0x178] sm:%s228] %v331
                %v333 = vld [vmem:[%s235 + $0x300] sm:%s228]
                %334 = vst [vmem:[%s236 + $0x180] sm:%s228] %v333
                %v335 = vld [vmem:[%s235 + $0x310] sm:%s228]
                %336 = vst [vmem:[%s236 + $0x188] sm:%s228] %v335
                %v337 = vld [vmem:[%s235 + $0x320] sm:%s228]
                %338 = vst [vmem:[%s236 + $0x190] sm:%s228] %v337
                %v339 = vld [vmem:[%s235 + $0x330] sm:%s228]
                %340 = vst [vmem:[%s236 + $0x198] sm:%s228] %v339
                %v341 = vld [vmem:[%s235 + $0x340] sm:%s228]
                %342 = vst [vmem:[%s236 + $0x1a0] sm:%s228] %v341
                %v343 = vld [vmem:[%s235 + $0x350] sm:%s228]
                %344 = vst [vmem:[%s236 + $0x1a8] sm:%s228] %v343
                %v345 = vld [vmem:[%s235 + $0x360] sm:%s228]
                %346 = vst [vmem:[%s236 + $0x1b0] sm:%s228] %v345
                %v347 = vld [vmem:[%s235 + $0x370] sm:%s228]
                %348 = vst [vmem:[%s236 + $0x1b8] sm:%s228] %v347
                %v349 = vld [vmem:[%s235 + $0x380] sm:%s228]
                %350 = vst [vmem:[%s236 + $0x1c0] sm:%s228] %v349
                %v351 = vld [vmem:[%s235 + $0x390] sm:%s228]
                %352 = vst [vmem:[%s236 + $0x1c8] sm:%s228] %v351
                %v353 = vld [vmem:[%s235 + $0x3a0] sm:%s228]
                %354 = vst [vmem:[%s236 + $0x1d0] sm:%s228] %v353
                %v355 = vld [vmem:[%s235 + $0x3b0] sm:%s228]
                %356 = vst [vmem:[%s236 + $0x1d8] sm:%s228] %v355
                %v357 = vld [vmem:[%s235 + $0x3c0] sm:%s228]
                %358 = vst [vmem:[%s236 + $0x1e0] sm:%s228] %v357
                %v359 = vld [vmem:[%s235 + $0x3d0] sm:%s228]
                %360 = vst [vmem:[%s236 + $0x1e8] sm:%s228] %v359
                %v361 = vld [vmem:[%s235 + $0x3e0] sm:%s228]
                %362 = vst [vmem:[%s236 + $0x1f0] sm:%s228] %v361
                %v363 = vld [vmem:[%s235 + $0x3f0] sm:%s228]
                %364 = vst [vmem:[%s236 + $0x1f8] sm:%s228] %v363
                %v365 = vld [vmem:[%s235 + $0x400] sm:%s228]
                %366 = vst [vmem:[%s236 + $0x200] sm:%s228] %v365
                %v367 = vld [vmem:[%s235 + $0x410] sm:%s228]
                %368 = vst [vmem:[%s236 + $0x208] sm:%s228] %v367
                %v369 = vld [vmem:[%s235 + $0x420] sm:%s228]
                %370 = vst [vmem:[%s236 + $0x210] sm:%s228] %v369
                %v371 = vld [vmem:[%s235 + $0x430] sm:%s228]
                %372 = vst [vmem:[%s236 + $0x218] sm:%s228] %v371
                %v373 = vld [vmem:[%s235 + $0x440] sm:%s228]
                %374 = vst [vmem:[%s236 + $0x220] sm:%s228] %v373
                %v375 = vld [vmem:[%s235 + $0x450] sm:%s228]
                %376 = vst [vmem:[%s236 + $0x228] sm:%s228] %v375
                %v377 = vld [vmem:[%s235 + $0x460] sm:%s228]
                %378 = vst [vmem:[%s236 + $0x230] sm:%s228] %v377
                %v379 = vld [vmem:[%s235 + $0x470] sm:%s228]
                %380 = vst [vmem:[%s236 + $0x238] sm:%s228] %v379
                %v381 = vld [vmem:[%s235 + $0x480] sm:%s228]
                %382 = vst [vmem:[%s236 + $0x240] sm:%s228] %v381
                %v383 = vld [vmem:[%s235 + $0x490] sm:%s228]
                %384 = vst [vmem:[%s236 + $0x248] sm:%s228] %v383
                %v385 = vld [vmem:[%s235 + $0x4a0] sm:%s228]
                %386 = vst [vmem:[%s236 + $0x250] sm:%s228] %v385
                %v387 = vld [vmem:[%s235 + $0x4b0] sm:%s228]
                %388 = vst [vmem:[%s236 + $0x258] sm:%s228] %v387
                %v389 = vld [vmem:[%s235 + $0x4c0] sm:%s228]
                %390 = vst [vmem:[%s236 + $0x260] sm:%s228] %v389
                %v391 = vld [vmem:[%s235 + $0x4d0] sm:%s228]
                %392 = vst [vmem:[%s236 + $0x268] sm:%s228] %v391
                %v393 = vld [vmem:[%s235 + $0x4e0] sm:%s228]
                %394 = vst [vmem:[%s236 + $0x270] sm:%s228] %v393
                %v395 = vld [vmem:[%s235 + $0x4f0] sm:%s228]
                %396 = vst [vmem:[%s236 + $0x278] sm:%s228] %v395
                %v397 = vld [vmem:[%s235 + $0x500] sm:%s228]
                %398 = vst [vmem:[%s236 + $0x280] sm:%s228] %v397
                %v399 = vld [vmem:[%s235 + $0x510] sm:%s228]
                %400 = vst [vmem:[%s236 + $0x288] sm:%s228] %v399
                %v401 = vld [vmem:[%s235 + $0x520] sm:%s228]
                %402 = vst [vmem:[%s236 + $0x290] sm:%s228] %v401
                %v403 = vld [vmem:[%s235 + $0x530] sm:%s228]
                %404 = vst [vmem:[%s236 + $0x298] sm:%s228] %v403
                %v405 = vld [vmem:[%s235 + $0x540] sm:%s228]
                %406 = vst [vmem:[%s236 + $0x2a0] sm:%s228] %v405
                %v407 = vld [vmem:[%s235 + $0x550] sm:%s228]
                %408 = vst [vmem:[%s236 + $0x2a8] sm:%s228] %v407
                %v409 = vld [vmem:[%s235 + $0x560] sm:%s228]
                %410 = vst [vmem:[%s236 + $0x2b0] sm:%s228] %v409
                %v411 = vld [vmem:[%s235 + $0x570] sm:%s228]
                %412 = vst [vmem:[%s236 + $0x2b8] sm:%s228] %v411
                %v413 = vld [vmem:[%s235 + $0x580] sm:%s228]
                %414 = vst [vmem:[%s236 + $0x2c0] sm:%s228] %v413
                %v415 = vld [vmem:[%s235 + $0x590] sm:%s228]
                %416 = vst [vmem:[%s236 + $0x2c8] sm:%s228] %v415
                %v417 = vld [vmem:[%s235 + $0x5a0] sm:%s228]
                %418 = vst [vmem:[%s236 + $0x2d0] sm:%s228] %v417
                %v419 = vld [vmem:[%s235 + $0x5b0] sm:%s228]
                %420 = vst [vmem:[%s236 + $0x2d8] sm:%s228] %v419
                %v421 = vld [vmem:[%s235 + $0x5c0] sm:%s228]
                %422 = vst [vmem:[%s236 + $0x2e0] sm:%s228] %v421
                %v423 = vld [vmem:[%s235 + $0x5d0] sm:%s228]
                %424 = vst [vmem:[%s236 + $0x2e8] sm:%s228] %v423
                %v425 = vld [vmem:[%s235 + $0x5e0] sm:%s228]
                %426 = vst [vmem:[%s236 + $0x2f0] sm:%s228] %v425
                %v427 = vld [vmem:[%s235 + $0x5f0] sm:%s228]
                %428 = vst [vmem:[%s236 + $0x2f8] sm:%s228] %v427
                %v429 = vld [vmem:[%s235 + $0x600] sm:%s228]
                %430 = vst [vmem:[%s236 + $0x300] sm:%s228] %v429
                %v431 = vld [vmem:[%s235 + $0x610] sm:%s228]
                %432 = vst [vmem:[%s236 + $0x308] sm:%s228] %v431
                %v433 = vld [vmem:[%s235 + $0x620] sm:%s228]
                %434 = vst [vmem:[%s236 + $0x310] sm:%s228] %v433
                %v435 = vld [vmem:[%s235 + $0x630] sm:%s228]
                %436 = vst [vmem:[%s236 + $0x318] sm:%s228] %v435
                %v437 = vld [vmem:[%s235 + $0x640] sm:%s228]
                %438 = vst [vmem:[%s236 + $0x320] sm:%s228] %v437
                %v439 = vld [vmem:[%s235 + $0x650] sm:%s228]
                %440 = vst [vmem:[%s236 + $0x328] sm:%s228] %v439
                %v441 = vld [vmem:[%s235 + $0x660] sm:%s228]
                %442 = vst [vmem:[%s236 + $0x330] sm:%s228] %v441
                %v443 = vld [vmem:[%s235 + $0x670] sm:%s228]
                %444 = vst [vmem:[%s236 + $0x338] sm:%s228] %v443
                %v445 = vld [vmem:[%s235 + $0x680] sm:%s228]
                %446 = vst [vmem:[%s236 + $0x340] sm:%s228] %v445
                %v447 = vld [vmem:[%s235 + $0x690] sm:%s228]
                %448 = vst [vmem:[%s236 + $0x348] sm:%s228] %v447
                %v449 = vld [vmem:[%s235 + $0x6a0] sm:%s228]
                %450 = vst [vmem:[%s236 + $0x350] sm:%s228] %v449
                %v451 = vld [vmem:[%s235 + $0x6b0] sm:%s228]
                %452 = vst [vmem:[%s236 + $0x358] sm:%s228] %v451
                %v453 = vld [vmem:[%s235 + $0x6c0] sm:%s228]
                %454 = vst [vmem:[%s236 + $0x360] sm:%s228] %v453
                %v455 = vld [vmem:[%s235 + $0x6d0] sm:%s228]
                %456 = vst [vmem:[%s236 + $0x368] sm:%s228] %v455
                %v457 = vld [vmem:[%s235 + $0x6e0] sm:%s228]
                %458 = vst [vmem:[%s236 + $0x370] sm:%s228] %v457
                %v459 = vld [vmem:[%s235 + $0x6f0] sm:%s228]
                %460 = vst [vmem:[%s236 + $0x378] sm:%s228] %v459
                %v461 = vld [vmem:[%s235 + $0x700] sm:%s228]
                %462 = vst [vmem:[%s236 + $0x380] sm:%s228] %v461
                %v463 = vld [vmem:[%s235 + $0x710] sm:%s228]
                %464 = vst [vmem:[%s236 + $0x388] sm:%s228] %v463
                %v465 = vld [vmem:[%s235 + $0x720] sm:%s228]
                %466 = vst [vmem:[%s236 + $0x390] sm:%s228] %v465
                %v467 = vld [vmem:[%s235 + $0x730] sm:%s228]
                %468 = vst [vmem:[%s236 + $0x398] sm:%s228] %v467
                %v469 = vld [vmem:[%s235 + $0x740] sm:%s228]
                %470 = vst [vmem:[%s236 + $0x3a0] sm:%s228] %v469
                %v471 = vld [vmem:[%s235 + $0x750] sm:%s228]
                %472 = vst [vmem:[%s236 + $0x3a8] sm:%s228] %v471
                %v473 = vld [vmem:[%s235 + $0x760] sm:%s228]
                %474 = vst [vmem:[%s236 + $0x3b0] sm:%s228] %v473
                %v475 = vld [vmem:[%s235 + $0x770] sm:%s228]
                %476 = vst [vmem:[%s236 + $0x3b8] sm:%s228] %v475
                %v477 = vld [vmem:[%s235 + $0x780] sm:%s228]
                %478 = vst [vmem:[%s236 + $0x3c0] sm:%s228] %v477
                %v479 = vld [vmem:[%s235 + $0x790] sm:%s228]
                %480 = vst [vmem:[%s236 + $0x3c8] sm:%s228] %v479
                %v481 = vld [vmem:[%s235 + $0x7a0] sm:%s228]
                %482 = vst [vmem:[%s236 + $0x3d0] sm:%s228] %v481
                %v483 = vld [vmem:[%s235 + $0x7b0] sm:%s228]
                %484 = vst [vmem:[%s236 + $0x3d8] sm:%s228] %v483
                %v485 = vld [vmem:[%s235 + $0x7c0] sm:%s228]
                %486 = vst [vmem:[%s236 + $0x3e0] sm:%s228] %v485
                %v487 = vld [vmem:[%s235 + $0x7d0] sm:%s228]
                %488 = vst [vmem:[%s236 + $0x3e8] sm:%s228] %v487
                %v489 = vld [vmem:[%s235 + $0x7e0] sm:%s228]
                %490 = vst [vmem:[%s236 + $0x3f0] sm:%s228] %v489
                %v491 = vld [vmem:[%s235 + $0x7f0] sm:%s228]
                %492 = vst [vmem:[%s236 + $0x3f8] sm:%s228] %v491
                %v493 = vld [vmem:[%s235 + $0x800] sm:%s228]
                %494 = vst [vmem:[%s236 + $0x400] sm:%s228] %v493
                %v495 = vld [vmem:[%s235 + $0x810] sm:%s228]
                %496 = vst [vmem:[%s236 + $0x408] sm:%s228] %v495
                %v497 = vld [vmem:[%s235 + $0x820] sm:%s228]
                %498 = vst [vmem:[%s236 + $0x410] sm:%s228] %v497
                %v499 = vld [vmem:[%s235 + $0x830] sm:%s228]
                %500 = vst [vmem:[%s236 + $0x418] sm:%s228] %v499
                %v501 = vld [vmem:[%s235 + $0x840] sm:%s228]
                %502 = vst [vmem:[%s236 + $0x420] sm:%s228] %v501
                %v503 = vld [vmem:[%s235 + $0x850] sm:%s228]
                %504 = vst [vmem:[%s236 + $0x428] sm:%s228] %v503
                %v505 = vld [vmem:[%s235 + $0x860] sm:%s228]
                %506 = vst [vmem:[%s236 + $0x430] sm:%s228] %v505
                %v507 = vld [vmem:[%s235 + $0x870] sm:%s228]
                %508 = vst [vmem:[%s236 + $0x438] sm:%s228] %v507
                %v509 = vld [vmem:[%s235 + $0x880] sm:%s228]
                %510 = vst [vmem:[%s236 + $0x440] sm:%s228] %v509
                %v511 = vld [vmem:[%s235 + $0x890] sm:%s228]
                %512 = vst [vmem:[%s236 + $0x448] sm:%s228] %v511
                %v513 = vld [vmem:[%s235 + $0x8a0] sm:%s228]
                %514 = vst [vmem:[%s236 + $0x450] sm:%s228] %v513
                %v515 = vld [vmem:[%s235 + $0x8b0] sm:%s228]
                %516 = vst [vmem:[%s236 + $0x458] sm:%s228] %v515
                %v517 = vld [vmem:[%s235 + $0x8c0] sm:%s228]
                %518 = vst [vmem:[%s236 + $0x460] sm:%s228] %v517
                %v519 = vld [vmem:[%s235 + $0x8d0] sm:%s228]
                %520 = vst [vmem:[%s236 + $0x468] sm:%s228] %v519
                %v521 = vld [vmem:[%s235 + $0x8e0] sm:%s228]
                %522 = vst [vmem:[%s236 + $0x470] sm:%s228] %v521
                %v523 = vld [vmem:[%s235 + $0x8f0] sm:%s228]
                %524 = vst [vmem:[%s236 + $0x478] sm:%s228] %v523
                %v525 = vld [vmem:[%s235 + $0x900] sm:%s228]
                %526 = vst [vmem:[%s236 + $0x480] sm:%s228] %v525
                %v527 = vld [vmem:[%s235 + $0x910] sm:%s228]
                %528 = vst [vmem:[%s236 + $0x488] sm:%s228] %v527
                %v529 = vld [vmem:[%s235 + $0x920] sm:%s228]
                %530 = vst [vmem:[%s236 + $0x490] sm:%s228] %v529
                %v531 = vld [vmem:[%s235 + $0x930] sm:%s228]
                %532 = vst [vmem:[%s236 + $0x498] sm:%s228] %v531
                %v533 = vld [vmem:[%s235 + $0x940] sm:%s228]
                %534 = vst [vmem:[%s236 + $0x4a0] sm:%s228] %v533
                %v535 = vld [vmem:[%s235 + $0x950] sm:%s228]
                %536 = vst [vmem:[%s236 + $0x4a8] sm:%s228] %v535
                %v537 = vld [vmem:[%s235 + $0x960] sm:%s228]
                %538 = vst [vmem:[%s236 + $0x4b0] sm:%s228] %v537
                %v539 = vld [vmem:[%s235 + $0x970] sm:%s228]
                %540 = vst [vmem:[%s236 + $0x4b8] sm:%s228] %v539
                %v541 = vld [vmem:[%s235 + $0x980] sm:%s228]
                %542 = vst [vmem:[%s236 + $0x4c0] sm:%s228] %v541
                %v543 = vld [vmem:[%s235 + $0x990] sm:%s228]
                %544 = vst [vmem:[%s236 + $0x4c8] sm:%s228] %v543
                %v545 = vld [vmem:[%s235 + $0x9a0] sm:%s228]
                %546 = vst [vmem:[%s236 + $0x4d0] sm:%s228] %v545
                %v547 = vld [vmem:[%s235 + $0x9b0] sm:%s228]
                %548 = vst [vmem:[%s236 + $0x4d8] sm:%s228] %v547
                %v549 = vld [vmem:[%s235 + $0x9c0] sm:%s228]
                %550 = vst [vmem:[%s236 + $0x4e0] sm:%s228] %v549
                %v551 = vld [vmem:[%s235 + $0x9d0] sm:%s228]
                %552 = vst [vmem:[%s236 + $0x4e8] sm:%s228] %v551
                %v553 = vld [vmem:[%s235 + $0x9e0] sm:%s228]
                %554 = vst [vmem:[%s236 + $0x4f0] sm:%s228] %v553
                %v555 = vld [vmem:[%s235 + $0x9f0] sm:%s228]
                %556 = vst [vmem:[%s236 + $0x4f8] sm:%s228] %v555
                %v557 = vld [vmem:[%s235 + $0xa00] sm:%s228]
                %558 = vst [vmem:[%s236 + $0x500] sm:%s228] %v557
                %v559 = vld [vmem:[%s235 + $0xa10] sm:%s228]
                %560 = vst [vmem:[%s236 + $0x508] sm:%s228] %v559
                %v561 = vld [vmem:[%s235 + $0xa20] sm:%s228]
                %562 = vst [vmem:[%s236 + $0x510] sm:%s228] %v561
                %v563 = vld [vmem:[%s235 + $0xa30] sm:%s228]
                %564 = vst [vmem:[%s236 + $0x518] sm:%s228] %v563
                %v565 = vld [vmem:[%s235 + $0xa40] sm:%s228]
                %566 = vst [vmem:[%s236 + $0x520] sm:%s228] %v565
                %v567 = vld [vmem:[%s235 + $0xa50] sm:%s228]
                %568 = vst [vmem:[%s236 + $0x528] sm:%s228] %v567
                %v569 = vld [vmem:[%s235 + $0xa60] sm:%s228]
                %570 = vst [vmem:[%s236 + $0x530] sm:%s228] %v569
                %v571 = vld [vmem:[%s235 + $0xa70] sm:%s228]
                %572 = vst [vmem:[%s236 + $0x538] sm:%s228] %v571
                %v573 = vld [vmem:[%s235 + $0xa80] sm:%s228]
                %574 = vst [vmem:[%s236 + $0x540] sm:%s228] %v573
                %v575 = vld [vmem:[%s235 + $0xa90] sm:%s228]
                %576 = vst [vmem:[%s236 + $0x548] sm:%s228] %v575
                %v577 = vld [vmem:[%s235 + $0xaa0] sm:%s228]
                %578 = vst [vmem:[%s236 + $0x550] sm:%s228] %v577
                %v579 = vld [vmem:[%s235 + $0xab0] sm:%s228]
                %580 = vst [vmem:[%s236 + $0x558] sm:%s228] %v579
                %v581 = vld [vmem:[%s235 + $0xac0] sm:%s228]
                %582 = vst [vmem:[%s236 + $0x560] sm:%s228] %v581
                %v583 = vld [vmem:[%s235 + $0xad0] sm:%s228]
                %584 = vst [vmem:[%s236 + $0x568] sm:%s228] %v583
                %v585 = vld [vmem:[%s235 + $0xae0] sm:%s228]
                %586 = vst [vmem:[%s236 + $0x570] sm:%s228] %v585
                %v587 = vld [vmem:[%s235 + $0xaf0] sm:%s228]
                %588 = vst [vmem:[%s236 + $0x578] sm:%s228] %v587
                %v589 = vld [vmem:[%s235 + $0xb00] sm:%s228]
                %590 = vst [vmem:[%s236 + $0x580] sm:%s228] %v589
                %v591 = vld [vmem:[%s235 + $0xb10] sm:%s228]
                %592 = vst [vmem:[%s236 + $0x588] sm:%s228] %v591
                %v593 = vld [vmem:[%s235 + $0xb20] sm:%s228]
                %594 = vst [vmem:[%s236 + $0x590] sm:%s228] %v593
                %v595 = vld [vmem:[%s235 + $0xb30] sm:%s228]
                %596 = vst [vmem:[%s236 + $0x598] sm:%s228] %v595
                %v597 = vld [vmem:[%s235 + $0xb40] sm:%s228]
                %598 = vst [vmem:[%s236 + $0x5a0] sm:%s228] %v597
                %v599 = vld [vmem:[%s235 + $0xb50] sm:%s228]
                %600 = vst [vmem:[%s236 + $0x5a8] sm:%s228] %v599
                %v601 = vld [vmem:[%s235 + $0xb60] sm:%s228]
                %602 = vst [vmem:[%s236 + $0x5b0] sm:%s228] %v601
                %v603 = vld [vmem:[%s235 + $0xb70] sm:%s228]
                %604 = vst [vmem:[%s236 + $0x5b8] sm:%s228] %v603
                %v605 = vld [vmem:[%s235 + $0xb80] sm:%s228]
                %606 = vst [vmem:[%s236 + $0x5c0] sm:%s228] %v605
                %v607 = vld [vmem:[%s235 + $0xb90] sm:%s228]
                %608 = vst [vmem:[%s236 + $0x5c8] sm:%s228] %v607
                %v609 = vld [vmem:[%s235 + $0xba0] sm:%s228]
                %610 = vst [vmem:[%s236 + $0x5d0] sm:%s228] %v609
                %v611 = vld [vmem:[%s235 + $0xbb0] sm:%s228]
                %612 = vst [vmem:[%s236 + $0x5d8] sm:%s228] %v611
                %v613 = vld [vmem:[%s235 + $0xbc0] sm:%s228]
                %614 = vst [vmem:[%s236 + $0x5e0] sm:%s228] %v613
                %v615 = vld [vmem:[%s235 + $0xbd0] sm:%s228]
                %616 = vst [vmem:[%s236 + $0x5e8] sm:%s228] %v615
                %v617 = vld [vmem:[%s235 + $0xbe0] sm:%s228]
                %618 = vst [vmem:[%s236 + $0x5f0] sm:%s228] %v617
                %v619 = vld [vmem:[%s235 + $0xbf0] sm:%s228]
                %620 = vst [vmem:[%s236 + $0x5f8] sm:%s228] %v619
              $region45: #{upsample_block_forward.2} parent=39 // loop_footer
                %s234 = sadd.s32 1, %s230
              $region46: #{upsample_block_forward.2} parent=39 // loop_footer_branch
                %229 = sbr.rel target = $region42
              $region47: #{upsample_block_forward.2} parent=39 // loop_exit
                _
            $region40: #{upsample_block_forward.2} parent=31 // pred_fallthru
              _
          $region32: #{upsample_block_forward.2} parent=27 // pred_fallthru
            _
          %1017 = vnop
        $region28: #{upsample_block_forward.2} parent=19 // pred_fallthru
          _
      $region20: #{upsample_block_forward.2} parent=5 // pred_fallthru
        _
      %p1018 = scmp.le.s32.totalorder 1, %s12
      %p1019 = scmp.lt.s32.totalorder %s12, 5
      %p1020 = pnand %p1018, %p1019
      %p1021 = pneg %p1020
      // Predicated region
      $region63: #{upsample_block_forward.2} parent=5 // pred_check
        _
      $region64: #{upsample_block_forward.2} parent=5 // pred_check_branch
        %1023 = sbr.rel (%p1020) target = $region66
      $region65: #{upsample_block_forward.2} parent=5 // pred_region
        %s1024 = ssub.s32 %s12, 1
        %s1025 = sand.u32 %s84, 1
        %s1026 = sand.u32 %s84, 1
        %s1027 = smul.addr %s1026, 1536
        %s1028 = scalar_lea.vmem [#allocation2], %s1027
        // Predicated region
        $region67: #{upsample_block_forward.2} parent=65 // pred_check
          %p1029 = pneg %p97
        $region68: #{upsample_block_forward.2} parent=65 // pred_check_branch
          %1031 = sbr.rel (%p1029) target = $region70
        $region69: #{upsample_block_forward.2} parent=65 // pred_region
          _
        $region70: #{upsample_block_forward.2} parent=65 // pred_fallthru
          _
        %p1032 = scmp.lt.s32.totalorder %s22, 1
        %s1033 = scalar_select %p1032, %s22, 1
        %s1034 = smul.addr %s1033, 8
        %s1035 = smul.addr %s1034, 4
        %s1036 = scalar_lea.vmem %s0, %s1035
        %p1037 = pneg %p50
        %p1038 = pneg %p47
        %p1039 = pneg %p71
        %p1040 = pneg %p68
        %s1041 = sand.u32 %s84, 1
        %s1042 = sand.u32 %s84, 1
        %s1043 = smul.addr %s1042, 1536
        %s1044 = scalar_lea.vmem [#allocation2], %s1043
        %p1045 = pneg %p97
        %p1046 = pneg %p94
        %p1047 = pneg %p125
        %p1048 = pneg %p122
        %s1049 = sand.u32 %s112, 1
        %s1050 = sand.u32 %s112, 1
        %s1051 = smul.addr %s1050, 64
        %s1052 = scalar_lea.vmem [#allocation3], %s1051
        %p1053 = pneg %p153
        %p1054 = pneg %p150
        %s1055 = smul.u32 2, %s21
        %p1056 = scmp.lt.s32.totalorder %s22, 1
        %s1057 = scalar_select %p1056, %s22, 1
        %p1058 = scmp.lt.s32.totalorder %s1055, 3
        %s1059 = scalar_select %p1058, %s1055, 3
        %s1060 = smul.addr %s1057, 4
        %s1061 = sadd.s32 %s1059, %s1060
        %s1062 = scalar_lea.vmem %s4, %s1061
        %p1063 = pneg %p181
        %p1064 = pneg %p178
        %s1065 = smul.u32 2, %s21
        %p1066 = scmp.lt.s32.totalorder %s22, 1
        %s1067 = scalar_select %p1066, %s22, 1
        %p1068 = scmp.lt.s32.totalorder %s1065, 3
        %s1069 = scalar_select %p1068, %s1065, 3
        %s1070 = smul.addr %s1067, 4
        %s1071 = sadd.s32 %s1069, %s1070
        %s1072 = scalar_lea.vmem %s5, %s1071
        %p1073 = scmp.lt.s32.totalorder %s22, 1
        %s1074 = scalar_select %p1073, %s22, 1
        %s1075 = smul.addr %s1074, 8
        %s1076 = smul.addr %s1075, 4
        %s1077 = scalar_lea.vmem %s0, %s1076
        %s1078 = smul.u32 2, %s21
        %s1079 = smul.u32 2, %s21
        %s1080 = smul.u32 2, %s21
        %p1081 = scmp.lt.s32.totalorder %s22, 1
        %s1082 = scalar_select %p1081, %s22, 1
        %p1083 = scmp.lt.s32.totalorder %s1080, 3
        %s1084 = scalar_select %p1083, %s1080, 3
        %s1085 = smul.addr %s1082, 4
        %s1086 = sadd.s32 %s1084, %s1085
        %s1087 = scalar_lea.vmem %s4, %s1086
        %s1088 = smul.u32 2, %s21
        %s1089 = smul.u32 2, %s21
        %p1090 = scmp.lt.s32.totalorder %s22, 1
        %s1091 = scalar_select %p1090, %s22, 1
        %p1092 = scmp.lt.s32.totalorder %s1089, 3
        %s1093 = scalar_select %p1092, %s1089, 3
        %s1094 = smul.addr %s1091, 4
        %s1095 = sadd.s32 %s1093, %s1094
        %s1096 = scalar_lea.vmem %s5, %s1095
        %s1097 = smul.u32 2, %s21
        %v1098 = vld [vmem:[%s1077] sm:$0xff]
        %v1099 = vld [vmem:[%s1077 + $0x8] sm:$0xff]
        %v1100 = vld [vmem:[%s1077 + $0x10] sm:$0xff]
        %v1101 = vld [vmem:[%s1077 + $0x18] sm:$0xff]
        %v1102 = vld [vmem:[%s1028] sm:$0xff]
        %v1103 = vld [vmem:[%s1028 + $0x8] sm:$0xff]
        %v1104 = vld [vmem:[%s1028 + $0x10] sm:$0xff]
        %v1105 = vld [vmem:[%s1028 + $0x18] sm:$0xff]
        %v1106 = vld [vmem:[%s1028 + $0x20] sm:$0xff]
        %v1107 = vld [vmem:[%s1028 + $0x28] sm:$0xff]
        %v1108 = vld [vmem:[%s1028 + $0x30] sm:$0xff]
        %v1109 = vld [vmem:[%s1028 + $0x38] sm:$0xff]
        %v1110 = vld [vmem:[%s1028 + $0x40] sm:$0xff]
        %v1111 = vld [vmem:[%s1028 + $0x48] sm:$0xff]
        %v1112 = vld [vmem:[%s1028 + $0x50] sm:$0xff]
        %v1113 = vld [vmem:[%s1028 + $0x58] sm:$0xff]
        %v1114 = vld [vmem:[%s1028 + $0x60] sm:$0xff]
        %v1115 = vld [vmem:[%s1028 + $0x68] sm:$0xff]
        %v1116 = vld [vmem:[%s1028 + $0x70] sm:$0xff]
        %v1117 = vld [vmem:[%s1028 + $0x78] sm:$0xff]
        %v1118 = vld [vmem:[%s1028 + $0x80] sm:$0xff]
        %v1119 = vld [vmem:[%s1028 + $0x88] sm:$0xff]
        %v1120 = vld [vmem:[%s1028 + $0x90] sm:$0xff]
        %v1121 = vld [vmem:[%s1028 + $0x98] sm:$0xff]
        %v1122 = vld [vmem:[%s1028 + $0xa0] sm:$0xff]
        %v1123 = vld [vmem:[%s1028 + $0xa8] sm:$0xff]
        %v1124 = vld [vmem:[%s1028 + $0xb0] sm:$0xff]
        %v1125 = vld [vmem:[%s1028 + $0xb8] sm:$0xff]
        %v1126 = vld [vmem:[%s1028 + $0xc0] sm:$0xff]
        %v1127 = vld [vmem:[%s1028 + $0xc8] sm:$0xff]
        %v1128 = vld [vmem:[%s1028 + $0xd0] sm:$0xff]
        %v1129 = vld [vmem:[%s1028 + $0xd8] sm:$0xff]
        %v1130 = vld [vmem:[%s1028 + $0xe0] sm:$0xff]
        %v1131 = vld [vmem:[%s1028 + $0xe8] sm:$0xff]
        %v1132 = vld [vmem:[%s1028 + $0xf0] sm:$0xff]
        %v1133 = vld [vmem:[%s1028 + $0xf8] sm:$0xff]
        %v1134 = vld [vmem:[%s1028 + $0x100] sm:$0xff]
        %v1135 = vld [vmem:[%s1028 + $0x108] sm:$0xff]
        %v1136 = vld [vmem:[%s1028 + $0x110] sm:$0xff]
        %v1137 = vld [vmem:[%s1028 + $0x118] sm:$0xff]
        %v1138 = vld [vmem:[%s1028 + $0x120] sm:$0xff]
        %v1139 = vld [vmem:[%s1028 + $0x128] sm:$0xff]
        %v1140 = vld [vmem:[%s1028 + $0x130] sm:$0xff]
        %v1141 = vld [vmem:[%s1028 + $0x138] sm:$0xff]
        %v1142 = vld [vmem:[%s1028 + $0x140] sm:$0xff]
        %v1143 = vld [vmem:[%s1028 + $0x148] sm:$0xff]
        %v1144 = vld [vmem:[%s1028 + $0x150] sm:$0xff]
        %v1145 = vld [vmem:[%s1028 + $0x158] sm:$0xff]
        %v1146 = vld [vmem:[%s1028 + $0x160] sm:$0xff]
        %v1147 = vld [vmem:[%s1028 + $0x168] sm:$0xff]
        %v1148 = vld [vmem:[%s1028 + $0x170] sm:$0xff]
        %v1149 = vld [vmem:[%s1028 + $0x178] sm:$0xff]
        %v1150 = vld [vmem:[%s1028 + $0x180] sm:$0xff]
        %v1151 = vld [vmem:[%s1028 + $0x188] sm:$0xff]
        %v1152 = vld [vmem:[%s1028 + $0x190] sm:$0xff]
        %v1153 = vld [vmem:[%s1028 + $0x198] sm:$0xff]
        %v1154 = vld [vmem:[%s1028 + $0x1a0] sm:$0xff]
        %v1155 = vld [vmem:[%s1028 + $0x1a8] sm:$0xff]
        %v1156 = vld [vmem:[%s1028 + $0x1b0] sm:$0xff]
        %v1157 = vld [vmem:[%s1028 + $0x1b8] sm:$0xff]
        %v1158 = vld [vmem:[%s1028 + $0x1c0] sm:$0xff]
        %v1159 = vld [vmem:[%s1028 + $0x1c8] sm:$0xff]
        %v1160 = vld [vmem:[%s1028 + $0x1d0] sm:$0xff]
        %v1161 = vld [vmem:[%s1028 + $0x1d8] sm:$0xff]
        %v1162 = vld [vmem:[%s1028 + $0x1e0] sm:$0xff]
        %v1163 = vld [vmem:[%s1028 + $0x1e8] sm:$0xff]
        %v1164 = vld [vmem:[%s1028 + $0x1f0] sm:$0xff]
        %v1165 = vld [vmem:[%s1028 + $0x1f8] sm:$0xff]
        %v1170 = vunpack.c.l.b16 %v1098
        %v1171 = vunpack.c.h.b16 %v1098
        %v1172 = vunpack.c.l.b16 %v1099
        %v1173 = vunpack.c.h.b16 %v1099
        %v1174 = vunpack.c.l.b16 %v1100
        %v1175 = vunpack.c.h.b16 %v1100
        %v1176 = vunpack.c.l.b16 %v1101
        %v1177 = vunpack.c.h.b16 %v1101
        %v1178 = vpack.c.b16 %v1174, %v1170
        %v1179 = vpack.c.b16 %v1175, %v1171
        %v1180 = vpack.c.b16 %v1176, %v1172
        %v1181 = vpack.c.b16 %v1177, %v1173
        %v1250 = vunpack.c.l.b16 %v1102
        %v1251 = vunpack.c.h.b16 %v1102
        %v1252 = vunpack.c.l.b16 %v1103
        %v1253 = vunpack.c.h.b16 %v1103
        %v1254 = vunpack.c.l.b16 %v1104
        %v1255 = vunpack.c.h.b16 %v1104
        %v1256 = vunpack.c.l.b16 %v1105
        %v1257 = vunpack.c.h.b16 %v1105
        %v1258 = vunpack.c.l.b16 %v1106
        %v1259 = vunpack.c.h.b16 %v1106
        %v1260 = vunpack.c.l.b16 %v1107
        %v1261 = vunpack.c.h.b16 %v1107
        %v1262 = vunpack.c.l.b16 %v1108
        %v1263 = vunpack.c.h.b16 %v1108
        %v1264 = vunpack.c.l.b16 %v1109
        %v1265 = vunpack.c.h.b16 %v1109
        %v1266 = vunpack.c.l.b16 %v1110
        %v1267 = vunpack.c.h.b16 %v1110
        %v1268 = vunpack.c.l.b16 %v1111
        %v1269 = vunpack.c.h.b16 %v1111
        %v1270 = vunpack.c.l.b16 %v1112
        %v1271 = vunpack.c.h.b16 %v1112
        %v1272 = vunpack.c.l.b16 %v1113
        %v1273 = vunpack.c.h.b16 %v1113
        %v1274 = vunpack.c.l.b16 %v1114
        %v1275 = vunpack.c.h.b16 %v1114
        %v1276 = vunpack.c.l.b16 %v1115
        %v1277 = vunpack.c.h.b16 %v1115
        %v1278 = vunpack.c.l.b16 %v1116
        %v1279 = vunpack.c.h.b16 %v1116
        %v1280 = vunpack.c.l.b16 %v1117
        %v1281 = vunpack.c.h.b16 %v1117
        %v1282 = vunpack.c.l.b16 %v1118
        %v1283 = vunpack.c.h.b16 %v1118
        %v1284 = vunpack.c.l.b16 %v1119
        %v1285 = vunpack.c.h.b16 %v1119
        %v1286 = vunpack.c.l.b16 %v1120
        %v1287 = vunpack.c.h.b16 %v1120
        %v1288 = vunpack.c.l.b16 %v1121
        %v1289 = vunpack.c.h.b16 %v1121
        %v1290 = vunpack.c.l.b16 %v1122
        %v1291 = vunpack.c.h.b16 %v1122
        %v1292 = vunpack.c.l.b16 %v1123
        %v1293 = vunpack.c.h.b16 %v1123
        %v1294 = vunpack.c.l.b16 %v1124
        %v1295 = vunpack.c.h.b16 %v1124
        %v1296 = vunpack.c.l.b16 %v1125
        %v1297 = vunpack.c.h.b16 %v1125
        %v1298 = vunpack.c.l.b16 %v1126
        %v1299 = vunpack.c.h.b16 %v1126
        %v1300 = vunpack.c.l.b16 %v1127
        %v1301 = vunpack.c.h.b16 %v1127
        %v1302 = vunpack.c.l.b16 %v1128
        %v1303 = vunpack.c.h.b16 %v1128
        %v1304 = vunpack.c.l.b16 %v1129
        %v1305 = vunpack.c.h.b16 %v1129
        %v1306 = vunpack.c.l.b16 %v1130
        %v1307 = vunpack.c.h.b16 %v1130
        %v1308 = vunpack.c.l.b16 %v1131
        %v1309 = vunpack.c.h.b16 %v1131
        %v1310 = vunpack.c.l.b16 %v1132
        %v1311 = vunpack.c.h.b16 %v1132
        %v1312 = vunpack.c.l.b16 %v1133
        %v1313 = vunpack.c.h.b16 %v1133
        %v1314 = vunpack.c.l.b16 %v1134
        %v1315 = vunpack.c.h.b16 %v1134
        %v1316 = vunpack.c.l.b16 %v1135
        %v1317 = vunpack.c.h.b16 %v1135
        %v1318 = vunpack.c.l.b16 %v1136
        %v1319 = vunpack.c.h.b16 %v1136
        %v1320 = vunpack.c.l.b16 %v1137
        %v1321 = vunpack.c.h.b16 %v1137
        %v1322 = vunpack.c.l.b16 %v1138
        %v1323 = vunpack.c.h.b16 %v1138
        %v1324 = vunpack.c.l.b16 %v1139
        %v1325 = vunpack.c.h.b16 %v1139
        %v1326 = vunpack.c.l.b16 %v1140
        %v1327 = vunpack.c.h.b16 %v1140
        %v1328 = vunpack.c.l.b16 %v1141
        %v1329 = vunpack.c.h.b16 %v1141
        %v1330 = vunpack.c.l.b16 %v1142
        %v1331 = vunpack.c.h.b16 %v1142
        %v1332 = vunpack.c.l.b16 %v1143
        %v1333 = vunpack.c.h.b16 %v1143
        %v1334 = vunpack.c.l.b16 %v1144
        %v1335 = vunpack.c.h.b16 %v1144
        %v1336 = vunpack.c.l.b16 %v1145
        %v1337 = vunpack.c.h.b16 %v1145
        %v1338 = vunpack.c.l.b16 %v1146
        %v1339 = vunpack.c.h.b16 %v1146
        %v1340 = vunpack.c.l.b16 %v1147
        %v1341 = vunpack.c.h.b16 %v1147
        %v1342 = vunpack.c.l.b16 %v1148
        %v1343 = vunpack.c.h.b16 %v1148
        %v1344 = vunpack.c.l.b16 %v1149
        %v1345 = vunpack.c.h.b16 %v1149
        %v1346 = vunpack.c.l.b16 %v1150
        %v1347 = vunpack.c.h.b16 %v1150
        %v1348 = vunpack.c.l.b16 %v1151
        %v1349 = vunpack.c.h.b16 %v1151
        %v1350 = vunpack.c.l.b16 %v1152
        %v1351 = vunpack.c.h.b16 %v1152
        %v1352 = vunpack.c.l.b16 %v1153
        %v1353 = vunpack.c.h.b16 %v1153
        %v1354 = vunpack.c.l.b16 %v1154
        %v1355 = vunpack.c.h.b16 %v1154
        %v1356 = vunpack.c.l.b16 %v1155
        %v1357 = vunpack.c.h.b16 %v1155
        %v1358 = vunpack.c.l.b16 %v1156
        %v1359 = vunpack.c.h.b16 %v1156
        %v1360 = vunpack.c.l.b16 %v1157
        %v1361 = vunpack.c.h.b16 %v1157
        %v1362 = vunpack.c.l.b16 %v1158
        %v1363 = vunpack.c.h.b16 %v1158
        %v1364 = vunpack.c.l.b16 %v1159
        %v1365 = vunpack.c.h.b16 %v1159
        %v1366 = vunpack.c.l.b16 %v1160
        %v1367 = vunpack.c.h.b16 %v1160
        %v1368 = vunpack.c.l.b16 %v1161
        %v1369 = vunpack.c.h.b16 %v1161
        %v1370 = vunpack.c.l.b16 %v1162
        %v1371 = vunpack.c.h.b16 %v1162
        %v1372 = vunpack.c.l.b16 %v1163
        %v1373 = vunpack.c.h.b16 %v1163
        %v1374 = vunpack.c.l.b16 %v1164
        %v1375 = vunpack.c.h.b16 %v1164
        %v1376 = vunpack.c.l.b16 %v1165
        %v1377 = vunpack.c.h.b16 %v1165
        %v1378 = vpack.c.b16 %v1252, %v1250
        %v1379 = vpack.c.b16 %v1253, %v1251
        %v1380 = vpack.c.b16 %v1256, %v1254
        %v1381 = vpack.c.b16 %v1257, %v1255
        %v1382 = vpack.c.b16 %v1260, %v1258
        %v1383 = vpack.c.b16 %v1261, %v1259
        %v1384 = vpack.c.b16 %v1264, %v1262
        %v1385 = vpack.c.b16 %v1265, %v1263
        %v1386 = vpack.c.b16 %v1268, %v1266
        %v1387 = vpack.c.b16 %v1269, %v1267
        %v1388 = vpack.c.b16 %v1272, %v1270
        %v1389 = vpack.c.b16 %v1273, %v1271
        %v1390 = vpack.c.b16 %v1276, %v1274
        %v1391 = vpack.c.b16 %v1277, %v1275
        %v1392 = vpack.c.b16 %v1280, %v1278
        %v1393 = vpack.c.b16 %v1281, %v1279
        %v1394 = vpack.c.b16 %v1284, %v1282
        %v1395 = vpack.c.b16 %v1285, %v1283
        %v1396 = vpack.c.b16 %v1288, %v1286
        %v1397 = vpack.c.b16 %v1289, %v1287
        %v1398 = vpack.c.b16 %v1292, %v1290
        %v1399 = vpack.c.b16 %v1293, %v1291
        %v1400 = vpack.c.b16 %v1296, %v1294
        %v1401 = vpack.c.b16 %v1297, %v1295
        %v1402 = vpack.c.b16 %v1300, %v1298
        %v1403 = vpack.c.b16 %v1301, %v1299
        %v1404 = vpack.c.b16 %v1304, %v1302
        %v1405 = vpack.c.b16 %v1305, %v1303
        %v1406 = vpack.c.b16 %v1308, %v1306
        %v1407 = vpack.c.b16 %v1309, %v1307
        %v1408 = vpack.c.b16 %v1312, %v1310
        %v1409 = vpack.c.b16 %v1313, %v1311
        %v1410 = vpack.c.b16 %v1316, %v1314
        %v1411 = vpack.c.b16 %v1317, %v1315
        %v1412 = vpack.c.b16 %v1320, %v1318
        %v1413 = vpack.c.b16 %v1321, %v1319
        %v1414 = vpack.c.b16 %v1324, %v1322
        %v1415 = vpack.c.b16 %v1325, %v1323
        %v1416 = vpack.c.b16 %v1328, %v1326
        %v1417 = vpack.c.b16 %v1329, %v1327
        %v1418 = vpack.c.b16 %v1332, %v1330
        %v1419 = vpack.c.b16 %v1333, %v1331
        %v1420 = vpack.c.b16 %v1336, %v1334
        %v1421 = vpack.c.b16 %v1337, %v1335
        %v1422 = vpack.c.b16 %v1340, %v1338
        %v1423 = vpack.c.b16 %v1341, %v1339
        %v1424 = vpack.c.b16 %v1344, %v1342
        %v1425 = vpack.c.b16 %v1345, %v1343
        %v1426 = vpack.c.b16 %v1348, %v1346
        %v1427 = vpack.c.b16 %v1349, %v1347
        %v1428 = vpack.c.b16 %v1352, %v1350
        %v1429 = vpack.c.b16 %v1353, %v1351
        %v1430 = vpack.c.b16 %v1356, %v1354
        %v1431 = vpack.c.b16 %v1357, %v1355
        %v1432 = vpack.c.b16 %v1360, %v1358
        %v1433 = vpack.c.b16 %v1361, %v1359
        %v1434 = vpack.c.b16 %v1364, %v1362
        %v1435 = vpack.c.b16 %v1365, %v1363
        %v1436 = vpack.c.b16 %v1368, %v1366
        %v1437 = vpack.c.b16 %v1369, %v1367
        %v1438 = vpack.c.b16 %v1372, %v1370
        %v1439 = vpack.c.b16 %v1373, %v1371
        %v1440 = vpack.c.b16 %v1376, %v1374
        %v1441 = vpack.c.b16 %v1377, %v1375
        %1506 = vmatpush.bf16.msra.mxu0 %v1392
        %1507 = vmatpush.bf16.msra.mxu0 %v1390
        %1508 = vmatpush.bf16.msra.mxu0 %v1388
        %1509 = vmatpush.bf16.msra.mxu0 %v1386
        %1510 = vmatpush.bf16.msra.mxu0 %v1384
        %1511 = vmatpush.bf16.msra.mxu0 %v1382
        %1512 = vmatpush.bf16.msra.mxu0 %v1380
        %1513 = vmatpush.bf16.msra.mxu0 %v1378
        %1514 = vmatmul.bf16.gmra.mxu0 %v1178
        %v1515 = vpop.f32.mrf.mxu0
        %v1516 = vadd.f32 0.0, %v1515
        %v1517 = vpop.f32.mrf.mxu0
        %v1518 = vadd.f32 0.0, %v1517
        %1519 = vdwg.mxu0
        %1520 = vmatpush.bf16.msra.mxu0 %v1408
        %1521 = vmatpush.bf16.msra.mxu0 %v1406
        %1522 = vmatpush.bf16.msra.mxu0 %v1404
        %1523 = vmatpush.bf16.msra.mxu0 %v1402
        %1524 = vmatpush.bf16.msra.mxu0 %v1400
        %1525 = vmatpush.bf16.msra.mxu0 %v1398
        %1526 = vmatpush.bf16.msra.mxu0 %v1396
        %1527 = vmatpush.bf16.msra.mxu0 %v1394
        %1528 = vmatmul.bf16.gmra.mxu0 %v1179
        %v1529 = vpop.f32.mrf.mxu0
        %v1530 = vadd.f32 %v1516, %v1529
        %v1531 = vpop.f32.mrf.mxu0
        %v1532 = vadd.f32 %v1518, %v1531
        %1533 = vdwg.mxu0
        %1534 = vmatpush.bf16.msra.mxu0 %v1424
        %1535 = vmatpush.bf16.msra.mxu0 %v1422
        %1536 = vmatpush.bf16.msra.mxu0 %v1420
        %1537 = vmatpush.bf16.msra.mxu0 %v1418
        %1538 = vmatpush.bf16.msra.mxu0 %v1416
        %1539 = vmatpush.bf16.msra.mxu0 %v1414
        %1540 = vmatpush.bf16.msra.mxu0 %v1412
        %1541 = vmatpush.bf16.msra.mxu0 %v1410
        %1542 = vmatmul.bf16.gmra.mxu0 %v1180
        %v1543 = vpop.f32.mrf.mxu0
        %v1544 = vadd.f32 %v1530, %v1543
        %v1545 = vpop.f32.mrf.mxu0
        %v1546 = vadd.f32 %v1532, %v1545
        %1547 = vdwg.mxu0
        %1548 = vmatpush.bf16.msra.mxu0 %v1440
        %1549 = vmatpush.bf16.msra.mxu0 %v1438
        %1550 = vmatpush.bf16.msra.mxu0 %v1436
        %1551 = vmatpush.bf16.msra.mxu0 %v1434
        %1552 = vmatpush.bf16.msra.mxu0 %v1432
        %1553 = vmatpush.bf16.msra.mxu0 %v1430
        %1554 = vmatpush.bf16.msra.mxu0 %v1428
        %1555 = vmatpush.bf16.msra.mxu0 %v1426
        %1556 = vmatmul.bf16.gmra.mxu0 %v1181
        %v1557 = vpop.f32.mrf.mxu0
        %v1558 = vadd.f32 %v1544, %v1557
        %v1559 = vpop.f32.mrf.mxu0
        %v1560 = vadd.f32 %v1546, %v1559
        %1561 = vdwg.mxu0
        %1562 = vmatpush.bf16.msra.mxu0 %v1393
        %1563 = vmatpush.bf16.msra.mxu0 %v1391
        %1564 = vmatpush.bf16.msra.mxu0 %v1389
        %1565 = vmatpush.bf16.msra.mxu0 %v1387
        %1566 = vmatpush.bf16.msra.mxu0 %v1385
        %1567 = vmatpush.bf16.msra.mxu0 %v1383
        %1568 = vmatpush.bf16.msra.mxu0 %v1381
        %1569 = vmatpush.bf16.msra.mxu0 %v1379
        %1570 = vmatmul.bf16.gmra.mxu0 %v1178
        %v1571 = vpop.f32.mrf.mxu0
        %v1572 = vadd.f32 0.0, %v1571
        %v1573 = vpop.f32.mrf.mxu0
        %v1574 = vadd.f32 0.0, %v1573
        %1575 = vdwg.mxu0
        %1576 = vmatpush.bf16.msra.mxu0 %v1409
        %1577 = vmatpush.bf16.msra.mxu0 %v1407
        %1578 = vmatpush.bf16.msra.mxu0 %v1405
        %1579 = vmatpush.bf16.msra.mxu0 %v1403
        %1580 = vmatpush.bf16.msra.mxu0 %v1401
        %1581 = vmatpush.bf16.msra.mxu0 %v1399
        %1582 = vmatpush.bf16.msra.mxu0 %v1397
        %1583 = vmatpush.bf16.msra.mxu0 %v1395
        %1584 = vmatmul.bf16.gmra.mxu0 %v1179
        %v1585 = vpop.f32.mrf.mxu0
        %v1586 = vadd.f32 %v1572, %v1585
        %v1587 = vpop.f32.mrf.mxu0
        %v1588 = vadd.f32 %v1574, %v1587
        %1589 = vdwg.mxu0
        %1590 = vmatpush.bf16.msra.mxu0 %v1425
        %1591 = vmatpush.bf16.msra.mxu0 %v1423
        %1592 = vmatpush.bf16.msra.mxu0 %v1421
        %1593 = vmatpush.bf16.msra.mxu0 %v1419
        %1594 = vmatpush.bf16.msra.mxu0 %v1417
        %1595 = vmatpush.bf16.msra.mxu0 %v1415
        %1596 = vmatpush.bf16.msra.mxu0 %v1413
        %1597 = vmatpush.bf16.msra.mxu0 %v1411
        %1598 = vmatmul.bf16.gmra.mxu0 %v1180
        %v1599 = vpop.f32.mrf.mxu0
        %v1600 = vadd.f32 %v1586, %v1599
        %v1601 = vpop.f32.mrf.mxu0
        %v1602 = vadd.f32 %v1588, %v1601
        %1603 = vdwg.mxu0
        %1604 = vmatpush.bf16.msra.mxu0 %v1441
        %1605 = vmatpush.bf16.msra.mxu0 %v1439
        %1606 = vmatpush.bf16.msra.mxu0 %v1437
        %1607 = vmatpush.bf16.msra.mxu0 %v1435
        %1608 = vmatpush.bf16.msra.mxu0 %v1433
        %1609 = vmatpush.bf16.msra.mxu0 %v1431
        %1610 = vmatpush.bf16.msra.mxu0 %v1429
        %1611 = vmatpush.bf16.msra.mxu0 %v1427
        %1612 = vmatmul.bf16.gmra.mxu0 %v1181
        %v1613 = vpop.f32.mrf.mxu0
        %v1614 = vadd.f32 %v1600, %v1613
        %v1615 = vpop.f32.mrf.mxu0
        %v1616 = vadd.f32 %v1602, %v1615
        %1617 = vdwg.mxu0
        %v1618 = vld [vmem:[%s1] sm:$0xff]
        %v1619 = vld [vmem:[%s1 + $0x8] sm:$0xff]
        %v1620 = vld [vmem:[%s1 + $0x10] sm:$0xff]
        %v1621 = vld [vmem:[%s1 + $0x18] sm:$0xff]
        %s1622 = scalar_lea.vmem %s1028, 512 [#allocation2]
        %v1623 = vld [vmem:[%s1622] sm:$0xff]
        %v1624 = vld [vmem:[%s1622 + $0x8] sm:$0xff]
        %v1625 = vld [vmem:[%s1622 + $0x10] sm:$0xff]
        %v1626 = vld [vmem:[%s1622 + $0x18] sm:$0xff]
        %v1627 = vld [vmem:[%s1622 + $0x20] sm:$0xff]
        %v1628 = vld [vmem:[%s1622 + $0x28] sm:$0xff]
        %v1629 = vld [vmem:[%s1622 + $0x30] sm:$0xff]
        %v1630 = vld [vmem:[%s1622 + $0x38] sm:$0xff]
        %v1631 = vld [vmem:[%s1622 + $0x40] sm:$0xff]
        %v1632 = vld [vmem:[%s1622 + $0x48] sm:$0xff]
        %v1633 = vld [vmem:[%s1622 + $0x50] sm:$0xff]
        %v1634 = vld [vmem:[%s1622 + $0x58] sm:$0xff]
        %v1635 = vld [vmem:[%s1622 + $0x60] sm:$0xff]
        %v1636 = vld [vmem:[%s1622 + $0x68] sm:$0xff]
        %v1637 = vld [vmem:[%s1622 + $0x70] sm:$0xff]
        %v1638 = vld [vmem:[%s1622 + $0x78] sm:$0xff]
        %v1639 = vld [vmem:[%s1622 + $0x80] sm:$0xff]
        %v1640 = vld [vmem:[%s1622 + $0x88] sm:$0xff]
        %v1641 = vld [vmem:[%s1622 + $0x90] sm:$0xff]
        %v1642 = vld [vmem:[%s1622 + $0x98] sm:$0xff]
        %v1643 = vld [vmem:[%s1622 + $0xa0] sm:$0xff]
        %v1644 = vld [vmem:[%s1622 + $0xa8] sm:$0xff]
        %v1645 = vld [vmem:[%s1622 + $0xb0] sm:$0xff]
        %v1646 = vld [vmem:[%s1622 + $0xb8] sm:$0xff]
        %v1647 = vld [vmem:[%s1622 + $0xc0] sm:$0xff]
        %v1648 = vld [vmem:[%s1622 + $0xc8] sm:$0xff]
        %v1649 = vld [vmem:[%s1622 + $0xd0] sm:$0xff]
        %v1650 = vld [vmem:[%s1622 + $0xd8] sm:$0xff]
        %v1651 = vld [vmem:[%s1622 + $0xe0] sm:$0xff]
        %v1652 = vld [vmem:[%s1622 + $0xe8] sm:$0xff]
        %v1653 = vld [vmem:[%s1622 + $0xf0] sm:$0xff]
        %v1654 = vld [vmem:[%s1622 + $0xf8] sm:$0xff]
        %v1655 = vld [vmem:[%s1622 + $0x100] sm:$0xff]
        %v1656 = vld [vmem:[%s1622 + $0x108] sm:$0xff]
        %v1657 = vld [vmem:[%s1622 + $0x110] sm:$0xff]
        %v1658 = vld [vmem:[%s1622 + $0x118] sm:$0xff]
        %v1659 = vld [vmem:[%s1622 + $0x120] sm:$0xff]
        %v1660 = vld [vmem:[%s1622 + $0x128] sm:$0xff]
        %v1661 = vld [vmem:[%s1622 + $0x130] sm:$0xff]
        %v1662 = vld [vmem:[%s1622 + $0x138] sm:$0xff]
        %v1663 = vld [vmem:[%s1622 + $0x140] sm:$0xff]
        %v1664 = vld [vmem:[%s1622 + $0x148] sm:$0xff]
        %v1665 = vld [vmem:[%s1622 + $0x150] sm:$0xff]
        %v1666 = vld [vmem:[%s1622 + $0x158] sm:$0xff]
        %v1667 = vld [vmem:[%s1622 + $0x160] sm:$0xff]
        %v1668 = vld [vmem:[%s1622 + $0x168] sm:$0xff]
        %v1669 = vld [vmem:[%s1622 + $0x170] sm:$0xff]
        %v1670 = vld [vmem:[%s1622 + $0x178] sm:$0xff]
        %v1671 = vld [vmem:[%s1622 + $0x180] sm:$0xff]
        %v1672 = vld [vmem:[%s1622 + $0x188] sm:$0xff]
        %v1673 = vld [vmem:[%s1622 + $0x190] sm:$0xff]
        %v1674 = vld [vmem:[%s1622 + $0x198] sm:$0xff]
        %v1675 = vld [vmem:[%s1622 + $0x1a0] sm:$0xff]
        %v1676 = vld [vmem:[%s1622 + $0x1a8] sm:$0xff]
        %v1677 = vld [vmem:[%s1622 + $0x1b0] sm:$0xff]
        %v1678 = vld [vmem:[%s1622 + $0x1b8] sm:$0xff]
        %v1679 = vld [vmem:[%s1622 + $0x1c0] sm:$0xff]
        %v1680 = vld [vmem:[%s1622 + $0x1c8] sm:$0xff]
        %v1681 = vld [vmem:[%s1622 + $0x1d0] sm:$0xff]
        %v1682 = vld [vmem:[%s1622 + $0x1d8] sm:$0xff]
        %v1683 = vld [vmem:[%s1622 + $0x1e0] sm:$0xff]
        %v1684 = vld [vmem:[%s1622 + $0x1e8] sm:$0xff]
        %v1685 = vld [vmem:[%s1622 + $0x1f0] sm:$0xff]
        %v1686 = vld [vmem:[%s1622 + $0x1f8] sm:$0xff]
        %v1751 = vunpack.c.l.b16 %v1623
        %v1752 = vunpack.c.h.b16 %v1623
        %v1753 = vunpack.c.l.b16 %v1624
        %v1754 = vunpack.c.h.b16 %v1624
        %v1755 = vunpack.c.l.b16 %v1625
        %v1756 = vunpack.c.h.b16 %v1625
        %v1757 = vunpack.c.l.b16 %v1626
        %v1758 = vunpack.c.h.b16 %v1626
        %v1759 = vunpack.c.l.b16 %v1627
        %v1760 = vunpack.c.h.b16 %v1627
        %v1761 = vunpack.c.l.b16 %v1628
        %v1762 = vunpack.c.h.b16 %v1628
        %v1763 = vunpack.c.l.b16 %v1629
        %v1764 = vunpack.c.h.b16 %v1629
        %v1765 = vunpack.c.l.b16 %v1630
        %v1766 = vunpack.c.h.b16 %v1630
        %v1767 = vunpack.c.l.b16 %v1631
        %v1768 = vunpack.c.h.b16 %v1631
        %v1769 = vunpack.c.l.b16 %v1632
        %v1770 = vunpack.c.h.b16 %v1632
        %v1771 = vunpack.c.l.b16 %v1633
        %v1772 = vunpack.c.h.b16 %v1633
        %v1773 = vunpack.c.l.b16 %v1634
        %v1774 = vunpack.c.h.b16 %v1634
        %v1775 = vunpack.c.l.b16 %v1635
        %v1776 = vunpack.c.h.b16 %v1635
        %v1777 = vunpack.c.l.b16 %v1636
        %v1778 = vunpack.c.h.b16 %v1636
        %v1779 = vunpack.c.l.b16 %v1637
        %v1780 = vunpack.c.h.b16 %v1637
        %v1781 = vunpack.c.l.b16 %v1638
        %v1782 = vunpack.c.h.b16 %v1638
        %v1783 = vunpack.c.l.b16 %v1639
        %v1784 = vunpack.c.h.b16 %v1639
        %v1785 = vunpack.c.l.b16 %v1640
        %v1786 = vunpack.c.h.b16 %v1640
        %v1787 = vunpack.c.l.b16 %v1641
        %v1788 = vunpack.c.h.b16 %v1641
        %v1789 = vunpack.c.l.b16 %v1642
        %v1790 = vunpack.c.h.b16 %v1642
        %v1791 = vunpack.c.l.b16 %v1643
        %v1792 = vunpack.c.h.b16 %v1643
        %v1793 = vunpack.c.l.b16 %v1644
        %v1794 = vunpack.c.h.b16 %v1644
        %v1795 = vunpack.c.l.b16 %v1645
        %v1796 = vunpack.c.h.b16 %v1645
        %v1797 = vunpack.c.l.b16 %v1646
        %v1798 = vunpack.c.h.b16 %v1646
        %v1799 = vunpack.c.l.b16 %v1647
        %v1800 = vunpack.c.h.b16 %v1647
        %v1801 = vunpack.c.l.b16 %v1648
        %v1802 = vunpack.c.h.b16 %v1648
        %v1803 = vunpack.c.l.b16 %v1649
        %v1804 = vunpack.c.h.b16 %v1649
        %v1805 = vunpack.c.l.b16 %v1650
        %v1806 = vunpack.c.h.b16 %v1650
        %v1807 = vunpack.c.l.b16 %v1651
        %v1808 = vunpack.c.h.b16 %v1651
        %v1809 = vunpack.c.l.b16 %v1652
        %v1810 = vunpack.c.h.b16 %v1652
        %v1811 = vunpack.c.l.b16 %v1653
        %v1812 = vunpack.c.h.b16 %v1653
        %v1813 = vunpack.c.l.b16 %v1654
        %v1814 = vunpack.c.h.b16 %v1654
        %v1815 = vunpack.c.l.b16 %v1655
        %v1816 = vunpack.c.h.b16 %v1655
        %v1817 = vunpack.c.l.b16 %v1656
        %v1818 = vunpack.c.h.b16 %v1656
        %v1819 = vunpack.c.l.b16 %v1657
        %v1820 = vunpack.c.h.b16 %v1657
        %v1821 = vunpack.c.l.b16 %v1658
        %v1822 = vunpack.c.h.b16 %v1658
        %v1823 = vunpack.c.l.b16 %v1659
        %v1824 = vunpack.c.h.b16 %v1659
        %v1825 = vunpack.c.l.b16 %v1660
        %v1826 = vunpack.c.h.b16 %v1660
        %v1827 = vunpack.c.l.b16 %v1661
        %v1828 = vunpack.c.h.b16 %v1661
        %v1829 = vunpack.c.l.b16 %v1662
        %v1830 = vunpack.c.h.b16 %v1662
        %v1831 = vunpack.c.l.b16 %v1663
        %v1832 = vunpack.c.h.b16 %v1663
        %v1833 = vunpack.c.l.b16 %v1664
        %v1834 = vunpack.c.h.b16 %v1664
        %v1835 = vunpack.c.l.b16 %v1665
        %v1836 = vunpack.c.h.b16 %v1665
        %v1837 = vunpack.c.l.b16 %v1666
        %v1838 = vunpack.c.h.b16 %v1666
        %v1839 = vunpack.c.l.b16 %v1667
        %v1840 = vunpack.c.h.b16 %v1667
        %v1841 = vunpack.c.l.b16 %v1668
        %v1842 = vunpack.c.h.b16 %v1668
        %v1843 = vunpack.c.l.b16 %v1669
        %v1844 = vunpack.c.h.b16 %v1669
        %v1845 = vunpack.c.l.b16 %v1670
        %v1846 = vunpack.c.h.b16 %v1670
        %v1847 = vunpack.c.l.b16 %v1671
        %v1848 = vunpack.c.h.b16 %v1671
        %v1849 = vunpack.c.l.b16 %v1672
        %v1850 = vunpack.c.h.b16 %v1672
        %v1851 = vunpack.c.l.b16 %v1673
        %v1852 = vunpack.c.h.b16 %v1673
        %v1853 = vunpack.c.l.b16 %v1674
        %v1854 = vunpack.c.h.b16 %v1674
        %v1855 = vunpack.c.l.b16 %v1675
        %v1856 = vunpack.c.h.b16 %v1675
        %v1857 = vunpack.c.l.b16 %v1676
        %v1858 = vunpack.c.h.b16 %v1676
        %v1859 = vunpack.c.l.b16 %v1677
        %v1860 = vunpack.c.h.b16 %v1677
        %v1861 = vunpack.c.l.b16 %v1678
        %v1862 = vunpack.c.h.b16 %v1678
        %v1863 = vunpack.c.l.b16 %v1679
        %v1864 = vunpack.c.h.b16 %v1679
        %v1865 = vunpack.c.l.b16 %v1680
        %v1866 = vunpack.c.h.b16 %v1680
        %v1867 = vunpack.c.l.b16 %v1681
        %v1868 = vunpack.c.h.b16 %v1681
        %v1869 = vunpack.c.l.b16 %v1682
        %v1870 = vunpack.c.h.b16 %v1682
        %v1871 = vunpack.c.l.b16 %v1683
        %v1872 = vunpack.c.h.b16 %v1683
        %v1873 = vunpack.c.l.b16 %v1684
        %v1874 = vunpack.c.h.b16 %v1684
        %v1875 = vunpack.c.l.b16 %v1685
        %v1876 = vunpack.c.h.b16 %v1685
        %v1877 = vunpack.c.l.b16 %v1686
        %v1878 = vunpack.c.h.b16 %v1686
        %v1879 = vpack.c.b16 %v1753, %v1751
        %v1880 = vpack.c.b16 %v1754, %v1752
        %v1881 = vpack.c.b16 %v1757, %v1755
        %v1882 = vpack.c.b16 %v1758, %v1756
        %v1883 = vpack.c.b16 %v1761, %v1759
        %v1884 = vpack.c.b16 %v1762, %v1760
        %v1885 = vpack.c.b16 %v1765, %v1763
        %v1886 = vpack.c.b16 %v1766, %v1764
        %v1887 = vpack.c.b16 %v1769, %v1767
        %v1888 = vpack.c.b16 %v1770, %v1768
        %v1889 = vpack.c.b16 %v1773, %v1771
        %v1890 = vpack.c.b16 %v1774, %v1772
        %v1891 = vpack.c.b16 %v1777, %v1775
        %v1892 = vpack.c.b16 %v1778, %v1776
        %v1893 = vpack.c.b16 %v1781, %v1779
        %v1894 = vpack.c.b16 %v1782, %v1780
        %v1895 = vpack.c.b16 %v1785, %v1783
        %v1896 = vpack.c.b16 %v1786, %v1784
        %v1897 = vpack.c.b16 %v1789, %v1787
        %v1898 = vpack.c.b16 %v1790, %v1788
        %v1899 = vpack.c.b16 %v1793, %v1791
        %v1900 = vpack.c.b16 %v1794, %v1792
        %v1901 = vpack.c.b16 %v1797, %v1795
        %v1902 = vpack.c.b16 %v1798, %v1796
        %v1903 = vpack.c.b16 %v1801, %v1799
        %v1904 = vpack.c.b16 %v1802, %v1800
        %v1905 = vpack.c.b16 %v1805, %v1803
        %v1906 = vpack.c.b16 %v1806, %v1804
        %v1907 = vpack.c.b16 %v1809, %v1807
        %v1908 = vpack.c.b16 %v1810, %v1808
        %v1909 = vpack.c.b16 %v1813, %v1811
        %v1910 = vpack.c.b16 %v1814, %v1812
        %v1911 = vpack.c.b16 %v1817, %v1815
        %v1912 = vpack.c.b16 %v1818, %v1816
        %v1913 = vpack.c.b16 %v1821, %v1819
        %v1914 = vpack.c.b16 %v1822, %v1820
        %v1915 = vpack.c.b16 %v1825, %v1823
        %v1916 = vpack.c.b16 %v1826, %v1824
        %v1917 = vpack.c.b16 %v1829, %v1827
        %v1918 = vpack.c.b16 %v1830, %v1828
        %v1919 = vpack.c.b16 %v1833, %v1831
        %v1920 = vpack.c.b16 %v1834, %v1832
        %v1921 = vpack.c.b16 %v1837, %v1835
        %v1922 = vpack.c.b16 %v1838, %v1836
        %v1923 = vpack.c.b16 %v1841, %v1839
        %v1924 = vpack.c.b16 %v1842, %v1840
        %v1925 = vpack.c.b16 %v1845, %v1843
        %v1926 = vpack.c.b16 %v1846, %v1844
        %v1927 = vpack.c.b16 %v1849, %v1847
        %v1928 = vpack.c.b16 %v1850, %v1848
        %v1929 = vpack.c.b16 %v1853, %v1851
        %v1930 = vpack.c.b16 %v1854, %v1852
        %v1931 = vpack.c.b16 %v1857, %v1855
        %v1932 = vpack.c.b16 %v1858, %v1856
        %v1933 = vpack.c.b16 %v1861, %v1859
        %v1934 = vpack.c.b16 %v1862, %v1860
        %v1935 = vpack.c.b16 %v1865, %v1863
        %v1936 = vpack.c.b16 %v1866, %v1864
        %v1937 = vpack.c.b16 %v1869, %v1867
        %v1938 = vpack.c.b16 %v1870, %v1868
        %v1939 = vpack.c.b16 %v1873, %v1871
        %v1940 = vpack.c.b16 %v1874, %v1872
        %v1941 = vpack.c.b16 %v1877, %v1875
        %v1942 = vpack.c.b16 %v1878, %v1876
        %2007 = vmatpush.bf16.msra.mxu0 %v1893
        %2008 = vmatpush.bf16.msra.mxu0 %v1891
        %2009 = vmatpush.bf16.msra.mxu0 %v1889
        %2010 = vmatpush.bf16.msra.mxu0 %v1887
        %2011 = vmatpush.bf16.msra.mxu0 %v1885
        %2012 = vmatpush.bf16.msra.mxu0 %v1883
        %2013 = vmatpush.bf16.msra.mxu0 %v1881
        %2014 = vmatpush.bf16.msra.mxu0 %v1879
        %2015 = vmatmul.bf16.gmra.mxu0 %v1178
        %v2016 = vpop.f32.mrf.mxu0
        %v2017 = vadd.f32 0.0, %v2016
        %v2018 = vpop.f32.mrf.mxu0
        %v2019 = vadd.f32 0.0, %v2018
        %2020 = vdwg.mxu0
        %2021 = vmatpush.bf16.msra.mxu0 %v1909
        %2022 = vmatpush.bf16.msra.mxu0 %v1907
        %2023 = vmatpush.bf16.msra.mxu0 %v1905
        %2024 = vmatpush.bf16.msra.mxu0 %v1903
        %2025 = vmatpush.bf16.msra.mxu0 %v1901
        %2026 = vmatpush.bf16.msra.mxu0 %v1899
        %2027 = vmatpush.bf16.msra.mxu0 %v1897
        %2028 = vmatpush.bf16.msra.mxu0 %v1895
        %2029 = vmatmul.bf16.gmra.mxu0 %v1179
        %v2030 = vpop.f32.mrf.mxu0
        %v2031 = vadd.f32 %v2017, %v2030
        %v2032 = vpop.f32.mrf.mxu0
        %v2033 = vadd.f32 %v2019, %v2032
        %2034 = vdwg.mxu0
        %2035 = vmatpush.bf16.msra.mxu0 %v1925
        %2036 = vmatpush.bf16.msra.mxu0 %v1923
        %2037 = vmatpush.bf16.msra.mxu0 %v1921
        %2038 = vmatpush.bf16.msra.mxu0 %v1919
        %2039 = vmatpush.bf16.msra.mxu0 %v1917
        %2040 = vmatpush.bf16.msra.mxu0 %v1915
        %2041 = vmatpush.bf16.msra.mxu0 %v1913
        %2042 = vmatpush.bf16.msra.mxu0 %v1911
        %2043 = vmatmul.bf16.gmra.mxu0 %v1180
        %v2044 = vpop.f32.mrf.mxu0
        %v2045 = vadd.f32 %v2031, %v2044
        %v2046 = vpop.f32.mrf.mxu0
        %v2047 = vadd.f32 %v2033, %v2046
        %2048 = vdwg.mxu0
        %2049 = vmatpush.bf16.msra.mxu0 %v1941
        %2050 = vmatpush.bf16.msra.mxu0 %v1939
        %2051 = vmatpush.bf16.msra.mxu0 %v1937
        %2052 = vmatpush.bf16.msra.mxu0 %v1935
        %2053 = vmatpush.bf16.msra.mxu0 %v1933
        %2054 = vmatpush.bf16.msra.mxu0 %v1931
        %2055 = vmatpush.bf16.msra.mxu0 %v1929
        %2056 = vmatpush.bf16.msra.mxu0 %v1927
        %2057 = vmatmul.bf16.gmra.mxu0 %v1181
        %v2058 = vpop.f32.mrf.mxu0
        %v2059 = vadd.f32 %v2045, %v2058
        %v2060 = vpop.f32.mrf.mxu0
        %v2061 = vadd.f32 %v2047, %v2060
        %2062 = vdwg.mxu0
        %2063 = vmatpush.bf16.msra.mxu0 %v1894
        %2064 = vmatpush.bf16.msra.mxu0 %v1892
        %2065 = vmatpush.bf16.msra.mxu0 %v1890
        %2066 = vmatpush.bf16.msra.mxu0 %v1888
        %2067 = vmatpush.bf16.msra.mxu0 %v1886
        %2068 = vmatpush.bf16.msra.mxu0 %v1884
        %2069 = vmatpush.bf16.msra.mxu0 %v1882
        %2070 = vmatpush.bf16.msra.mxu0 %v1880
        %2071 = vmatmul.bf16.gmra.mxu0 %v1178
        %v2072 = vpop.f32.mrf.mxu0
        %v2073 = vadd.f32 0.0, %v2072
        %v2074 = vpop.f32.mrf.mxu0
        %v2075 = vadd.f32 0.0, %v2074
        %2076 = vdwg.mxu0
        %2077 = vmatpush.bf16.msra.mxu0 %v1910
        %2078 = vmatpush.bf16.msra.mxu0 %v1908
        %2079 = vmatpush.bf16.msra.mxu0 %v1906
        %2080 = vmatpush.bf16.msra.mxu0 %v1904
        %2081 = vmatpush.bf16.msra.mxu0 %v1902
        %2082 = vmatpush.bf16.msra.mxu0 %v1900
        %2083 = vmatpush.bf16.msra.mxu0 %v1898
        %2084 = vmatpush.bf16.msra.mxu0 %v1896
        %2085 = vmatmul.bf16.gmra.mxu0 %v1179
        %v2086 = vpop.f32.mrf.mxu0
        %v2087 = vadd.f32 %v2073, %v2086
        %v2088 = vpop.f32.mrf.mxu0
        %v2089 = vadd.f32 %v2075, %v2088
        %2090 = vdwg.mxu0
        %2091 = vmatpush.bf16.msra.mxu0 %v1926
        %2092 = vmatpush.bf16.msra.mxu0 %v1924
        %2093 = vmatpush.bf16.msra.mxu0 %v1922
        %2094 = vmatpush.bf16.msra.mxu0 %v1920
        %2095 = vmatpush.bf16.msra.mxu0 %v1918
        %2096 = vmatpush.bf16.msra.mxu0 %v1916
        %2097 = vmatpush.bf16.msra.mxu0 %v1914
        %2098 = vmatpush.bf16.msra.mxu0 %v1912
        %2099 = vmatmul.bf16.gmra.mxu0 %v1180
        %v2100 = vpop.f32.mrf.mxu0
        %v2101 = vadd.f32 %v2087, %v2100
        %v2102 = vpop.f32.mrf.mxu0
        %v2103 = vadd.f32 %v2089, %v2102
        %2104 = vdwg.mxu0
        %2105 = vmatpush.bf16.msra.mxu0 %v1942
        %2106 = vmatpush.bf16.msra.mxu0 %v1940
        %2107 = vmatpush.bf16.msra.mxu0 %v1938
        %2108 = vmatpush.bf16.msra.mxu0 %v1936
        %2109 = vmatpush.bf16.msra.mxu0 %v1934
        %2110 = vmatpush.bf16.msra.mxu0 %v1932
        %2111 = vmatpush.bf16.msra.mxu0 %v1930
        %2112 = vmatpush.bf16.msra.mxu0 %v1928
        %2113 = vmatmul.bf16.gmra.mxu0 %v1181
        %v2114 = vpop.f32.mrf.mxu0
        %v2115 = vadd.f32 %v2101, %v2114
        %v2116 = vpop.f32.mrf.mxu0
        %v2117 = vadd.f32 %v2103, %v2116
        %2118 = vdwg.mxu0
        %s2119 = scalar_lea.vmem %s1, 32
        %v2120 = vld [vmem:[%s2119] sm:$0xff]
        %v2121 = vld [vmem:[%s2119 + $0x8] sm:$0xff]
        %v2122 = vld [vmem:[%s2119 + $0x10] sm:$0xff]
        %v2123 = vld [vmem:[%s2119 + $0x18] sm:$0xff]
        %vm2124 = vcmask 130048
        %v2126 = vsel %vm2124, %v2120, 0
        %v2129 = vsel %vm2124, %v2121, 0
        %v2132 = vsel %vm2124, %v2122, 0
        %v2135 = vsel %vm2124, %v2123, 0
        %2137 = vmatpush.msra.mxu0 0.0
        %2138 = vmatpush.msra.mxu0 0.0
        %2139 = vmatpush.msra.mxu0 0.0
        %2140 = vmatpush.msra.mxu0 0.0
        %2141 = vmatpush.msra.mxu0 0.0
        %2142 = vmatpush.msra.mxu0 0.0
        %2143 = vmatpush.msra.mxu0 0.0
        %2144 = vmatpush.msra.mxu0 0.0
        %2145 = vmatpush.msra.mxu0 0.0
        %2146 = vmatpush.msra.mxu0 0.0
        %2147 = vmatpush.msra.mxu0 0.0
        %2148 = vmatpush.msra.mxu0 0.0
        %2149 = vmatpush.msra.mxu0 0.0
        %2150 = vmatpush.msra.mxu0 0.0
        %2151 = vmatpush.msra.mxu0 %v2061
        %2152 = vmatpush.msra.mxu0 %v2059
        %2153 = vmatmul.f32.gmra.mxu0 %v2126
        %v2154 = vpop.f32.mrf.mxu0
        %v2155 = vadd.f32 0.0, %v2154
        %2156 = vmatmul.f32.gmra.mxu0 %v2129
        %v2157 = vpop.f32.mrf.mxu0
        %v2158 = vadd.f32 0.0, %v2157
        %2159 = vmatmul.f32.gmra.mxu0 %v2132
        %v2160 = vpop.f32.mrf.mxu0
        %v2161 = vadd.f32 0.0, %v2160
        %2162 = vmatmul.f32.gmra.mxu0 %v2135
        %v2163 = vpop.f32.mrf.mxu0
        %v2164 = vadd.f32 0.0, %v2163
        %2165 = vdwg.mxu0
        %2166 = vmatpush.msra.mxu0 0.0
        %2167 = vmatpush.msra.mxu0 0.0
        %2168 = vmatpush.msra.mxu0 0.0
        %2169 = vmatpush.msra.mxu0 0.0
        %2170 = vmatpush.msra.mxu0 0.0
        %2171 = vmatpush.msra.mxu0 0.0
        %2172 = vmatpush.msra.mxu0 0.0
        %2173 = vmatpush.msra.mxu0 0.0
        %2174 = vmatpush.msra.mxu0 0.0
        %2175 = vmatpush.msra.mxu0 0.0
        %2176 = vmatpush.msra.mxu0 0.0
        %2177 = vmatpush.msra.mxu0 0.0
        %2178 = vmatpush.msra.mxu0 0.0
        %2179 = vmatpush.msra.mxu0 0.0
        %2180 = vmatpush.msra.mxu0 %v2117
        %2181 = vmatpush.msra.mxu0 %v2115
        %2182 = vmatmul.f32.gmra.mxu0 %v2126
        %v2183 = vpop.f32.mrf.mxu0
        %v2184 = vadd.f32 0.0, %v2183
        %2185 = vmatmul.f32.gmra.mxu0 %v2129
        %v2186 = vpop.f32.mrf.mxu0
        %v2187 = vadd.f32 0.0, %v2186
        %2188 = vmatmul.f32.gmra.mxu0 %v2132
        %v2189 = vpop.f32.mrf.mxu0
        %v2190 = vadd.f32 0.0, %v2189
        %2191 = vmatmul.f32.gmra.mxu0 %v2135
        %v2192 = vpop.f32.mrf.mxu0
        %v2193 = vadd.f32 0.0, %v2192
        %2194 = vdwg.mxu0
        %v2196 = vsel %vm2124, %v1618, 0
        %v2199 = vsel %vm2124, %v1619, 0
        %v2202 = vsel %vm2124, %v1620, 0
        %v2205 = vsel %vm2124, %v1621, 0
        %2207 = vmatpush.msra.mxu0 0.0
        %2208 = vmatpush.msra.mxu0 0.0
        %2209 = vmatpush.msra.mxu0 0.0
        %2210 = vmatpush.msra.mxu0 0.0
        %2211 = vmatpush.msra.mxu0 0.0
        %2212 = vmatpush.msra.mxu0 0.0
        %2213 = vmatpush.msra.mxu0 0.0
        %2214 = vmatpush.msra.mxu0 0.0
        %2215 = vmatpush.msra.mxu0 0.0
        %2216 = vmatpush.msra.mxu0 0.0
        %2217 = vmatpush.msra.mxu0 0.0
        %2218 = vmatpush.msra.mxu0 0.0
        %2219 = vmatpush.msra.mxu0 0.0
        %2220 = vmatpush.msra.mxu0 0.0
        %2221 = vmatpush.msra.mxu0 %v1560
        %2222 = vmatpush.msra.mxu0 %v1558
        %2223 = vmatmul.f32.gmra.mxu0 %v2196
        %v2224 = vpop.f32.mrf.mxu0
        %v2225 = vadd.f32 %v2155, %v2224
        %2226 = vmatmul.f32.gmra.mxu0 %v2199
        %v2227 = vpop.f32.mrf.mxu0
        %v2228 = vadd.f32 %v2158, %v2227
        %2229 = vmatmul.f32.gmra.mxu0 %v2202
        %v2230 = vpop.f32.mrf.mxu0
        %v2231 = vadd.f32 %v2161, %v2230
        %2232 = vmatmul.f32.gmra.mxu0 %v2205
        %v2233 = vpop.f32.mrf.mxu0
        %v2234 = vadd.f32 %v2164, %v2233
        %2235 = vdwg.mxu0
        %2236 = vmatpush.msra.mxu0 0.0
        %2237 = vmatpush.msra.mxu0 0.0
        %2238 = vmatpush.msra.mxu0 0.0
        %2239 = vmatpush.msra.mxu0 0.0
        %2240 = vmatpush.msra.mxu0 0.0
        %2241 = vmatpush.msra.mxu0 0.0
        %2242 = vmatpush.msra.mxu0 0.0
        %2243 = vmatpush.msra.mxu0 0.0
        %2244 = vmatpush.msra.mxu0 0.0
        %2245 = vmatpush.msra.mxu0 0.0
        %2246 = vmatpush.msra.mxu0 0.0
        %2247 = vmatpush.msra.mxu0 0.0
        %2248 = vmatpush.msra.mxu0 0.0
        %2249 = vmatpush.msra.mxu0 0.0
        %2250 = vmatpush.msra.mxu0 %v1616
        %2251 = vmatpush.msra.mxu0 %v1614
        %2252 = vmatmul.f32.gmra.mxu0 %v2196
        %v2253 = vpop.f32.mrf.mxu0
        %v2254 = vadd.f32 %v2184, %v2253
        %2255 = vmatmul.f32.gmra.mxu0 %v2199
        %v2256 = vpop.f32.mrf.mxu0
        %v2257 = vadd.f32 %v2187, %v2256
        %2258 = vmatmul.f32.gmra.mxu0 %v2202
        %v2259 = vpop.f32.mrf.mxu0
        %v2260 = vadd.f32 %v2190, %v2259
        %2261 = vmatmul.f32.gmra.mxu0 %v2205
        %v2262 = vpop.f32.mrf.mxu0
        %v2263 = vadd.f32 %v2193, %v2262
        %2264 = vdwg.mxu0
        %s2265 = scalar_lea.vmem %s1028, 1024 [#allocation2]
        %v2266 = vld [vmem:[%s2265] sm:$0xff]
        %v2267 = vld [vmem:[%s2265 + $0x8] sm:$0xff]
        %v2268 = vld [vmem:[%s2265 + $0x10] sm:$0xff]
        %v2269 = vld [vmem:[%s2265 + $0x18] sm:$0xff]
        %v2270 = vld [vmem:[%s2265 + $0x20] sm:$0xff]
        %v2271 = vld [vmem:[%s2265 + $0x28] sm:$0xff]
        %v2272 = vld [vmem:[%s2265 + $0x30] sm:$0xff]
        %v2273 = vld [vmem:[%s2265 + $0x38] sm:$0xff]
        %v2274 = vld [vmem:[%s2265 + $0x40] sm:$0xff]
        %v2275 = vld [vmem:[%s2265 + $0x48] sm:$0xff]
        %v2276 = vld [vmem:[%s2265 + $0x50] sm:$0xff]
        %v2277 = vld [vmem:[%s2265 + $0x58] sm:$0xff]
        %v2278 = vld [vmem:[%s2265 + $0x60] sm:$0xff]
        %v2279 = vld [vmem:[%s2265 + $0x68] sm:$0xff]
        %v2280 = vld [vmem:[%s2265 + $0x70] sm:$0xff]
        %v2281 = vld [vmem:[%s2265 + $0x78] sm:$0xff]
        %v2282 = vld [vmem:[%s2265 + $0x80] sm:$0xff]
        %v2283 = vld [vmem:[%s2265 + $0x88] sm:$0xff]
        %v2284 = vld [vmem:[%s2265 + $0x90] sm:$0xff]
        %v2285 = vld [vmem:[%s2265 + $0x98] sm:$0xff]
        %v2286 = vld [vmem:[%s2265 + $0xa0] sm:$0xff]
        %v2287 = vld [vmem:[%s2265 + $0xa8] sm:$0xff]
        %v2288 = vld [vmem:[%s2265 + $0xb0] sm:$0xff]
        %v2289 = vld [vmem:[%s2265 + $0xb8] sm:$0xff]
        %v2290 = vld [vmem:[%s2265 + $0xc0] sm:$0xff]
        %v2291 = vld [vmem:[%s2265 + $0xc8] sm:$0xff]
        %v2292 = vld [vmem:[%s2265 + $0xd0] sm:$0xff]
        %v2293 = vld [vmem:[%s2265 + $0xd8] sm:$0xff]
        %v2294 = vld [vmem:[%s2265 + $0xe0] sm:$0xff]
        %v2295 = vld [vmem:[%s2265 + $0xe8] sm:$0xff]
        %v2296 = vld [vmem:[%s2265 + $0xf0] sm:$0xff]
        %v2297 = vld [vmem:[%s2265 + $0xf8] sm:$0xff]
        %v2298 = vld [vmem:[%s2265 + $0x100] sm:$0xff]
        %v2299 = vld [vmem:[%s2265 + $0x108] sm:$0xff]
        %v2300 = vld [vmem:[%s2265 + $0x110] sm:$0xff]
        %v2301 = vld [vmem:[%s2265 + $0x118] sm:$0xff]
        %v2302 = vld [vmem:[%s2265 + $0x120] sm:$0xff]
        %v2303 = vld [vmem:[%s2265 + $0x128] sm:$0xff]
        %v2304 = vld [vmem:[%s2265 + $0x130] sm:$0xff]
        %v2305 = vld [vmem:[%s2265 + $0x138] sm:$0xff]
        %v2306 = vld [vmem:[%s2265 + $0x140] sm:$0xff]
        %v2307 = vld [vmem:[%s2265 + $0x148] sm:$0xff]
        %v2308 = vld [vmem:[%s2265 + $0x150] sm:$0xff]
        %v2309 = vld [vmem:[%s2265 + $0x158] sm:$0xff]
        %v2310 = vld [vmem:[%s2265 + $0x160] sm:$0xff]
        %v2311 = vld [vmem:[%s2265 + $0x168] sm:$0xff]
        %v2312 = vld [vmem:[%s2265 + $0x170] sm:$0xff]
        %v2313 = vld [vmem:[%s2265 + $0x178] sm:$0xff]
        %v2314 = vld [vmem:[%s2265 + $0x180] sm:$0xff]
        %v2315 = vld [vmem:[%s2265 + $0x188] sm:$0xff]
        %v2316 = vld [vmem:[%s2265 + $0x190] sm:$0xff]
        %v2317 = vld [vmem:[%s2265 + $0x198] sm:$0xff]
        %v2318 = vld [vmem:[%s2265 + $0x1a0] sm:$0xff]
        %v2319 = vld [vmem:[%s2265 + $0x1a8] sm:$0xff]
        %v2320 = vld [vmem:[%s2265 + $0x1b0] sm:$0xff]
        %v2321 = vld [vmem:[%s2265 + $0x1b8] sm:$0xff]
        %v2322 = vld [vmem:[%s2265 + $0x1c0] sm:$0xff]
        %v2323 = vld [vmem:[%s2265 + $0x1c8] sm:$0xff]
        %v2324 = vld [vmem:[%s2265 + $0x1d0] sm:$0xff]
        %v2325 = vld [vmem:[%s2265 + $0x1d8] sm:$0xff]
        %v2326 = vld [vmem:[%s2265 + $0x1e0] sm:$0xff]
        %v2327 = vld [vmem:[%s2265 + $0x1e8] sm:$0xff]
        %v2328 = vld [vmem:[%s2265 + $0x1f0] sm:$0xff]
        %v2329 = vld [vmem:[%s2265 + $0x1f8] sm:$0xff]
        %v2394 = vunpack.c.l.b16 %v2266
        %v2395 = vunpack.c.h.b16 %v2266
        %v2396 = vunpack.c.l.b16 %v2267
        %v2397 = vunpack.c.h.b16 %v2267
        %v2398 = vunpack.c.l.b16 %v2268
        %v2399 = vunpack.c.h.b16 %v2268
        %v2400 = vunpack.c.l.b16 %v2269
        %v2401 = vunpack.c.h.b16 %v2269
        %v2402 = vunpack.c.l.b16 %v2270
        %v2403 = vunpack.c.h.b16 %v2270
        %v2404 = vunpack.c.l.b16 %v2271
        %v2405 = vunpack.c.h.b16 %v2271
        %v2406 = vunpack.c.l.b16 %v2272
        %v2407 = vunpack.c.h.b16 %v2272
        %v2408 = vunpack.c.l.b16 %v2273
        %v2409 = vunpack.c.h.b16 %v2273
        %v2410 = vunpack.c.l.b16 %v2274
        %v2411 = vunpack.c.h.b16 %v2274
        %v2412 = vunpack.c.l.b16 %v2275
        %v2413 = vunpack.c.h.b16 %v2275
        %v2414 = vunpack.c.l.b16 %v2276
        %v2415 = vunpack.c.h.b16 %v2276
        %v2416 = vunpack.c.l.b16 %v2277
        %v2417 = vunpack.c.h.b16 %v2277
        %v2418 = vunpack.c.l.b16 %v2278
        %v2419 = vunpack.c.h.b16 %v2278
        %v2420 = vunpack.c.l.b16 %v2279
        %v2421 = vunpack.c.h.b16 %v2279
        %v2422 = vunpack.c.l.b16 %v2280
        %v2423 = vunpack.c.h.b16 %v2280
        %v2424 = vunpack.c.l.b16 %v2281
        %v2425 = vunpack.c.h.b16 %v2281
        %v2426 = vunpack.c.l.b16 %v2282
        %v2427 = vunpack.c.h.b16 %v2282
        %v2428 = vunpack.c.l.b16 %v2283
        %v2429 = vunpack.c.h.b16 %v2283
        %v2430 = vunpack.c.l.b16 %v2284
        %v2431 = vunpack.c.h.b16 %v2284
        %v2432 = vunpack.c.l.b16 %v2285
        %v2433 = vunpack.c.h.b16 %v2285
        %v2434 = vunpack.c.l.b16 %v2286
        %v2435 = vunpack.c.h.b16 %v2286
        %v2436 = vunpack.c.l.b16 %v2287
        %v2437 = vunpack.c.h.b16 %v2287
        %v2438 = vunpack.c.l.b16 %v2288
        %v2439 = vunpack.c.h.b16 %v2288
        %v2440 = vunpack.c.l.b16 %v2289
        %v2441 = vunpack.c.h.b16 %v2289
        %v2442 = vunpack.c.l.b16 %v2290
        %v2443 = vunpack.c.h.b16 %v2290
        %v2444 = vunpack.c.l.b16 %v2291
        %v2445 = vunpack.c.h.b16 %v2291
        %v2446 = vunpack.c.l.b16 %v2292
        %v2447 = vunpack.c.h.b16 %v2292
        %v2448 = vunpack.c.l.b16 %v2293
        %v2449 = vunpack.c.h.b16 %v2293
        %v2450 = vunpack.c.l.b16 %v2294
        %v2451 = vunpack.c.h.b16 %v2294
        %v2452 = vunpack.c.l.b16 %v2295
        %v2453 = vunpack.c.h.b16 %v2295
        %v2454 = vunpack.c.l.b16 %v2296
        %v2455 = vunpack.c.h.b16 %v2296
        %v2456 = vunpack.c.l.b16 %v2297
        %v2457 = vunpack.c.h.b16 %v2297
        %v2458 = vunpack.c.l.b16 %v2298
        %v2459 = vunpack.c.h.b16 %v2298
        %v2460 = vunpack.c.l.b16 %v2299
        %v2461 = vunpack.c.h.b16 %v2299
        %v2462 = vunpack.c.l.b16 %v2300
        %v2463 = vunpack.c.h.b16 %v2300
        %v2464 = vunpack.c.l.b16 %v2301
        %v2465 = vunpack.c.h.b16 %v2301
        %v2466 = vunpack.c.l.b16 %v2302
        %v2467 = vunpack.c.h.b16 %v2302
        %v2468 = vunpack.c.l.b16 %v2303
        %v2469 = vunpack.c.h.b16 %v2303
        %v2470 = vunpack.c.l.b16 %v2304
        %v2471 = vunpack.c.h.b16 %v2304
        %v2472 = vunpack.c.l.b16 %v2305
        %v2473 = vunpack.c.h.b16 %v2305
        %v2474 = vunpack.c.l.b16 %v2306
        %v2475 = vunpack.c.h.b16 %v2306
        %v2476 = vunpack.c.l.b16 %v2307
        %v2477 = vunpack.c.h.b16 %v2307
        %v2478 = vunpack.c.l.b16 %v2308
        %v2479 = vunpack.c.h.b16 %v2308
        %v2480 = vunpack.c.l.b16 %v2309
        %v2481 = vunpack.c.h.b16 %v2309
        %v2482 = vunpack.c.l.b16 %v2310
        %v2483 = vunpack.c.h.b16 %v2310
        %v2484 = vunpack.c.l.b16 %v2311
        %v2485 = vunpack.c.h.b16 %v2311
        %v2486 = vunpack.c.l.b16 %v2312
        %v2487 = vunpack.c.h.b16 %v2312
        %v2488 = vunpack.c.l.b16 %v2313
        %v2489 = vunpack.c.h.b16 %v2313
        %v2490 = vunpack.c.l.b16 %v2314
        %v2491 = vunpack.c.h.b16 %v2314
        %v2492 = vunpack.c.l.b16 %v2315
        %v2493 = vunpack.c.h.b16 %v2315
        %v2494 = vunpack.c.l.b16 %v2316
        %v2495 = vunpack.c.h.b16 %v2316
        %v2496 = vunpack.c.l.b16 %v2317
        %v2497 = vunpack.c.h.b16 %v2317
        %v2498 = vunpack.c.l.b16 %v2318
        %v2499 = vunpack.c.h.b16 %v2318
        %v2500 = vunpack.c.l.b16 %v2319
        %v2501 = vunpack.c.h.b16 %v2319
        %v2502 = vunpack.c.l.b16 %v2320
        %v2503 = vunpack.c.h.b16 %v2320
        %v2504 = vunpack.c.l.b16 %v2321
        %v2505 = vunpack.c.h.b16 %v2321
        %v2506 = vunpack.c.l.b16 %v2322
        %v2507 = vunpack.c.h.b16 %v2322
        %v2508 = vunpack.c.l.b16 %v2323
        %v2509 = vunpack.c.h.b16 %v2323
        %v2510 = vunpack.c.l.b16 %v2324
        %v2511 = vunpack.c.h.b16 %v2324
        %v2512 = vunpack.c.l.b16 %v2325
        %v2513 = vunpack.c.h.b16 %v2325
        %v2514 = vunpack.c.l.b16 %v2326
        %v2515 = vunpack.c.h.b16 %v2326
        %v2516 = vunpack.c.l.b16 %v2327
        %v2517 = vunpack.c.h.b16 %v2327
        %v2518 = vunpack.c.l.b16 %v2328
        %v2519 = vunpack.c.h.b16 %v2328
        %v2520 = vunpack.c.l.b16 %v2329
        %v2521 = vunpack.c.h.b16 %v2329
        %v2522 = vpack.c.b16 %v2396, %v2394
        %v2523 = vpack.c.b16 %v2397, %v2395
        %v2524 = vpack.c.b16 %v2400, %v2398
        %v2525 = vpack.c.b16 %v2401, %v2399
        %v2526 = vpack.c.b16 %v2404, %v2402
        %v2527 = vpack.c.b16 %v2405, %v2403
        %v2528 = vpack.c.b16 %v2408, %v2406
        %v2529 = vpack.c.b16 %v2409, %v2407
        %v2530 = vpack.c.b16 %v2412, %v2410
        %v2531 = vpack.c.b16 %v2413, %v2411
        %v2532 = vpack.c.b16 %v2416, %v2414
        %v2533 = vpack.c.b16 %v2417, %v2415
        %v2534 = vpack.c.b16 %v2420, %v2418
        %v2535 = vpack.c.b16 %v2421, %v2419
        %v2536 = vpack.c.b16 %v2424, %v2422
        %v2537 = vpack.c.b16 %v2425, %v2423
        %v2538 = vpack.c.b16 %v2428, %v2426
        %v2539 = vpack.c.b16 %v2429, %v2427
        %v2540 = vpack.c.b16 %v2432, %v2430
        %v2541 = vpack.c.b16 %v2433, %v2431
        %v2542 = vpack.c.b16 %v2436, %v2434
        %v2543 = vpack.c.b16 %v2437, %v2435
        %v2544 = vpack.c.b16 %v2440, %v2438
        %v2545 = vpack.c.b16 %v2441, %v2439
        %v2546 = vpack.c.b16 %v2444, %v2442
        %v2547 = vpack.c.b16 %v2445, %v2443
        %v2548 = vpack.c.b16 %v2448, %v2446
        %v2549 = vpack.c.b16 %v2449, %v2447
        %v2550 = vpack.c.b16 %v2452, %v2450
        %v2551 = vpack.c.b16 %v2453, %v2451
        %v2552 = vpack.c.b16 %v2456, %v2454
        %v2553 = vpack.c.b16 %v2457, %v2455
        %v2554 = vpack.c.b16 %v2460, %v2458
        %v2555 = vpack.c.b16 %v2461, %v2459
        %v2556 = vpack.c.b16 %v2464, %v2462
        %v2557 = vpack.c.b16 %v2465, %v2463
        %v2558 = vpack.c.b16 %v2468, %v2466
        %v2559 = vpack.c.b16 %v2469, %v2467
        %v2560 = vpack.c.b16 %v2472, %v2470
        %v2561 = vpack.c.b16 %v2473, %v2471
        %v2562 = vpack.c.b16 %v2476, %v2474
        %v2563 = vpack.c.b16 %v2477, %v2475
        %v2564 = vpack.c.b16 %v2480, %v2478
        %v2565 = vpack.c.b16 %v2481, %v2479
        %v2566 = vpack.c.b16 %v2484, %v2482
        %v2567 = vpack.c.b16 %v2485, %v2483
        %v2568 = vpack.c.b16 %v2488, %v2486
        %v2569 = vpack.c.b16 %v2489, %v2487
        %v2570 = vpack.c.b16 %v2492, %v2490
        %v2571 = vpack.c.b16 %v2493, %v2491
        %v2572 = vpack.c.b16 %v2496, %v2494
        %v2573 = vpack.c.b16 %v2497, %v2495
        %v2574 = vpack.c.b16 %v2500, %v2498
        %v2575 = vpack.c.b16 %v2501, %v2499
        %v2576 = vpack.c.b16 %v2504, %v2502
        %v2577 = vpack.c.b16 %v2505, %v2503
        %v2578 = vpack.c.b16 %v2508, %v2506
        %v2579 = vpack.c.b16 %v2509, %v2507
        %v2580 = vpack.c.b16 %v2512, %v2510
        %v2581 = vpack.c.b16 %v2513, %v2511
        %v2582 = vpack.c.b16 %v2516, %v2514
        %v2583 = vpack.c.b16 %v2517, %v2515
        %v2584 = vpack.c.b16 %v2520, %v2518
        %v2585 = vpack.c.b16 %v2521, %v2519
        %2650 = vmatpush.bf16.msra.mxu0 %v2536
        %2651 = vmatpush.bf16.msra.mxu0 %v2534
        %2652 = vmatpush.bf16.msra.mxu0 %v2532
        %2653 = vmatpush.bf16.msra.mxu0 %v2530
        %2654 = vmatpush.bf16.msra.mxu0 %v2528
        %2655 = vmatpush.bf16.msra.mxu0 %v2526
        %2656 = vmatpush.bf16.msra.mxu0 %v2524
        %2657 = vmatpush.bf16.msra.mxu0 %v2522
        %2658 = vmatmul.bf16.gmra.mxu0 %v1178
        %v2659 = vpop.f32.mrf.mxu0
        %v2660 = vadd.f32 0.0, %v2659
        %v2661 = vpop.f32.mrf.mxu0
        %v2662 = vadd.f32 0.0, %v2661
        %2663 = vdwg.mxu0
        %2664 = vmatpush.bf16.msra.mxu0 %v2552
        %2665 = vmatpush.bf16.msra.mxu0 %v2550
        %2666 = vmatpush.bf16.msra.mxu0 %v2548
        %2667 = vmatpush.bf16.msra.mxu0 %v2546
        %2668 = vmatpush.bf16.msra.mxu0 %v2544
        %2669 = vmatpush.bf16.msra.mxu0 %v2542
        %2670 = vmatpush.bf16.msra.mxu0 %v2540
        %2671 = vmatpush.bf16.msra.mxu0 %v2538
        %2672 = vmatmul.bf16.gmra.mxu0 %v1179
        %v2673 = vpop.f32.mrf.mxu0
        %v2674 = vadd.f32 %v2660, %v2673
        %v2675 = vpop.f32.mrf.mxu0
        %v2676 = vadd.f32 %v2662, %v2675
        %2677 = vdwg.mxu0
        %2678 = vmatpush.bf16.msra.mxu0 %v2568
        %2679 = vmatpush.bf16.msra.mxu0 %v2566
        %2680 = vmatpush.bf16.msra.mxu0 %v2564
        %2681 = vmatpush.bf16.msra.mxu0 %v2562
        %2682 = vmatpush.bf16.msra.mxu0 %v2560
        %2683 = vmatpush.bf16.msra.mxu0 %v2558
        %2684 = vmatpush.bf16.msra.mxu0 %v2556
        %2685 = vmatpush.bf16.msra.mxu0 %v2554
        %2686 = vmatmul.bf16.gmra.mxu0 %v1180
        %v2687 = vpop.f32.mrf.mxu0
        %v2688 = vadd.f32 %v2674, %v2687
        %v2689 = vpop.f32.mrf.mxu0
        %v2690 = vadd.f32 %v2676, %v2689
        %2691 = vdwg.mxu0
        %2692 = vmatpush.bf16.msra.mxu0 %v2584
        %2693 = vmatpush.bf16.msra.mxu0 %v2582
        %2694 = vmatpush.bf16.msra.mxu0 %v2580
        %2695 = vmatpush.bf16.msra.mxu0 %v2578
        %2696 = vmatpush.bf16.msra.mxu0 %v2576
        %2697 = vmatpush.bf16.msra.mxu0 %v2574
        %2698 = vmatpush.bf16.msra.mxu0 %v2572
        %2699 = vmatpush.bf16.msra.mxu0 %v2570
        %2700 = vmatmul.bf16.gmra.mxu0 %v1181
        %v2701 = vpop.f32.mrf.mxu0
        %v2702 = vadd.f32 %v2688, %v2701
        %v2703 = vpop.f32.mrf.mxu0
        %v2704 = vadd.f32 %v2690, %v2703
        %2705 = vdwg.mxu0
        %2706 = vmatpush.bf16.msra.mxu0 %v2537
        %2707 = vmatpush.bf16.msra.mxu0 %v2535
        %2708 = vmatpush.bf16.msra.mxu0 %v2533
        %2709 = vmatpush.bf16.msra.mxu0 %v2531
        %2710 = vmatpush.bf16.msra.mxu0 %v2529
        %2711 = vmatpush.bf16.msra.mxu0 %v2527
        %2712 = vmatpush.bf16.msra.mxu0 %v2525
        %2713 = vmatpush.bf16.msra.mxu0 %v2523
        %2714 = vmatmul.bf16.gmra.mxu0 %v1178
        %v2715 = vpop.f32.mrf.mxu0
        %v2716 = vadd.f32 0.0, %v2715
        %v2717 = vpop.f32.mrf.mxu0
        %v2718 = vadd.f32 0.0, %v2717
        %2719 = vdwg.mxu0
        %2720 = vmatpush.bf16.msra.mxu0 %v2553
        %2721 = vmatpush.bf16.msra.mxu0 %v2551
        %2722 = vmatpush.bf16.msra.mxu0 %v2549
        %2723 = vmatpush.bf16.msra.mxu0 %v2547
        %2724 = vmatpush.bf16.msra.mxu0 %v2545
        %2725 = vmatpush.bf16.msra.mxu0 %v2543
        %2726 = vmatpush.bf16.msra.mxu0 %v2541
        %2727 = vmatpush.bf16.msra.mxu0 %v2539
        %2728 = vmatmul.bf16.gmra.mxu0 %v1179
        %v2729 = vpop.f32.mrf.mxu0
        %v2730 = vadd.f32 %v2716, %v2729
        %v2731 = vpop.f32.mrf.mxu0
        %v2732 = vadd.f32 %v2718, %v2731
        %2733 = vdwg.mxu0
        %2734 = vmatpush.bf16.msra.mxu0 %v2569
        %2735 = vmatpush.bf16.msra.mxu0 %v2567
        %2736 = vmatpush.bf16.msra.mxu0 %v2565
        %2737 = vmatpush.bf16.msra.mxu0 %v2563
        %2738 = vmatpush.bf16.msra.mxu0 %v2561
        %2739 = vmatpush.bf16.msra.mxu0 %v2559
        %2740 = vmatpush.bf16.msra.mxu0 %v2557
        %2741 = vmatpush.bf16.msra.mxu0 %v2555
        %2742 = vmatmul.bf16.gmra.mxu0 %v1180
        %v2743 = vpop.f32.mrf.mxu0
        %v2744 = vadd.f32 %v2730, %v2743
        %v2745 = vpop.f32.mrf.mxu0
        %v2746 = vadd.f32 %v2732, %v2745
        %2747 = vdwg.mxu0
        %2748 = vmatpush.bf16.msra.mxu0 %v2585
        %2749 = vmatpush.bf16.msra.mxu0 %v2583
        %2750 = vmatpush.bf16.msra.mxu0 %v2581
        %2751 = vmatpush.bf16.msra.mxu0 %v2579
        %2752 = vmatpush.bf16.msra.mxu0 %v2577
        %2753 = vmatpush.bf16.msra.mxu0 %v2575
        %2754 = vmatpush.bf16.msra.mxu0 %v2573
        %2755 = vmatpush.bf16.msra.mxu0 %v2571
        %2756 = vmatmul.bf16.gmra.mxu0 %v1181
        %v2757 = vpop.f32.mrf.mxu0
        %v2758 = vadd.f32 %v2744, %v2757
        %v2759 = vpop.f32.mrf.mxu0
        %v2760 = vadd.f32 %v2746, %v2759
        %2761 = vdwg.mxu0
        %s2762 = scalar_lea.vmem %s1, 64
        %v2763 = vld [vmem:[%s2762] sm:$0xff]
        %v2764 = vld [vmem:[%s2762 + $0x8] sm:$0xff]
        %v2765 = vld [vmem:[%s2762 + $0x10] sm:$0xff]
        %v2766 = vld [vmem:[%s2762 + $0x18] sm:$0xff]
        %v2768 = vsel %vm2124, %v2763, 0
        %v2771 = vsel %vm2124, %v2764, 0
        %v2774 = vsel %vm2124, %v2765, 0
        %v2777 = vsel %vm2124, %v2766, 0
        %2779 = vmatpush.msra.mxu0 0.0
        %2780 = vmatpush.msra.mxu0 0.0
        %2781 = vmatpush.msra.mxu0 0.0
        %2782 = vmatpush.msra.mxu0 0.0
        %2783 = vmatpush.msra.mxu0 0.0
        %2784 = vmatpush.msra.mxu0 0.0
        %2785 = vmatpush.msra.mxu0 0.0
        %2786 = vmatpush.msra.mxu0 0.0
        %2787 = vmatpush.msra.mxu0 0.0
        %2788 = vmatpush.msra.mxu0 0.0
        %2789 = vmatpush.msra.mxu0 0.0
        %2790 = vmatpush.msra.mxu0 0.0
        %2791 = vmatpush.msra.mxu0 0.0
        %2792 = vmatpush.msra.mxu0 0.0
        %2793 = vmatpush.msra.mxu0 %v2704
        %2794 = vmatpush.msra.mxu0 %v2702
        %2795 = vmatmul.f32.gmra.mxu0 %v2768
        %v2796 = vpop.f32.mrf.mxu0
        %v2797 = vadd.f32 0.0, %v2796
        %2798 = vmatmul.f32.gmra.mxu0 %v2771
        %v2799 = vpop.f32.mrf.mxu0
        %v2800 = vadd.f32 0.0, %v2799
        %2801 = vmatmul.f32.gmra.mxu0 %v2774
        %v2802 = vpop.f32.mrf.mxu0
        %v2803 = vadd.f32 0.0, %v2802
        %2804 = vmatmul.f32.gmra.mxu0 %v2777
        %v2805 = vpop.f32.mrf.mxu0
        %v2806 = vadd.f32 0.0, %v2805
        %2807 = vdwg.mxu0
        %2808 = vmatpush.msra.mxu0 0.0
        %2809 = vmatpush.msra.mxu0 0.0
        %2810 = vmatpush.msra.mxu0 0.0
        %2811 = vmatpush.msra.mxu0 0.0
        %2812 = vmatpush.msra.mxu0 0.0
        %2813 = vmatpush.msra.mxu0 0.0
        %2814 = vmatpush.msra.mxu0 0.0
        %2815 = vmatpush.msra.mxu0 0.0
        %2816 = vmatpush.msra.mxu0 0.0
        %2817 = vmatpush.msra.mxu0 0.0
        %2818 = vmatpush.msra.mxu0 0.0
        %2819 = vmatpush.msra.mxu0 0.0
        %2820 = vmatpush.msra.mxu0 0.0
        %2821 = vmatpush.msra.mxu0 0.0
        %2822 = vmatpush.msra.mxu0 %v2760
        %2823 = vmatpush.msra.mxu0 %v2758
        %2824 = vmatmul.f32.gmra.mxu0 %v2768
        %v2825 = vpop.f32.mrf.mxu0
        %v2826 = vadd.f32 0.0, %v2825
        %2827 = vmatmul.f32.gmra.mxu0 %v2771
        %v2828 = vpop.f32.mrf.mxu0
        %v2829 = vadd.f32 0.0, %v2828
        %2830 = vmatmul.f32.gmra.mxu0 %v2774
        %v2831 = vpop.f32.mrf.mxu0
        %v2832 = vadd.f32 0.0, %v2831
        %2833 = vmatmul.f32.gmra.mxu0 %v2777
        %v2834 = vpop.f32.mrf.mxu0
        %v2835 = vadd.f32 0.0, %v2834
        %2836 = vdwg.mxu0
        %v2837 = vadd.f32 %v2225, %v2797
        %v2838 = vadd.f32 %v2254, %v2826
        %v2839 = vadd.f32 %v2228, %v2800
        %v2840 = vadd.f32 %v2257, %v2829
        %v2841 = vadd.f32 %v2231, %v2803
        %v2842 = vadd.f32 %v2260, %v2832
        %v2843 = vadd.f32 %v2234, %v2806
        %v2844 = vadd.f32 %v2263, %v2835
        %2845 = vst [vmem:[%s1052] sm:$0xff] %v2837
        %2846 = vst [vmem:[%s1052 + $0x8] sm:$0xff] %v2838
        %2847 = vst [vmem:[%s1052 + $0x10] sm:$0xff] %v2839
        %2848 = vst [vmem:[%s1052 + $0x18] sm:$0xff] %v2840
        %2849 = vst [vmem:[%s1052 + $0x20] sm:$0xff] %v2841
        %2850 = vst [vmem:[%s1052 + $0x28] sm:$0xff] %v2842
        %2851 = vst [vmem:[%s1052 + $0x30] sm:$0xff] %v2843
        %2852 = vst [vmem:[%s1052 + $0x38] sm:$0xff] %v2844
        %v2853 = vadd.f32 %v2837, %v2839
        %v2854 = vadd.f32 %v2853, %v2841
        %v2855 = vadd.f32 %v2854, %v2843
        %v2856 = vrot.slane %v2855, 4
        %v2857 = vadd.f32 %v2855, %v2856
        %v2858 = vrot.slane %v2857, 2
        %v2859 = vadd.f32 %v2857, %v2858
        %v2860 = vrot.slane %v2859, 1
        %v2861 = vadd.f32 %v2859, %v2860
        %v2862 = vadd.f32 %v2838, %v2840
        %v2863 = vadd.f32 %v2862, %v2842
        %v2864 = vadd.f32 %v2863, %v2844
        %v2865 = vrot.slane %v2864, 4
        %v2866 = vadd.f32 %v2864, %v2865
        %v2867 = vrot.slane %v2866, 2
        %v2868 = vadd.f32 %v2866, %v2867
        %v2869 = vrot.slane %v2868, 1
        %v2870 = vadd.f32 %v2868, %v2869
        %v2873 = vrot.slane %v2870, 7
        %vm2874 = vcmask 1040384
        %v2875 = vsel %vm2874, %v2861, %v2873
        %v2877 = vlaneseq
        %vm2878 = vcmp.ge.s32.totalorder %v2877, 0
        %vm2879 = vcmp.lt.s32.totalorder %v2877, 256
        %vm2880 = vmand %vm2878, %vm2879
        %2881 = vst.msk [vmem:[%s1087] sm:$0x3] %vm2880, %v2875
        %v2882 = vmul.f32 %v2837, %v2837
        %v2883 = vmul.f32 %v2838, %v2838
        %v2884 = vmul.f32 %v2839, %v2839
        %v2885 = vmul.f32 %v2840, %v2840
        %v2886 = vmul.f32 %v2841, %v2841
        %v2887 = vmul.f32 %v2842, %v2842
        %v2888 = vmul.f32 %v2843, %v2843
        %v2889 = vmul.f32 %v2844, %v2844
        %v2890 = vadd.f32 %v2882, %v2884
        %v2891 = vadd.f32 %v2890, %v2886
        %v2892 = vadd.f32 %v2891, %v2888
        %v2893 = vrot.slane %v2892, 4
        %v2894 = vadd.f32 %v2892, %v2893
        %v2895 = vrot.slane %v2894, 2
        %v2896 = vadd.f32 %v2894, %v2895
        %v2897 = vrot.slane %v2896, 1
        %v2898 = vadd.f32 %v2896, %v2897
        %v2899 = vadd.f32 %v2883, %v2885
        %v2900 = vadd.f32 %v2899, %v2887
        %v2901 = vadd.f32 %v2900, %v2889
        %v2902 = vrot.slane %v2901, 4
        %v2903 = vadd.f32 %v2901, %v2902
        %v2904 = vrot.slane %v2903, 2
        %v2905 = vadd.f32 %v2903, %v2904
        %v2906 = vrot.slane %v2905, 1
        %v2907 = vadd.f32 %v2905, %v2906
        %v2910 = vrot.slane %v2907, 7
        %v2911 = vsel %vm2874, %v2898, %v2910
        %2913 = vst.msk [vmem:[%s1096] sm:$0x3] %vm2880, %v2911
        %s2914 = sand.u32 %s112, 1
        %s2915 = sand.u32 %s112, 1
        %s2916 = smul.addr %s2915, 64
        %s2917 = scalar_lea.vmem [#allocation3], %s2916
        %s2918 = smul.u32 2, %s21
        %p2919 = scmp.lt.s32.totalorder %s22, 1
        %s2920 = scalar_select %p2919, %s22, 1
        %p2921 = scmp.lt.s32.totalorder %s2918, 3
        %s2922 = scalar_select %p2921, %s2918, 3
        %s2923 = smul.addr %s2920, 4
        %s2924 = sadd.s32 %s2922, %s2923
        %s2925 = scalar_lea.vmem %s4, %s2924
        %s2926 = smul.u32 2, %s21
        %p2927 = scmp.lt.s32.totalorder %s22, 1
        %s2928 = scalar_select %p2927, %s22, 1
        %p2929 = scmp.lt.s32.totalorder %s2926, 3
        %s2930 = scalar_select %p2929, %s2926, 3
        %s2931 = smul.addr %s2928, 4
        %s2932 = sadd.s32 %s2930, %s2931
        %s2933 = scalar_lea.vmem %s5, %s2932
        // Predicated region
        $region71: #{upsample_block_forward.2} parent=65 // pred_check
          %p2934 = pneg %p122
        $region72: #{upsample_block_forward.2} parent=65 // pred_check_branch
          %2936 = sbr.rel (%p2934) target = $region74
        $region73: #{upsample_block_forward.2} parent=65 // pred_region
          %s2937 = smul.u32 2, %s21
          %s2938 = smul.addr %s22, 16
          %s2939 = sadd.s32 %s2937, %s2938
          %s2940 = smul.addr %s2939, 8
          %s2941 = scalar_lea.vmem %s3, %s2940
          // Predicated region
          $region75: #{upsample_block_forward.2} parent=73 // pred_check
            _
          $region76: #{upsample_block_forward.2} parent=73 // pred_check_branch
            %2943 = sbr.rel (0) target = $region78
          $region77: #{upsample_block_forward.2} parent=73 // pred_region
            // Predicated region
            $region79: #{upsample_block_forward.2} parent=77 // pred_check
              _
            $region80: #{upsample_block_forward.2} parent=77 // pred_check_branch
              %2945 = sbr.rel (0) target = $region82
            $region81: #{upsample_block_forward.2} parent=77 // pred_region
              loop: start=0, step=1, limit=1
              $region83: #{upsample_block_forward.2} parent=81 // loop_pre_header
                _
              $region84: #{upsample_block_forward.2} parent=81 // loop_header
                %s2947 = sphi 0, %s2951
                %p2948 = scmp.ge.s32.totalorder %s2947, 1
                %s2952 = sphi %s2917, %s2917
                %s2953 = sphi %s2941, %s2941
              $region85: #{upsample_block_forward.2} parent=81 // loop_header_branch
                %2950 = sbr.rel (%p2948) target = $region89
              $region86: #{upsample_block_forward.2} parent=81 // loop_body
                %v2954 = vld [vmem:[%s2952] sm:$0xff]
                %2955 = vst [vmem:[%s2953] sm:$0xff] %v2954
                %v2956 = vld [vmem:[%s2952 + $0x8] sm:$0xff]
                %2957 = vst [vmem:[%s2953 + $0x8] sm:$0xff] %v2956
                %v2958 = vld [vmem:[%s2952 + $0x10] sm:$0xff]
                %2959 = vst [vmem:[%s2953 + $0x20] sm:$0xff] %v2958
                %v2960 = vld [vmem:[%s2952 + $0x18] sm:$0xff]
                %2961 = vst [vmem:[%s2953 + $0x28] sm:$0xff] %v2960
                %v2962 = vld [vmem:[%s2952 + $0x20] sm:$0xff]
                %2963 = vst [vmem:[%s2953 + $0x40] sm:$0xff] %v2962
                %v2964 = vld [vmem:[%s2952 + $0x28] sm:$0xff]
                %2965 = vst [vmem:[%s2953 + $0x48] sm:$0xff] %v2964
                %v2966 = vld [vmem:[%s2952 + $0x30] sm:$0xff]
                %2967 = vst [vmem:[%s2953 + $0x60] sm:$0xff] %v2966
                %v2968 = vld [vmem:[%s2952 + $0x38] sm:$0xff]
                %2969 = vst [vmem:[%s2953 + $0x68] sm:$0xff] %v2968
              $region87: #{upsample_block_forward.2} parent=81 // loop_footer
                %s2951 = sadd.s32 1, %s2947
              $region88: #{upsample_block_forward.2} parent=81 // loop_footer_branch
                %2946 = sbr.rel target = $region84
              $region89: #{upsample_block_forward.2} parent=81 // loop_exit
                _
            $region82: #{upsample_block_forward.2} parent=77 // pred_fallthru
              _
            // Predicated region
            $region90: #{upsample_block_forward.2} parent=77 // pred_check
              _
            $region91: #{upsample_block_forward.2} parent=77 // pred_check_branch
              %2971 = sbr.rel target = $region93
            $region92: #{upsample_block_forward.2} parent=77 // pred_region
              _
            $region93: #{upsample_block_forward.2} parent=77 // pred_fallthru
              _
          $region78: #{upsample_block_forward.2} parent=73 // pred_fallthru
            _
          %2972 = vnop
        $region74: #{upsample_block_forward.2} parent=65 // pred_fallthru
          _
        // Predicated region
        $region94: #{upsample_block_forward.2} parent=65 // pred_check
          %p2973 = pneg %p150
        $region95: #{upsample_block_forward.2} parent=65 // pred_check_branch
          %2975 = sbr.rel (%p2973) target = $region97
        $region96: #{upsample_block_forward.2} parent=65 // pred_region
          %s2976 = smul.u32 2, %s21
        $region97: #{upsample_block_forward.2} parent=65 // pred_fallthru
          _
        // Predicated region
        $region98: #{upsample_block_forward.2} parent=65 // pred_check
          %p2977 = pneg %p178
        $region99: #{upsample_block_forward.2} parent=65 // pred_check_branch
          %2979 = sbr.rel (%p2977) target = $region101
        $region100: #{upsample_block_forward.2} parent=65 // pred_region
          %s2980 = smul.u32 2, %s21
        $region101: #{upsample_block_forward.2} parent=65 // pred_fallthru
          _
      $region66: #{upsample_block_forward.2} parent=5 // pred_fallthru
        _
      %p2981 = scmp.le.s32.totalorder 2, %s12
      // Predicated region
      $region102: #{upsample_block_forward.2} parent=5 // pred_check
        %p2982 = pneg %p2981
      $region103: #{upsample_block_forward.2} parent=5 // pred_check_branch
        %2984 = sbr.rel (%p2982) target = $region105
      $region104: #{upsample_block_forward.2} parent=5 // pred_region
        %s2985 = ssub.s32 %s12, 2
        // Predicated region
        $region106: #{upsample_block_forward.2} parent=104 // pred_check
          %p2986 = pneg %p128
        $region107: #{upsample_block_forward.2} parent=104 // pred_check_branch
          %2988 = sbr.rel (%p2986) target = $region109
        $region108: #{upsample_block_forward.2} parent=104 // pred_region
          %s2989 = sand.u32 %s113, 1
          %s2990 = sand.u32 %s113, 1
          %s2991 = smul.addr %s2990, 64
          %s2992 = scalar_lea.vmem [#allocation3], %s2991
        $region109: #{upsample_block_forward.2} parent=104 // pred_fallthru
          _
        // Predicated region
        $region110: #{upsample_block_forward.2} parent=104 // pred_check
          %p2993 = pneg %p156
        $region111: #{upsample_block_forward.2} parent=104 // pred_check_branch
          %2995 = sbr.rel (%p2993) target = $region113
        $region112: #{upsample_block_forward.2} parent=104 // pred_region
          %s2996 = smul.u32 2, %s23
          %p2997 = scmp.lt.s32.totalorder %s24, 1
          %s2998 = scalar_select %p2997, %s24, 1
          %p2999 = scmp.lt.s32.totalorder %s2996, 3
          %s3000 = scalar_select %p2999, %s2996, 3
          %s3001 = smul.addr %s2998, 4
          %s3002 = sadd.s32 %s3000, %s3001
          %s3003 = scalar_lea.vmem %s4, %s3002
        $region113: #{upsample_block_forward.2} parent=104 // pred_fallthru
          _
        // Predicated region
        $region114: #{upsample_block_forward.2} parent=104 // pred_check
          %p3004 = pneg %p184
        $region115: #{upsample_block_forward.2} parent=104 // pred_check_branch
          %3006 = sbr.rel (%p3004) target = $region117
        $region116: #{upsample_block_forward.2} parent=104 // pred_region
          %s3007 = smul.u32 2, %s23
          %p3008 = scmp.lt.s32.totalorder %s24, 1
          %s3009 = scalar_select %p3008, %s24, 1
          %p3010 = scmp.lt.s32.totalorder %s3007, 3
          %s3011 = scalar_select %p3010, %s3007, 3
          %s3012 = smul.addr %s3009, 4
          %s3013 = sadd.s32 %s3011, %s3012
          %s3014 = scalar_lea.vmem %s5, %s3013
        $region117: #{upsample_block_forward.2} parent=104 // pred_fallthru
          _
      $region105: #{upsample_block_forward.2} parent=5 // pred_fallthru
        _
    $region6: #{upsample_block_forward.2} parent=1 // loop_footer
      %s16 = sadd.s32 1, %s12
    $region7: #{upsample_block_forward.2} parent=1 // loop_footer_branch
      %11 = sbr.rel target = $region3
    $region8: #{upsample_block_forward.2} parent=1 // loop_exit
      _

// kernel: upsample_block_forward.3
$region0: #{upsample_block_forward.3}
  #allocation0 [shape = 'u32[]', space=smem, size = 0x4, offset = 0x4, fixed_abs, tag = 'smem constant byte address 0x4 - core index']
  #allocation1 [shape = 'u32[72,128]{1,0:T(1,128)}', space=vmem, size = 0x9000, scoped, tag = 'internal scratch']
  %s0 = inlined_call_operand.vmem [shape: f32[64,512], index: 0, kind: input, shape index: {}]
  %s1 = inlined_call_operand.vmem [shape: f32[1,512], index: 1, kind: input, shape index: {}]
  %s2 = inlined_call_operand.vmem [shape: f32[1,512], index: 2, kind: input, shape index: {}]
  %s3 = inlined_call_operand.vmem [shape: f32[64,512], index: 3, kind: output, shape index: {}]
  %s4 = sld [smem:[#allocation0]]
  $region87: #{upsample_block_forward.3} parent=0
    _
  %s6 = ssub.s32 1, %s4
  %s7 = scalar_select 0, %s6, %s4
  $region1: #{upsample_block_forward.3} parent=0
    #allocation2 [shape = 'u8[131072]{0}', space=vmem, size = 0x20000, scoped, tag = 'input window, operand 0']
    #allocation3 [shape = 'u8[131072]{0}', space=vmem, size = 0x20000, scoped, tag = 'output window, operand 0']
    loop: start=0, step=1, limit=4
    $region2: #{upsample_block_forward.3} parent=1 // loop_pre_header
      _
    $region3: #{upsample_block_forward.3} parent=1 // loop_header
      %s9 = sphi 0, %s13
      %p10 = scmp.ge.s32.totalorder %s9, 4
      %s16 = sphi 0, %s28
      %s17 = sphi 0, %s24
      %s18 = sphi 0, %s16
      %s19 = sphi 0, %s17
      %s20 = sphi 0, %s18
      %s21 = sphi 0, %s19
      %s33 = sphi 0, %s35
      %s36 = sphi 0, %s33
      %s37 = sphi 0, %s36
      %s53 = sphi 0, %s37
      %s59 = sphi 0, %s61
      %s62 = sphi 0, %s59
      %s63 = sphi 0, %s62
      %s79 = sphi 0, %s63
      %s85 = sphi 0, %s87
      %s88 = sphi 0, %s85
      %s89 = sphi 0, %s88
      %s105 = sphi 0, %s89
      %s113 = sphi 0, %s115
      %s116 = sphi 0, %s113
      %s117 = sphi 0, %s116
      %s133 = sphi 0, %s117
    $region4: #{upsample_block_forward.3} parent=1 // loop_header_branch
      %12 = sbr.rel (%p10) target = $region8
    $region5: #{upsample_block_forward.3} parent=1 // loop_body
      %s14 = ssub.s32 %s9, 1
      %s15 = ssub.s32 %s9, 2
      %s22 = sadd.s32 1, %s17
      %p23 = scmp.ge.s32.totalorder %s22, 2
      %s24 = scalar_select %p23, 0, %s22
      %s25 = sadd.s32 1, %s16
      %s26 = scalar_select %p23, %s25, %s16
      %p27 = scmp.ge.s32.totalorder %s26, 1
      %s28 = scalar_select %p27, 0, %s26
      %s29 = ssub.s32 %s16, %s28
      %s30 = ssub.s32 %s17, %s24
      %s31 = sor.u32 %s29, %s30
      %p32 = scmp.eq.s32.totalorder %s31, 0
      %s34 = sadd.s32 %s33, 1
      %s35 = scalar_select %p32, %s33, %s34
      %p38 = pneg %p32
      %p39 = scmp.eq.s32.totalorder %s9, 1
      %p40 = por %p38, %p39
      %p41 = scmp.ne.s32.totalorder %s33, %s36
      %p42 = scmp.eq.s32.totalorder %s9, 0
      %p43 = por %p41, %p42
      %p44 = scmp.ne.s32.totalorder %s33, %s36
      %p45 = scmp.eq.s32.totalorder %s14, 1
      %p46 = por %p44, %p45
      %p47 = scmp.ne.s32.totalorder %s36, %s37
      %p48 = scmp.eq.s32.totalorder %s14, 0
      %p49 = por %p47, %p48
      %p50 = scmp.ne.s32.totalorder %s36, %s37
      %p51 = scmp.eq.s32.totalorder %s15, 1
      %p52 = por %p50, %p51
      %p54 = scmp.ne.s32.totalorder %s37, %s53
      %p55 = scmp.eq.s32.totalorder %s15, 0
      %p56 = por %p54, %p55
      %s57 = ssub.s32 %s17, %s24
      %p58 = scmp.eq.s32.totalorder %s57, 0
      %s60 = sadd.s32 %s59, 1
      %s61 = scalar_select %p58, %s59, %s60
      %p64 = pneg %p58
      %p65 = scmp.eq.s32.totalorder %s9, 1
      %p66 = por %p64, %p65
      %p67 = scmp.ne.s32.totalorder %s59, %s62
      %p68 = scmp.eq.s32.totalorder %s9, 0
      %p69 = por %p67, %p68
      %p70 = scmp.ne.s32.totalorder %s59, %s62
      %p71 = scmp.eq.s32.totalorder %s14, 1
      %p72 = por %p70, %p71
      %p73 = scmp.ne.s32.totalorder %s62, %s63
      %p74 = scmp.eq.s32.totalorder %s14, 0
      %p75 = por %p73, %p74
      %p76 = scmp.ne.s32.totalorder %s62, %s63
      %p77 = scmp.eq.s32.totalorder %s15, 1
      %p78 = por %p76, %p77
      %p80 = scmp.ne.s32.totalorder %s63, %s79
      %p81 = scmp.eq.s32.totalorder %s15, 0
      %p82 = por %p80, %p81
      %s83 = ssub.s32 %s17, %s24
      %p84 = scmp.eq.s32.totalorder %s83, 0
      %s86 = sadd.s32 %s85, 1
      %s87 = scalar_select %p84, %s85, %s86
      %p90 = pneg %p84
      %p91 = scmp.eq.s32.totalorder %s9, 1
      %p92 = por %p90, %p91
      %p93 = scmp.ne.s32.totalorder %s85, %s88
      %p94 = scmp.eq.s32.totalorder %s9, 0
      %p95 = por %p93, %p94
      %p96 = scmp.ne.s32.totalorder %s85, %s88
      %p97 = scmp.eq.s32.totalorder %s14, 1
      %p98 = por %p96, %p97
      %p99 = scmp.ne.s32.totalorder %s88, %s89
      %p100 = scmp.eq.s32.totalorder %s14, 0
      %p101 = por %p99, %p100
      %p102 = scmp.ne.s32.totalorder %s88, %s89
      %p103 = scmp.eq.s32.totalorder %s15, 1
      %p104 = por %p102, %p103
      %p106 = scmp.ne.s32.totalorder %s89, %s105
      %p107 = scmp.eq.s32.totalorder %s15, 0
      %p108 = por %p106, %p107
      %s109 = ssub.s32 %s16, %s28
      %s110 = ssub.s32 %s17, %s24
      %s111 = sor.u32 %s109, %s110
      %p112 = scmp.eq.s32.totalorder %s111, 0
      %s114 = sadd.s32 %s113, 1
      %s115 = scalar_select %p112, %s113, %s114
      %p118 = pneg %p112
      %p119 = scmp.eq.s32.totalorder %s9, 1
      %p120 = por %p118, %p119
      %p121 = scmp.ne.s32.totalorder %s113, %s116
      %p122 = scmp.eq.s32.totalorder %s9, 0
      %p123 = por %p121, %p122
      %p124 = scmp.ne.s32.totalorder %s113, %s116
      %p125 = scmp.eq.s32.totalorder %s14, 1
      %p126 = por %p124, %p125
      %p127 = scmp.ne.s32.totalorder %s116, %s117
      %p128 = scmp.eq.s32.totalorder %s14, 0
      %p129 = por %p127, %p128
      %p130 = scmp.ne.s32.totalorder %s116, %s117
      %p131 = scmp.eq.s32.totalorder %s15, 1
      %p132 = por %p130, %p131
      %p134 = scmp.ne.s32.totalorder %s117, %s133
      %p135 = scmp.eq.s32.totalorder %s15, 0
      %p136 = por %p134, %p135
      %p137 = scmp.le.s32.totalorder 1, %s9
      %p138 = scmp.lt.s32.totalorder %s9, 3
      %p139 = pnand %p137, %p138
      %p140 = pneg %p139
      // Predicated region
      $region9: #{upsample_block_forward.3} parent=5 // pred_check
        _
      $region10: #{upsample_block_forward.3} parent=5 // pred_check_branch
        %142 = sbr.rel (%p139) target = $region12
      $region11: #{upsample_block_forward.3} parent=5 // pred_region
        %s143 = ssub.s32 %s9, 1
      $region12: #{upsample_block_forward.3} parent=5 // pred_fallthru
        _
      %p144 = scmp.lt.s32.totalorder %s9, 2
      // Predicated region
      $region13: #{upsample_block_forward.3} parent=5 // pred_check
        %p145 = pneg %p144
      $region14: #{upsample_block_forward.3} parent=5 // pred_check_branch
        %147 = sbr.rel (%p145) target = $region16
      $region15: #{upsample_block_forward.3} parent=5 // pred_region
        // Predicated region
        $region17: #{upsample_block_forward.3} parent=15 // pred_check
          %p148 = pneg %p43
        $region18: #{upsample_block_forward.3} parent=15 // pred_check_branch
          %150 = sbr.rel (%p148) target = $region20
        $region19: #{upsample_block_forward.3} parent=15 // pred_region
          %s151 = sand.u32 %s33, 1
          %s152 = sand.u32 %s33, 1
          %s153 = smul.addr %s152, 128
          %s154 = scalar_lea.vmem [#allocation2], %s153
          %s155 = smul.u32 8, %s16
          %s156 = smul.u32 2, %s17
          %s157 = smul.addr %s155, 4
          %s158 = sadd.s32 %s156, %s157
          %s159 = smul.addr %s158, 8
          %s160 = scalar_lea.vmem %s0, %s159
          // Predicated region
          $region21: #{upsample_block_forward.3} parent=19 // pred_check
            _
          $region22: #{upsample_block_forward.3} parent=19 // pred_check_branch
            %162 = sbr.rel (0) target = $region24
          $region23: #{upsample_block_forward.3} parent=19 // pred_region
            // Predicated region
            $region25: #{upsample_block_forward.3} parent=23 // pred_check
              _
            $region26: #{upsample_block_forward.3} parent=23 // pred_check_branch
              %164 = sbr.rel (0) target = $region28
            $region27: #{upsample_block_forward.3} parent=23 // pred_region
              loop: start=0, step=1, limit=1
              $region29: #{upsample_block_forward.3} parent=27 // loop_pre_header
                _
              $region30: #{upsample_block_forward.3} parent=27 // loop_header
                %s166 = sphi 0, %s170
                %p167 = scmp.ge.s32.totalorder %s166, 1
                %s171 = sphi %s160, %s160
                %s172 = sphi %s154, %s154
              $region31: #{upsample_block_forward.3} parent=27 // loop_header_branch
                %169 = sbr.rel (%p167) target = $region35
              $region32: #{upsample_block_forward.3} parent=27 // loop_body
                %v173 = vld [vmem:[%s171] sm:$0xff]
                %174 = vst [vmem:[%s172] sm:$0xff] %v173
                %v175 = vld [vmem:[%s171 + $0x8] sm:$0xff]
                %176 = vst [vmem:[%s172 + $0x8] sm:$0xff] %v175
                %v177 = vld [vmem:[%s171 + $0x20] sm:$0xff]
                %178 = vst [vmem:[%s172 + $0x10] sm:$0xff] %v177
                %v179 = vld [vmem:[%s171 + $0x28] sm:$0xff]
                %180 = vst [vmem:[%s172 + $0x18] sm:$0xff] %v179
                %v181 = vld [vmem:[%s171 + $0x40] sm:$0xff]
                %182 = vst [vmem:[%s172 + $0x20] sm:$0xff] %v181
                %v183 = vld [vmem:[%s171 + $0x48] sm:$0xff]
                %184 = vst [vmem:[%s172 + $0x28] sm:$0xff] %v183
                %v185 = vld [vmem:[%s171 + $0x60] sm:$0xff]
                %186 = vst [vmem:[%s172 + $0x30] sm:$0xff] %v185
                %v187 = vld [vmem:[%s171 + $0x68] sm:$0xff]
                %188 = vst [vmem:[%s172 + $0x38] sm:$0xff] %v187
                %v189 = vld [vmem:[%s171 + $0x80] sm:$0xff]
                %190 = vst [vmem:[%s172 + $0x40] sm:$0xff] %v189
                %v191 = vld [vmem:[%s171 + $0x88] sm:$0xff]
                %192 = vst [vmem:[%s172 + $0x48] sm:$0xff] %v191
                %v193 = vld [vmem:[%s171 + $0xa0] sm:$0xff]
                %194 = vst [vmem:[%s172 + $0x50] sm:$0xff] %v193
                %v195 = vld [vmem:[%s171 + $0xa8] sm:$0xff]
                %196 = vst [vmem:[%s172 + $0x58] sm:$0xff] %v195
                %v197 = vld [vmem:[%s171 + $0xc0] sm:$0xff]
                %198 = vst [vmem:[%s172 + $0x60] sm:$0xff] %v197
                %v199 = vld [vmem:[%s171 + $0xc8] sm:$0xff]
                %200 = vst [vmem:[%s172 + $0x68] sm:$0xff] %v199
                %v201 = vld [vmem:[%s171 + $0xe0] sm:$0xff]
                %202 = vst [vmem:[%s172 + $0x70] sm:$0xff] %v201
                %v203 = vld [vmem:[%s171 + $0xe8] sm:$0xff]
                %204 = vst [vmem:[%s172 + $0x78] sm:$0xff] %v203
              $region33: #{upsample_block_forward.3} parent=27 // loop_footer
                %s170 = sadd.s32 1, %s166
              $region34: #{upsample_block_forward.3} parent=27 // loop_footer_branch
                %165 = sbr.rel target = $region30
              $region35: #{upsample_block_forward.3} parent=27 // loop_exit
                _
            $region28: #{upsample_block_forward.3} parent=23 // pred_fallthru
              _
            // Predicated region
            $region36: #{upsample_block_forward.3} parent=23 // pred_check
              _
            $region37: #{upsample_block_forward.3} parent=23 // pred_check_branch
              %206 = sbr.rel target = $region39
            $region38: #{upsample_block_forward.3} parent=23 // pred_region
              _
            $region39: #{upsample_block_forward.3} parent=23 // pred_fallthru
              _
          $region24: #{upsample_block_forward.3} parent=19 // pred_fallthru
            _
          %207 = vnop
        $region20: #{upsample_block_forward.3} parent=15 // pred_fallthru
          _
        // Predicated region
        $region40: #{upsample_block_forward.3} parent=15 // pred_check
          %p208 = pneg %p69
        $region41: #{upsample_block_forward.3} parent=15 // pred_check_branch
          %210 = sbr.rel (%p208) target = $region43
        $region42: #{upsample_block_forward.3} parent=15 // pred_region
          %s211 = smul.u32 2, %s17
          %p212 = scmp.lt.s32.totalorder %s211, 3
          %s213 = scalar_select %p212, %s211, 3
          %s214 = scalar_lea.vmem %s1, %s213
          %s215 = smul.u32 2, %s17
        $region43: #{upsample_block_forward.3} parent=15 // pred_fallthru
          _
        // Predicated region
        $region44: #{upsample_block_forward.3} parent=15 // pred_check
          %p216 = pneg %p95
        $region45: #{upsample_block_forward.3} parent=15 // pred_check_branch
          %218 = sbr.rel (%p216) target = $region47
        $region46: #{upsample_block_forward.3} parent=15 // pred_region
          %s219 = smul.u32 2, %s17
          %p220 = scmp.lt.s32.totalorder %s219, 3
          %s221 = scalar_select %p220, %s219, 3
          %s222 = scalar_lea.vmem %s2, %s221
          %s223 = smul.u32 2, %s17
        $region47: #{upsample_block_forward.3} parent=15 // pred_fallthru
          _
      $region16: #{upsample_block_forward.3} parent=5 // pred_fallthru
        _
      %p224 = scmp.le.s32.totalorder 1, %s9
      %p225 = scmp.lt.s32.totalorder %s9, 3
      %p226 = pnand %p224, %p225
      %p227 = pneg %p226
      // Predicated region
      $region48: #{upsample_block_forward.3} parent=5 // pred_check
        _
      $region49: #{upsample_block_forward.3} parent=5 // pred_check_branch
        %229 = sbr.rel (%p226) target = $region51
      $region50: #{upsample_block_forward.3} parent=5 // pred_region
        %s230 = ssub.s32 %s9, 1
        %s231 = sand.u32 %s36, 1
        %s232 = sand.u32 %s36, 1
        %s233 = smul.addr %s232, 128
        %s234 = scalar_lea.vmem [#allocation2], %s233
        // Predicated region
        $region52: #{upsample_block_forward.3} parent=50 // pred_check
          %p235 = pneg %p49
        $region53: #{upsample_block_forward.3} parent=50 // pred_check_branch
          %237 = sbr.rel (%p235) target = $region55
        $region54: #{upsample_block_forward.3} parent=50 // pred_region
          _
        $region55: #{upsample_block_forward.3} parent=50 // pred_fallthru
          _
        %s238 = sand.u32 %s36, 1
        %s239 = sand.u32 %s36, 1
        %s240 = smul.addr %s239, 128
        %s241 = scalar_lea.vmem [#allocation2], %s240
        %p242 = pneg %p49
        %p243 = pneg %p46
        %s244 = smul.u32 2, %s19
        %p245 = scmp.lt.s32.totalorder %s244, 3
        %s246 = scalar_select %p245, %s244, 3
        %s247 = scalar_lea.vmem %s1, %s246
        %p248 = pneg %p75
        %p249 = pneg %p72
        %s250 = smul.u32 2, %s19
        %p251 = scmp.lt.s32.totalorder %s250, 3
        %s252 = scalar_select %p251, %s250, 3
        %s253 = scalar_lea.vmem %s2, %s252
        %p254 = pneg %p101
        %p255 = pneg %p98
        %p256 = pneg %p129
        %p257 = pneg %p126
        %s258 = sand.u32 %s116, 1
        %s259 = sand.u32 %s116, 1
        %s260 = smul.addr %s259, 128
        %s261 = scalar_lea.vmem [#allocation3], %s260
        %s262 = smul.u32 8, %s18
        %s263 = smul.u32 2, %s19
        %s264 = smul.u32 2, %s19
        %p265 = scmp.lt.s32.totalorder %s264, 3
        %s266 = scalar_select %p265, %s264, 3
        %s267 = scalar_lea.vmem %s1, %s266
        %s268 = smul.u32 2, %s19
        %s269 = smul.u32 2, %s19
        %p270 = scmp.lt.s32.totalorder %s269, 3
        %s271 = scalar_select %p270, %s269, 3
        %s272 = scalar_lea.vmem %s2, %s271
        %s273 = smul.u32 2, %s19
        %s274 = smul.u32 8, %s18
        %s275 = smul.u32 2, %s19
        %v276 = vld [vmem:[%s234] sm:$0xff]
        %v277 = vld [vmem:[%s234 + $0x8] sm:$0xff]
        %v278 = vld [vmem:[%s234 + $0x10] sm:$0xff]
        %v279 = vld [vmem:[%s234 + $0x18] sm:$0xff]
        %v280 = vld [vmem:[%s234 + $0x20] sm:$0xff]
        %v281 = vld [vmem:[%s234 + $0x28] sm:$0xff]
        %v282 = vld [vmem:[%s234 + $0x30] sm:$0xff]
        %v283 = vld [vmem:[%s234 + $0x38] sm:$0xff]
        %v284 = vld [vmem:[%s234 + $0x40] sm:$0xff]
        %v285 = vld [vmem:[%s234 + $0x48] sm:$0xff]
        %v286 = vld [vmem:[%s234 + $0x50] sm:$0xff]
        %v287 = vld [vmem:[%s234 + $0x58] sm:$0xff]
        %v288 = vld [vmem:[%s234 + $0x60] sm:$0xff]
        %v289 = vld [vmem:[%s234 + $0x68] sm:$0xff]
        %v290 = vld [vmem:[%s234 + $0x70] sm:$0xff]
        %v291 = vld [vmem:[%s234 + $0x78] sm:$0xff]
        %v292 = vld [vmem:[%s267] sm:$0x3]
        %v294 = vperm.slane %v292, 0
        %v295 = vperm.slane %v292, 1
        %v298 = vmul.f32 %v276, %v294
        %v299 = vmul.f32 %v277, %v295
        %v300 = vmul.f32 %v278, %v294
        %v301 = vmul.f32 %v279, %v295
        %v302 = vmul.f32 %v280, %v294
        %v303 = vmul.f32 %v281, %v295
        %v304 = vmul.f32 %v282, %v294
        %v305 = vmul.f32 %v283, %v295
        %v306 = vmul.f32 %v284, %v294
        %v307 = vmul.f32 %v285, %v295
        %v308 = vmul.f32 %v286, %v294
        %v309 = vmul.f32 %v287, %v295
        %v310 = vmul.f32 %v288, %v294
        %v311 = vmul.f32 %v289, %v295
        %v312 = vmul.f32 %v290, %v294
        %v313 = vmul.f32 %v291, %v295
        %v314 = vld [vmem:[%s272] sm:$0x3]
        %v316 = vperm.slane %v314, 0
        %v317 = vperm.slane %v314, 1
        %v320 = vadd.f32 %v298, %v316
        %v321 = vadd.f32 %v299, %v317
        %v322 = vadd.f32 %v300, %v316
        %v323 = vadd.f32 %v301, %v317
        %v324 = vadd.f32 %v302, %v316
        %v325 = vadd.f32 %v303, %v317
        %v326 = vadd.f32 %v304, %v316
        %v327 = vadd.f32 %v305, %v317
        %v328 = vadd.f32 %v306, %v316
        %v329 = vadd.f32 %v307, %v317
        %v330 = vadd.f32 %v308, %v316
        %v331 = vadd.f32 %v309, %v317
        %v332 = vadd.f32 %v310, %v316
        %v333 = vadd.f32 %v311, %v317
        %v334 = vadd.f32 %v312, %v316
        %v335 = vadd.f32 %v313, %v317
        %v336 = vmax.f32 %v320, 0.0
        %v337 = vmax.f32 %v321, 0.0
        %v338 = vmax.f32 %v322, 0.0
        %v339 = vmax.f32 %v323, 0.0
        %v340 = vmax.f32 %v324, 0.0
        %v341 = vmax.f32 %v325, 0.0
        %v342 = vmax.f32 %v326, 0.0
        %v343 = vmax.f32 %v327, 0.0
        %v344 = vmax.f32 %v328, 0.0
        %v345 = vmax.f32 %v329, 0.0
        %v346 = vmax.f32 %v330, 0.0
        %v347 = vmax.f32 %v331, 0.0
        %v348 = vmax.f32 %v332, 0.0
        %v349 = vmax.f32 %v333, 0.0
        %v350 = vmax.f32 %v334, 0.0
        %v351 = vmax.f32 %v335, 0.0
        %352 = vst [vmem:[%s261] sm:$0xff] %v336
        %353 = vst [vmem:[%s261 + $0x8] sm:$0xff] %v337
        %354 = vst [vmem:[%s261 + $0x10] sm:$0xff] %v338
        %355 = vst [vmem:[%s261 + $0x18] sm:$0xff] %v339
        %356 = vst [vmem:[%s261 + $0x20] sm:$0xff] %v340
        %357 = vst [vmem:[%s261 + $0x28] sm:$0xff] %v341
        %358 = vst [vmem:[%s261 + $0x30] sm:$0xff] %v342
        %359 = vst [vmem:[%s261 + $0x38] sm:$0xff] %v343
        %360 = vst [vmem:[%s261 + $0x40] sm:$0xff] %v344
        %361 = vst [vmem:[%s261 + $0x48] sm:$0xff] %v345
        %362 = vst [vmem:[%s261 + $0x50] sm:$0xff] %v346
        %363 = vst [vmem:[%s261 + $0x58] sm:$0xff] %v347
        %364 = vst [vmem:[%s261 + $0x60] sm:$0xff] %v348
        %365 = vst [vmem:[%s261 + $0x68] sm:$0xff] %v349
        %366 = vst [vmem:[%s261 + $0x70] sm:$0xff] %v350
        %367 = vst [vmem:[%s261 + $0x78] sm:$0xff] %v351
        %s368 = sand.u32 %s116, 1
        %s369 = sand.u32 %s116, 1
        %s370 = smul.addr %s369, 128
        %s371 = scalar_lea.vmem [#allocation3], %s370
        // Predicated region
        $region56: #{upsample_block_forward.3} parent=50 // pred_check
          %p372 = pneg %p126
        $region57: #{upsample_block_forward.3} parent=50 // pred_check_branch
          %374 = sbr.rel (%p372) target = $region59
        $region58: #{upsample_block_forward.3} parent=50 // pred_region
          %s375 = smul.u32 8, %s18
          %s376 = smul.u32 2, %s19
          %s377 = smul.addr %s375, 4
          %s378 = sadd.s32 %s376, %s377
          %s379 = smul.addr %s378, 8
          %s380 = scalar_lea.vmem %s3, %s379
          // Predicated region
          $region60: #{upsample_block_forward.3} parent=58 // pred_check
            _
          $region61: #{upsample_block_forward.3} parent=58 // pred_check_branch
            %382 = sbr.rel (0) target = $region63
          $region62: #{upsample_block_forward.3} parent=58 // pred_region
            // Predicated region
            $region64: #{upsample_block_forward.3} parent=62 // pred_check
              _
            $region65: #{upsample_block_forward.3} parent=62 // pred_check_branch
              %384 = sbr.rel (0) target = $region67
            $region66: #{upsample_block_forward.3} parent=62 // pred_region
              loop: start=0, step=1, limit=1
              $region68: #{upsample_block_forward.3} parent=66 // loop_pre_header
                _
              $region69: #{upsample_block_forward.3} parent=66 // loop_header
                %s386 = sphi 0, %s390
                %p387 = scmp.ge.s32.totalorder %s386, 1
                %s391 = sphi %s371, %s371
                %s392 = sphi %s380, %s380
              $region70: #{upsample_block_forward.3} parent=66 // loop_header_branch
                %389 = sbr.rel (%p387) target = $region74
              $region71: #{upsample_block_forward.3} parent=66 // loop_body
                %v393 = vld [vmem:[%s391] sm:$0xff]
                %394 = vst [vmem:[%s392] sm:$0xff] %v393
                %v395 = vld [vmem:[%s391 + $0x8] sm:$0xff]
                %396 = vst [vmem:[%s392 + $0x8] sm:$0xff] %v395
                %v397 = vld [vmem:[%s391 + $0x10] sm:$0xff]
                %398 = vst [vmem:[%s392 + $0x20] sm:$0xff] %v397
                %v399 = vld [vmem:[%s391 + $0x18] sm:$0xff]
                %400 = vst [vmem:[%s392 + $0x28] sm:$0xff] %v399
                %v401 = vld [vmem:[%s391 + $0x20] sm:$0xff]
                %402 = vst [vmem:[%s392 + $0x40] sm:$0xff] %v401
                %v403 = vld [vmem:[%s391 + $0x28] sm:$0xff]
                %404 = vst [vmem:[%s392 + $0x48] sm:$0xff] %v403
                %v405 = vld [vmem:[%s391 + $0x30] sm:$0xff]
                %406 = vst [vmem:[%s392 + $0x60] sm:$0xff] %v405
                %v407 = vld [vmem:[%s391 + $0x38] sm:$0xff]
                %408 = vst [vmem:[%s392 + $0x68] sm:$0xff] %v407
                %v409 = vld [vmem:[%s391 + $0x40] sm:$0xff]
                %410 = vst [vmem:[%s392 + $0x80] sm:$0xff] %v409
                %v411 = vld [vmem:[%s391 + $0x48] sm:$0xff]
                %412 = vst [vmem:[%s392 + $0x88] sm:$0xff] %v411
                %v413 = vld [vmem:[%s391 + $0x50] sm:$0xff]
                %414 = vst [vmem:[%s392 + $0xa0] sm:$0xff] %v413
                %v415 = vld [vmem:[%s391 + $0x58] sm:$0xff]
                %416 = vst [vmem:[%s392 + $0xa8] sm:$0xff] %v415
                %v417 = vld [vmem:[%s391 + $0x60] sm:$0xff]
                %418 = vst [vmem:[%s392 + $0xc0] sm:$0xff] %v417
                %v419 = vld [vmem:[%s391 + $0x68] sm:$0xff]
                %420 = vst [vmem:[%s392 + $0xc8] sm:$0xff] %v419
                %v421 = vld [vmem:[%s391 + $0x70] sm:$0xff]
                %422 = vst [vmem:[%s392 + $0xe0] sm:$0xff] %v421
                %v423 = vld [vmem:[%s391 + $0x78] sm:$0xff]
                %424 = vst [vmem:[%s392 + $0xe8] sm:$0xff] %v423
              $region72: #{upsample_block_forward.3} parent=66 // loop_footer
                %s390 = sadd.s32 1, %s386
              $region73: #{upsample_block_forward.3} parent=66 // loop_footer_branch
                %385 = sbr.rel target = $region69
              $region74: #{upsample_block_forward.3} parent=66 // loop_exit
                _
            $region67: #{upsample_block_forward.3} parent=62 // pred_fallthru
              _
            // Predicated region
            $region75: #{upsample_block_forward.3} parent=62 // pred_check
              _
            $region76: #{upsample_block_forward.3} parent=62 // pred_check_branch
              %426 = sbr.rel target = $region78
            $region77: #{upsample_block_forward.3} parent=62 // pred_region
              _
            $region78: #{upsample_block_forward.3} parent=62 // pred_fallthru
              _
          $region63: #{upsample_block_forward.3} parent=58 // pred_fallthru
            _
          %427 = vnop
        $region59: #{upsample_block_forward.3} parent=50 // pred_fallthru
          _
      $region51: #{upsample_block_forward.3} parent=5 // pred_fallthru
        _
      %p428 = scmp.le.s32.totalorder 2, %s9
      // Predicated region
      $region79: #{upsample_block_forward.3} parent=5 // pred_check
        %p429 = pneg %p428
      $region80: #{upsample_block_forward.3} parent=5 // pred_check_branch
        %431 = sbr.rel (%p429) target = $region82
      $region81: #{upsample_block_forward.3} parent=5 // pred_region
        %s432 = ssub.s32 %s9, 2
        // Predicated region
        $region83: #{upsample_block_forward.3} parent=81 // pred_check
          %p433 = pneg %p132
        $region84: #{upsample_block_forward.3} parent=81 // pred_check_branch
          %435 = sbr.rel (%p433) target = $region86
        $region85: #{upsample_block_forward.3} parent=81 // pred_region
          %s436 = sand.u32 %s117, 1
          %s437 = sand.u32 %s117, 1
          %s438 = smul.addr %s437, 128
          %s439 = scalar_lea.vmem [#allocation3], %s438
        $region86: #{upsample_block_forward.3} parent=81 // pred_fallthru
          _
      $region82: #{upsample_block_forward.3} parent=5 // pred_fallthru
        _
    $region6: #{upsample_block_forward.3} parent=1 // loop_footer
      %s13 = sadd.s32 1, %s9
    $region7: #{upsample_block_forward.3} parent=1 // loop_footer_branch
      %8 = sbr.rel target = $region3
    $region8: #{upsample_block_forward.3} parent=1 // loop_exit
      _

</llo_original>
